<compile_context>
chip_gen: v6e
topology: v6e:2x2x1
jax: 0.10.0
libtpu: 0.0.40
codegen_flags: <defaults>
</compile_context>

<pallas_src>
import functools

import jax
import jax.numpy as jnp
from jax.experimental import pallas as pl
from jax.experimental.pallas import tpu as pltpu


def _double_conv_kernel(h, w, x_ref, w1_ref, b1_ref, w2_ref, b2_ref, out_ref,
                        xpad1, cols1, xpad2, cols2):
    """One batch element per grid step.

    x_ref : (1, Cin, H*W)          flattened NCHW input tile
    w1_ref: (Cmid, 9*Cin)          conv1 weights (BN scale folded in)
    b1_ref: (Cmid, 1)              folded conv-bias + BN bias
    w2_ref: (Cout, 9*Cmid)
    b2_ref: (Cout, 1)
    out_ref:(1, Cout, H*W)         lane-dense output (last dim = H*W)
    xpad1 : VMEM (Cin, H+2, W+2)   zero-halo scratch for layer 1
    cols1 : VMEM (9*Cin, H*W)      im2col slab for layer 1
    xpad2 : VMEM (Cmid, H+2, W+2)  zero-halo scratch for layer 2 (intermediate stays in VMEM)
    cols2 : VMEM (9*Cmid, H*W)
    """
    cin = xpad1.shape[0]
    cmid = xpad2.shape[0]

    # Zero the halo buffers every step (cheap; also megacore-safe since scratch is per-core).
    xpad1[...] = jnp.zeros_like(xpad1)
    xpad2[...] = jnp.zeros_like(xpad2)

    # Place the input interior inside the zero halo ('same' padding handled in-kernel).
    xpad1[:, 1:h + 1, 1:w + 1] = x_ref[0].reshape(cin, h, w)

    def conv_bn_relu(xpad_ref, cols_ref, wmat_ref, brow_ref):
        c_in = xpad_ref.shape[0]
        xp = xpad_ref[...]                                  # (c_in, H+2, W+2)
        t = 0
        # im2col: 9 shifted patches stacked along the K axis -> (9*c_in, H*W)
        for kh in range(3):
            for kw in range(3):
                patch = xp[:, kh:kh + h, kw:kw + w].reshape(c_in, h * w)
                cols_ref[t * c_in:(t + 1) * c_in, :] = patch
                t += 1
        # Single MXU matmul: (C_out, 9*c_in) x (9*c_in, H*W) -> (C_out, H*W), lane-dense.
        y = jnp.dot(wmat_ref[...], cols_ref[...],
                    preferred_element_type=jnp.float32)
        # BN scale is pre-folded into the weights; epilogue is just bias + ReLU (f32).
        return jnp.maximum(y + brow_ref[...], 0.0)

    y1 = conv_bn_relu(xpad1, cols1, w1_ref, b1_ref)         # (Cmid, H*W), stays in VMEM
    xpad2[:, 1:h + 1, 1:w + 1] = y1.reshape(cmid, h, w)
    y2 = conv_bn_relu(xpad2, cols2, w2_ref, b2_ref)         # (Cout, H*W)

    out_ref[0] = y2.astype(out_ref.dtype)


def _prep_layer(w_kkio, conv_b, gamma, beta, mean, var, eps=1e-5):
    """Fold conv bias + eval-mode BN into (weights*scale, bias); reorder weights for im2col.

    w_kkio: (3, 3, Cin, Cout)  ->  (Cout, 9*Cin) ordered [co, (kh*3+kw)*Cin + ci].
    """
    cout = w_kkio.shape[-1]
    inv_std = 1.0 / jnp.sqrt(var + eps)
    scale = gamma * inv_std                                  # (Cout,)
    bias = (conv_b - mean) * scale + beta                    # (Cout,)
    wmat = jnp.transpose(w_kkio, (3, 0, 1, 2)).reshape(cout, -1)  # (Cout, 9*Cin)
    wmat = wmat * scale[:, None]                             # fold BN scale into weights
    return wmat.astype(jnp.float32), bias.reshape(cout, 1).astype(jnp.float32)


def inconv_forward(x_nchw, params):
    """PyTorch-compatible entry point: NCHW in, NCHW out (no transposes, no pre-pad)."""
    n, cin, h, w = x_nchw.shape

    w1, b1 = _prep_layer(params["w1"], params["b1"], params["gamma1"],
                         params["beta1"], params["mean1"], params["var1"])
    w2, b2 = _prep_layer(params["w2"], params["b2"], params["gamma2"],
                         params["beta2"], params["mean2"], params["var2"])
    cmid = w1.shape[0]
    cout = w2.shape[0]

    # Free, layout-preserving reshape (row-major NCHW == N,C,H*W): no HBM transpose traffic.
    x_flat = x_nchw.reshape(n, cin, h * w).astype(jnp.float32)

    kernel = functools.partial(_double_conv_kernel, h, w)

    flops = 2 * n * h * w * 9 * (cin * cmid + cmid * cout)
    bytes_accessed = 4 * (x_flat.size + n * cout * h * w
                          + w1.size + b1.size + w2.size + b2.size)

    out_flat = pl.pallas_call(
        kernel,
        out_shape=jax.ShapeDtypeStruct((n, cout, h * w), jnp.float32),
        grid_spec=pltpu.PrefetchScalarGridSpec(
            num_scalar_prefetch=0,
            grid=(n,),
            in_specs=[
                pl.BlockSpec((1, cin, h * w), lambda b: (b, 0, 0)),
                pl.BlockSpec((cmid, 9 * cin), lambda b: (0, 0)),
                pl.BlockSpec((cmid, 1), lambda b: (0, 0)),
                pl.BlockSpec((cout, 9 * cmid), lambda b: (0, 0)),
                pl.BlockSpec((cout, 1), lambda b: (0, 0)),
            ],
            out_specs=pl.BlockSpec((1, cout, h * w), lambda b: (b, 0, 0)),
            scratch_shapes=[
                pltpu.VMEM((cin, h + 2, w + 2), jnp.float32),
                pltpu.VMEM((9 * cin, h * w), jnp.float32),
                pltpu.VMEM((cmid, h + 2, w + 2), jnp.float32),
                pltpu.VMEM((9 * cmid, h * w), jnp.float32),
            ]),
        compiler_params=pltpu.CompilerParams(
            dimension_semantics=("parallel",)),
        cost_estimate=pl.CostEstimate(flops=flops, transcendentals=0,
                                      bytes_accessed=bytes_accessed),
    )(x_flat, w1, b1, w2, b2)

    # Free reshape back to NCHW (same memory layout).
    return out_flat.reshape(n, cout, h, w)


def _reference_forward(x_nchw, params):
    """Pure-JAX reference (lax conv) for correctness checking."""
    def block(x, w_kkio, conv_b, gamma, beta, mean, var, eps=1e-5):
        w_oihw = jnp.transpose(w_kkio, (3, 2, 0, 1))
        y = jax.lax.conv_general_dilated(
            x, w_oihw, window_strides=(1, 1), padding="SAME",
            dimension_numbers=("NCHW", "OIHW", "NCHW"))
        y = y + conv_b[None, :, None, None]
        y = (y - mean[None, :, None, None]) / jnp.sqrt(var + eps)[None, :, None, None]
        y = y * gamma[None, :, None, None] + beta[None, :, None, None]
        return jnp.maximum(y, 0.0)

    y = block(x_nchw, params["w1"], params["b1"], params["gamma1"],
              params["beta1"], params["mean1"], params["var1"])
    y = block(y, params["w2"], params["b2"], params["gamma2"],
              params["beta2"], params["mean2"], params["var2"])
    return y


def make_params(key, in_ch, out_ch):
    ks = jax.random.split(key, 8)
    return {
        # conv1: (3,3,Cin,Cout)   conv2: (3,3,Cout,Cout)
        "w1": 0.1 * jax.random.normal(ks[0], (3, 3, in_ch, out_ch), jnp.float32),
        "b1": 0.1 * jax.random.normal(ks[1], (out_ch,), jnp.float32),
        "w2": 0.1 * jax.random.normal(ks[2], (3, 3, out_ch, out_ch), jnp.float32),
        "b2": 0.1 * jax.random.normal(ks[3], (out_ch,), jnp.float32),
        # BatchNorm (eval-mode running stats)
        "gamma1": 1.0 + 0.1 * jax.random.normal(ks[4], (out_ch,), jnp.float32),
        "beta1": 0.1 * jax.random.normal(ks[5], (out_ch,), jnp.float32),
        "mean1": jnp.zeros((out_ch,), jnp.float32),
        "var1": jnp.ones((out_ch,), jnp.float32),
        "gamma2": 1.0 + 0.1 * jax.random.normal(ks[6], (out_ch,), jnp.float32),
        "beta2": 0.1 * jax.random.normal(ks[7], (out_ch,), jnp.float32),
        "mean2": jnp.zeros((out_ch,), jnp.float32),
        "var2": jnp.ones((out_ch,), jnp.float32),
    }


if __name__ == "__main__":
    N, IN_CH, OUT_CH, H, W = 2, 4, 8, 16, 16

    key = jax.random.PRNGKey(0)
    kx, kp = jax.random.split(key)
    x = jax.random.normal(kx, (N, IN_CH, H, W), jnp.float32)
    params = make_params(kp, IN_CH, OUT_CH)

    out = jax.block_until_ready(inconv_forward(x, params))
    ref = jax.block_until_ready(_reference_forward(x, params))

    assert out.shape == (N, OUT_CH, H, W), out.shape
    assert jnp.allclose(out, ref, rtol=1e-4, atol=1e-4), "mismatch vs lax reference"

    print("KERNEL_OK")
</pallas_src>

<mosaic_0001>
module attributes {stable_mosaic.version = 11 : i64} {
  func.func @_double_conv_kernel(%arg0: i32, %arg1: memref<1x4x256xf32, #tpu.memory_space<vmem>>, %arg2: memref<8x36xf32, #tpu.memory_space<vmem>>, %arg3: memref<8x1xf32, #tpu.memory_space<vmem>>, %arg4: memref<8x72xf32, #tpu.memory_space<vmem>>, %arg5: memref<8x1xf32, #tpu.memory_space<vmem>>, %arg6: memref<1x8x256xf32, #tpu.memory_space<vmem>>, %arg7: memref<4x18x18xf32, #tpu.memory_space<vmem>>, %arg8: memref<36x256xf32, #tpu.memory_space<vmem>>, %arg9: memref<8x18x18xf32, #tpu.memory_space<vmem>>, %arg10: memref<72x256xf32, #tpu.memory_space<vmem>>) attributes {dimension_semantics = [#tpu.dimension_semantics<parallel>], iteration_bounds = array<i64: 2>, scalar_prefetch = 0 : i64, scratch_operands = 4 : i64, tpu.core_type = #tpu.core_type<tc>, window_params = [{transform_indices = @transform_0, window_bounds = array<i64: 1, 4, 256>}, {pipeline_mode = #tpu.pipeline_mode<synchronous>, transform_indices = @transform_1, window_bounds = array<i64: 8, 36>}, {pipeline_mode = #tpu.pipeline_mode<synchronous>, transform_indices = @transform_2, window_bounds = array<i64: 8, 1>}, {pipeline_mode = #tpu.pipeline_mode<synchronous>, transform_indices = @transform_3, window_bounds = array<i64: 8, 72>}, {pipeline_mode = #tpu.pipeline_mode<synchronous>, transform_indices = @transform_4, window_bounds = array<i64: 8, 1>}, {transform_indices = @transform_5, window_bounds = array<i64: 1, 8, 256>}]} {
    %cst = arith.constant 0.000000e+00 : f32
    %0 = vector.broadcast %cst : f32 to vector<4x18x18xf32>
    %c0 = arith.constant 0 : index
    %c0_0 = arith.constant 0 : index
    %c0_1 = arith.constant 0 : index
    %1 = vector.load %arg7[%c0, %c0_0, %c0_1] : memref<4x18x18xf32, #tpu.memory_space<vmem>>, vector<4x18x18xf32>
    tpu.vector_store %arg7[%c0, %c0_0, %c0_1], %0 {strides = array<i32>} : memref<4x18x18xf32, #tpu.memory_space<vmem>>, vector<4x18x18xf32>,
    %cst_2 = arith.constant 0.000000e+00 : f32
    %2 = vector.broadcast %cst_2 : f32 to vector<8x18x18xf32>
    %c0_3 = arith.constant 0 : index
    %c0_4 = arith.constant 0 : index
    %c0_5 = arith.constant 0 : index
    %3 = vector.load %arg9[%c0_3, %c0_4, %c0_5] : memref<8x18x18xf32, #tpu.memory_space<vmem>>, vector<8x18x18xf32>
    tpu.vector_store %arg9[%c0_3, %c0_4, %c0_5], %2 {strides = array<i32>} : memref<8x18x18xf32, #tpu.memory_space<vmem>>, vector<8x18x18xf32>,
    %c0_6 = arith.constant 0 : index
    %c0_7 = arith.constant 0 : index
    %c0_8 = arith.constant 0 : index
    %4 = vector.load %arg1[%c0_6, %c0_7, %c0_8] : memref<1x4x256xf32, #tpu.memory_space<vmem>>, vector<1x4x256xf32>
    %5 = vector.shape_cast %4 : vector<1x4x256xf32> to vector<4x256xf32>
    %6 = vector.shape_cast %5 : vector<4x256xf32> to vector<4x16x16xf32>
    %c0_9 = arith.constant 0 : index
    %c1 = arith.constant 1 : index
    %c1_10 = arith.constant 1 : index
    %7 = vector.load %arg7[%c0_9, %c1, %c1_10] : memref<4x18x18xf32, #tpu.memory_space<vmem>>, vector<4x16x16xf32>
    tpu.vector_store %arg7[%c0_9, %c1, %c1_10], %6 {strides = array<i32>} : memref<4x18x18xf32, #tpu.memory_space<vmem>>, vector<4x16x16xf32>,
    %c0_11 = arith.constant 0 : index
    %c0_12 = arith.constant 0 : index
    %c0_13 = arith.constant 0 : index
    %8 = vector.load %arg7[%c0_11, %c0_12, %c0_13] : memref<4x18x18xf32, #tpu.memory_space<vmem>>, vector<4x18x18xf32>
    %9 = vector.extract_strided_slice %8 {offsets = [0, 0, 0], sizes = [4, 16, 16], strides = [1, 1, 1]} : vector<4x18x18xf32> to vector<4x16x16xf32>
    %10 = vector.shape_cast %9 : vector<4x16x16xf32> to vector<4x256xf32>
    %c0_14 = arith.constant 0 : index
    %c0_15 = arith.constant 0 : index
    %11 = vector.load %arg8[%c0_14, %c0_15] : memref<36x256xf32, #tpu.memory_space<vmem>>, vector<4x256xf32>
    tpu.vector_store %arg8[%c0_14, %c0_15], %10 {strides = array<i32>} : memref<36x256xf32, #tpu.memory_space<vmem>>, vector<4x256xf32>,
    %12 = vector.extract_strided_slice %8 {offsets = [0, 0, 1], sizes = [4, 16, 16], strides = [1, 1, 1]} : vector<4x18x18xf32> to vector<4x16x16xf32>
    %13 = vector.shape_cast %12 : vector<4x16x16xf32> to vector<4x256xf32>
    %c4 = arith.constant 4 : index
    %c0_16 = arith.constant 0 : index
    %14 = vector.load %arg8[%c4, %c0_16] : memref<36x256xf32, #tpu.memory_space<vmem>>, vector<4x256xf32>
    tpu.vector_store %arg8[%c4, %c0_16], %13 {strides = array<i32>} : memref<36x256xf32, #tpu.memory_space<vmem>>, vector<4x256xf32>,
    %15 = vector.extract_strided_slice %8 {offsets = [0, 0, 2], sizes = [4, 16, 16], strides = [1, 1, 1]} : vector<4x18x18xf32> to vector<4x16x16xf32>
    %16 = vector.shape_cast %15 : vector<4x16x16xf32> to vector<4x256xf32>
    %c8 = arith.constant 8 : index
    %c0_17 = arith.constant 0 : index
    %17 = vector.load %arg8[%c8, %c0_17] : memref<36x256xf32, #tpu.memory_space<vmem>>, vector<4x256xf32>
    tpu.vector_store %arg8[%c8, %c0_17], %16 {strides = array<i32>} : memref<36x256xf32, #tpu.memory_space<vmem>>, vector<4x256xf32>,
    %18 = vector.extract_strided_slice %8 {offsets = [0, 1, 0], sizes = [4, 16, 16], strides = [1, 1, 1]} : vector<4x18x18xf32> to vector<4x16x16xf32>
    %19 = vector.shape_cast %18 : vector<4x16x16xf32> to vector<4x256xf32>
    %c12 = arith.constant 12 : index
    %c0_18 = arith.constant 0 : index
    %20 = vector.load %arg8[%c12, %c0_18] : memref<36x256xf32, #tpu.memory_space<vmem>>, vector<4x256xf32>
    tpu.vector_store %arg8[%c12, %c0_18], %19 {strides = array<i32>} : memref<36x256xf32, #tpu.memory_space<vmem>>, vector<4x256xf32>,
    %21 = vector.extract_strided_slice %8 {offsets = [0, 1, 1], sizes = [4, 16, 16], strides = [1, 1, 1]} : vector<4x18x18xf32> to vector<4x16x16xf32>
    %22 = vector.shape_cast %21 : vector<4x16x16xf32> to vector<4x256xf32>
    %c16 = arith.constant 16 : index
    %c0_19 = arith.constant 0 : index
    %23 = vector.load %arg8[%c16, %c0_19] : memref<36x256xf32, #tpu.memory_space<vmem>>, vector<4x256xf32>
    tpu.vector_store %arg8[%c16, %c0_19], %22 {strides = array<i32>} : memref<36x256xf32, #tpu.memory_space<vmem>>, vector<4x256xf32>,
    %24 = vector.extract_strided_slice %8 {offsets = [0, 1, 2], sizes = [4, 16, 16], strides = [1, 1, 1]} : vector<4x18x18xf32> to vector<4x16x16xf32>
    %25 = vector.shape_cast %24 : vector<4x16x16xf32> to vector<4x256xf32>
    %c20 = arith.constant 20 : index
    %c0_20 = arith.constant 0 : index
    %26 = vector.load %arg8[%c20, %c0_20] : memref<36x256xf32, #tpu.memory_space<vmem>>, vector<4x256xf32>
    tpu.vector_store %arg8[%c20, %c0_20], %25 {strides = array<i32>} : memref<36x256xf32, #tpu.memory_space<vmem>>, vector<4x256xf32>,
    %27 = vector.extract_strided_slice %8 {offsets = [0, 2, 0], sizes = [4, 16, 16], strides = [1, 1, 1]} : vector<4x18x18xf32> to vector<4x16x16xf32>
    %28 = vector.shape_cast %27 : vector<4x16x16xf32> to vector<4x256xf32>
    %c24 = arith.constant 24 : index
    %c0_21 = arith.constant 0 : index
    %29 = vector.load %arg8[%c24, %c0_21] : memref<36x256xf32, #tpu.memory_space<vmem>>, vector<4x256xf32>
    tpu.vector_store %arg8[%c24, %c0_21], %28 {strides = array<i32>} : memref<36x256xf32, #tpu.memory_space<vmem>>, vector<4x256xf32>,
    %30 = vector.extract_strided_slice %8 {offsets = [0, 2, 1], sizes = [4, 16, 16], strides = [1, 1, 1]} : vector<4x18x18xf32> to vector<4x16x16xf32>
    %31 = vector.shape_cast %30 : vector<4x16x16xf32> to vector<4x256xf32>
    %c28 = arith.constant 28 : index
    %c0_22 = arith.constant 0 : index
    %32 = vector.load %arg8[%c28, %c0_22] : memref<36x256xf32, #tpu.memory_space<vmem>>, vector<4x256xf32>
    tpu.vector_store %arg8[%c28, %c0_22], %31 {strides = array<i32>} : memref<36x256xf32, #tpu.memory_space<vmem>>, vector<4x256xf32>,
    %33 = vector.extract_strided_slice %8 {offsets = [0, 2, 2], sizes = [4, 16, 16], strides = [1, 1, 1]} : vector<4x18x18xf32> to vector<4x16x16xf32>
    %34 = vector.shape_cast %33 : vector<4x16x16xf32> to vector<4x256xf32>
    %c32 = arith.constant 32 : index
    %c0_23 = arith.constant 0 : index
    %35 = vector.load %arg8[%c32, %c0_23] : memref<36x256xf32, #tpu.memory_space<vmem>>, vector<4x256xf32>
    tpu.vector_store %arg8[%c32, %c0_23], %34 {strides = array<i32>} : memref<36x256xf32, #tpu.memory_space<vmem>>, vector<4x256xf32>,
    %c0_24 = arith.constant 0 : index
    %c0_25 = arith.constant 0 : index
    %36 = vector.load %arg2[%c0_24, %c0_25] : memref<8x36xf32, #tpu.memory_space<vmem>>, vector<8x36xf32>
    %c0_26 = arith.constant 0 : index
    %c0_27 = arith.constant 0 : index
    %37 = vector.load %arg8[%c0_26, %c0_27] : memref<36x256xf32, #tpu.memory_space<vmem>>, vector<36x256xf32>
    %cst_28 = arith.constant dense<0.000000e+00> : vector<8x256xf32>
    %38 = tpu.matmul %36, %37, %cst_28 {dimension_numbers = #tpu.dot_dimension_numbers<[1], [0], [0], [1], [0, 0, 1, 1], [], []>} : vector<8x36xf32>, vector<36x256xf32>, vector<8x256xf32> -> vector<8x256xf32>
    %c0_29 = arith.constant 0 : index
    %c0_30 = arith.constant 0 : index
    %39 = vector.load %arg3[%c0_29, %c0_30] : memref<8x1xf32, #tpu.memory_space<vmem>>, vector<8x1xf32>
    %40 = vector.broadcast %39 : vector<8x1xf32> to vector<8x256xf32>
    %41 = arith.addf %38, %40 : vector<8x256xf32>
    %cst_31 = arith.constant 0.000000e+00 : f32
    %42 = vector.broadcast %cst_31 : f32 to vector<8x256xf32>
    %43 = arith.maximumf %41, %42 : vector<8x256xf32>
    %44 = vector.shape_cast %43 : vector<8x256xf32> to vector<8x16x16xf32>
    %c0_32 = arith.constant 0 : index
    %c1_33 = arith.constant 1 : index
    %c1_34 = arith.constant 1 : index
    %45 = vector.load %arg9[%c0_32, %c1_33, %c1_34] : memref<8x18x18xf32, #tpu.memory_space<vmem>>, vector<8x16x16xf32>
    tpu.vector_store %arg9[%c0_32, %c1_33, %c1_34], %44 {strides = array<i32>} : memref<8x18x18xf32, #tpu.memory_space<vmem>>, vector<8x16x16xf32>,
    %c0_35 = arith.constant 0 : index
    %c0_36 = arith.constant 0 : index
    %c0_37 = arith.constant 0 : index
    %46 = vector.load %arg9[%c0_35, %c0_36, %c0_37] : memref<8x18x18xf32, #tpu.memory_space<vmem>>, vector<8x18x18xf32>
    %47 = vector.extract_strided_slice %46 {offsets = [0, 0, 0], sizes = [8, 16, 16], strides = [1, 1, 1]} : vector<8x18x18xf32> to vector<8x16x16xf32>
    %48 = vector.shape_cast %47 : vector<8x16x16xf32> to vector<8x256xf32>
    %c0_38 = arith.constant 0 : index
    %c0_39 = arith.constant 0 : index
    %49 = vector.load %arg10[%c0_38, %c0_39] : memref<72x256xf32, #tpu.memory_space<vmem>>, vector<8x256xf32>
    tpu.vector_store %arg10[%c0_38, %c0_39], %48 {strides = array<i32>} : memref<72x256xf32, #tpu.memory_space<vmem>>, vector<8x256xf32>,
    %50 = vector.extract_strided_slice %46 {offsets = [0, 0, 1], sizes = [8, 16, 16], strides = [1, 1, 1]} : vector<8x18x18xf32> to vector<8x16x16xf32>
    %51 = vector.shape_cast %50 : vector<8x16x16xf32> to vector<8x256xf32>
    %c8_40 = arith.constant 8 : index
    %c0_41 = arith.constant 0 : index
    %52 = vector.load %arg10[%c8_40, %c0_41] : memref<72x256xf32, #tpu.memory_space<vmem>>, vector<8x256xf32>
    tpu.vector_store %arg10[%c8_40, %c0_41], %51 {strides = array<i32>} : memref<72x256xf32, #tpu.memory_space<vmem>>, vector<8x256xf32>,
    %53 = vector.extract_strided_slice %46 {offsets = [0, 0, 2], sizes = [8, 16, 16], strides = [1, 1, 1]} : vector<8x18x18xf32> to vector<8x16x16xf32>
    %54 = vector.shape_cast %53 : vector<8x16x16xf32> to vector<8x256xf32>
    %c16_42 = arith.constant 16 : index
    %c0_43 = arith.constant 0 : index
    %55 = vector.load %arg10[%c16_42, %c0_43] : memref<72x256xf32, #tpu.memory_space<vmem>>, vector<8x256xf32>
    tpu.vector_store %arg10[%c16_42, %c0_43], %54 {strides = array<i32>} : memref<72x256xf32, #tpu.memory_space<vmem>>, vector<8x256xf32>,
    %56 = vector.extract_strided_slice %46 {offsets = [0, 1, 0], sizes = [8, 16, 16], strides = [1, 1, 1]} : vector<8x18x18xf32> to vector<8x16x16xf32>
    %57 = vector.shape_cast %56 : vector<8x16x16xf32> to vector<8x256xf32>
    %c24_44 = arith.constant 24 : index
    %c0_45 = arith.constant 0 : index
    %58 = vector.load %arg10[%c24_44, %c0_45] : memref<72x256xf32, #tpu.memory_space<vmem>>, vector<8x256xf32>
    tpu.vector_store %arg10[%c24_44, %c0_45], %57 {strides = array<i32>} : memref<72x256xf32, #tpu.memory_space<vmem>>, vector<8x256xf32>,
    %59 = vector.extract_strided_slice %46 {offsets = [0, 1, 1], sizes = [8, 16, 16], strides = [1, 1, 1]} : vector<8x18x18xf32> to vector<8x16x16xf32>
    %60 = vector.shape_cast %59 : vector<8x16x16xf32> to vector<8x256xf32>
    %c32_46 = arith.constant 32 : index
    %c0_47 = arith.constant 0 : index
    %61 = vector.load %arg10[%c32_46, %c0_47] : memref<72x256xf32, #tpu.memory_space<vmem>>, vector<8x256xf32>
    tpu.vector_store %arg10[%c32_46, %c0_47], %60 {strides = array<i32>} : memref<72x256xf32, #tpu.memory_space<vmem>>, vector<8x256xf32>,
    %62 = vector.extract_strided_slice %46 {offsets = [0, 1, 2], sizes = [8, 16, 16], strides = [1, 1, 1]} : vector<8x18x18xf32> to vector<8x16x16xf32>
    %63 = vector.shape_cast %62 : vector<8x16x16xf32> to vector<8x256xf32>
    %c40 = arith.constant 40 : index
    %c0_48 = arith.constant 0 : index
    %64 = vector.load %arg10[%c40, %c0_48] : memref<72x256xf32, #tpu.memory_space<vmem>>, vector<8x256xf32>
    tpu.vector_store %arg10[%c40, %c0_48], %63 {strides = array<i32>} : memref<72x256xf32, #tpu.memory_space<vmem>>, vector<8x256xf32>,
    %65 = vector.extract_strided_slice %46 {offsets = [0, 2, 0], sizes = [8, 16, 16], strides = [1, 1, 1]} : vector<8x18x18xf32> to vector<8x16x16xf32>
    %66 = vector.shape_cast %65 : vector<8x16x16xf32> to vector<8x256xf32>
    %c48 = arith.constant 48 : index
    %c0_49 = arith.constant 0 : index
    %67 = vector.load %arg10[%c48, %c0_49] : memref<72x256xf32, #tpu.memory_space<vmem>>, vector<8x256xf32>
    tpu.vector_store %arg10[%c48, %c0_49], %66 {strides = array<i32>} : memref<72x256xf32, #tpu.memory_space<vmem>>, vector<8x256xf32>,
    %68 = vector.extract_strided_slice %46 {offsets = [0, 2, 1], sizes = [8, 16, 16], strides = [1, 1, 1]} : vector<8x18x18xf32> to vector<8x16x16xf32>
    %69 = vector.shape_cast %68 : vector<8x16x16xf32> to vector<8x256xf32>
    %c56 = arith.constant 56 : index
    %c0_50 = arith.constant 0 : index
    %70 = vector.load %arg10[%c56, %c0_50] : memref<72x256xf32, #tpu.memory_space<vmem>>, vector<8x256xf32>
    tpu.vector_store %arg10[%c56, %c0_50], %69 {strides = array<i32>} : memref<72x256xf32, #tpu.memory_space<vmem>>, vector<8x256xf32>,
    %71 = vector.extract_strided_slice %46 {offsets = [0, 2, 2], sizes = [8, 16, 16], strides = [1, 1, 1]} : vector<8x18x18xf32> to vector<8x16x16xf32>
    %72 = vector.shape_cast %71 : vector<8x16x16xf32> to vector<8x256xf32>
    %c64 = arith.constant 64 : index
    %c0_51 = arith.constant 0 : index
    %73 = vector.load %arg10[%c64, %c0_51] : memref<72x256xf32, #tpu.memory_space<vmem>>, vector<8x256xf32>
    tpu.vector_store %arg10[%c64, %c0_51], %72 {strides = array<i32>} : memref<72x256xf32, #tpu.memory_space<vmem>>, vector<8x256xf32>,
    %c0_52 = arith.constant 0 : index
    %c0_53 = arith.constant 0 : index
    %74 = vector.load %arg4[%c0_52, %c0_53] : memref<8x72xf32, #tpu.memory_space<vmem>>, vector<8x72xf32>
    %c0_54 = arith.constant 0 : index
    %c0_55 = arith.constant 0 : index
    %75 = vector.load %arg10[%c0_54, %c0_55] : memref<72x256xf32, #tpu.memory_space<vmem>>, vector<72x256xf32>
    %cst_56 = arith.constant dense<0.000000e+00> : vector<8x256xf32>
    %76 = tpu.matmul %74, %75, %cst_56 {dimension_numbers = #tpu.dot_dimension_numbers<[1], [0], [0], [1], [0, 0, 1, 1], [], []>} : vector<8x72xf32>, vector<72x256xf32>, vector<8x256xf32> -> vector<8x256xf32>
    %c0_57 = arith.constant 0 : index
    %c0_58 = arith.constant 0 : index
    %77 = vector.load %arg5[%c0_57, %c0_58] : memref<8x1xf32, #tpu.memory_space<vmem>>, vector<8x1xf32>
    %78 = vector.broadcast %77 : vector<8x1xf32> to vector<8x256xf32>
    %79 = arith.addf %76, %78 : vector<8x256xf32>
    %cst_59 = arith.constant 0.000000e+00 : f32
    %80 = vector.broadcast %cst_59 : f32 to vector<8x256xf32>
    %81 = arith.maximumf %79, %80 : vector<8x256xf32>
    %c0_60 = arith.constant 0 : index
    %c0_61 = arith.constant 0 : index
    %c0_62 = arith.constant 0 : index
    %82 = vector.load %arg6[%c0_60, %c0_61, %c0_62] : memref<1x8x256xf32, #tpu.memory_space<vmem>>, vector<1x8x256xf32>
    %83 = vector.shape_cast %82 : vector<1x8x256xf32> to vector<8x256xf32>
    %84 = vector.shape_cast %81 : vector<8x256xf32> to vector<1x8x256xf32>
    tpu.vector_store %arg6[%c0_60, %c0_61, %c0_62], %84 {strides = array<i32>} : memref<1x8x256xf32, #tpu.memory_space<vmem>>, vector<1x8x256xf32>,
    return
  }
  func.func @transform_0(%arg0: i32) -> (i32, i32, i32) {
    %c0_i32 = arith.constant 0 : i32
    %c0_i32_0 = arith.constant 0 : i32
    %c0_i32_1 = arith.constant 0 : i32
    return %arg0, %c0_i32, %c0_i32_0 : i32, i32, i32
  }
  func.func @transform_1(%arg0: i32) -> (i32, i32) {
    %c0_i32 = arith.constant 0 : i32
    %c0_i32_0 = arith.constant 0 : i32
    %c0_i32_1 = arith.constant 0 : i32
    return %c0_i32, %c0_i32_0 : i32, i32
  }
  func.func @transform_2(%arg0: i32) -> (i32, i32) {
    %c0_i32 = arith.constant 0 : i32
    %c0_i32_0 = arith.constant 0 : i32
    %c0_i32_1 = arith.constant 0 : i32
    return %c0_i32, %c0_i32_0 : i32, i32
  }
  func.func @transform_3(%arg0: i32) -> (i32, i32) {
    %c0_i32 = arith.constant 0 : i32
    %c0_i32_0 = arith.constant 0 : i32
    %c0_i32_1 = arith.constant 0 : i32
    return %c0_i32, %c0_i32_0 : i32, i32
  }
  func.func @transform_4(%arg0: i32) -> (i32, i32) {
    %c0_i32 = arith.constant 0 : i32
    %c0_i32_0 = arith.constant 0 : i32
    %c0_i32_1 = arith.constant 0 : i32
    return %c0_i32, %c0_i32_0 : i32, i32
  }
  func.func @transform_5(%arg0: i32) -> (i32, i32, i32) {
    %c0_i32 = arith.constant 0 : i32
    %c0_i32_0 = arith.constant 0 : i32
    %c0_i32_1 = arith.constant 0 : i32
    return %arg0, %c0_i32, %c0_i32_0 : i32, i32, i32
  }
}

</mosaic_0001>

<llo_original>
// kernel: tpu_custom_call.1
$region0: #{tpu_custom_call.1}
  #allocation0 [shape = 'u32[]', space=smem, size = 0x4, offset = 0x4, fixed_abs, tag = 'smem constant byte address 0x4 - core index']
  #allocation1 [shape = 'u32[144,128]{1,0:T(1,128)}', space=vmem, size = 0x12000, scoped, tag = 'internal scratch']
  #allocation2 [shape = 'f32[4,18,18]{2,1,0:T(8,128)}', space=vmem, size = 0xc000, scoped, tag = 'scratch operand']
  #allocation3 [shape = 'f32[36,256]{1,0:T(8,128)}', space=vmem, size = 0xa000, scoped, tag = 'scratch operand']
  #allocation4 [shape = 'f32[8,18,18]{2,1,0:T(8,128)}', space=vmem, size = 0x18000, scoped, tag = 'scratch operand']
  #allocation5 [shape = 'f32[72,256]{1,0:T(8,128)}', space=vmem, size = 0x12000, scoped, tag = 'scratch operand']
  %s0 = inlined_call_operand.vmem [shape: f32[2,4,256], index: 0, kind: input, shape index: {}]
  %s1 = inlined_call_operand.hbm [shape: f32[8,36], index: 1, kind: input, shape index: {}]
  %s2 = inlined_call_operand.vmem [shape: f32[8,1], index: 2, kind: input, shape index: {}]
  %s3 = inlined_call_operand.hbm [shape: f32[8,72], index: 3, kind: input, shape index: {}]
  %s4 = inlined_call_operand.vmem [shape: f32[8,1], index: 4, kind: input, shape index: {}]
  %s5 = inlined_call_operand.hbm [shape: f32[2,8,256], index: 5, kind: output, shape index: {}]
  %s6 = sld [smem:[#allocation0]]
  $region61: #{tpu_custom_call.1} parent=0
    _
  %s8 = ssub.s32 1, %s6
  %s9 = scalar_select 0, %s8, %s6
  $region1: #{tpu_custom_call.1} parent=0
    #allocation6 [shape = 'u8[4096]{0}', space=vmem, size = 0x1000, scoped, tag = 'input window, operand 1, single buffered']
    #allocation7 [shape = 's32[2]{0}', space=sflag, size = 0x8, scoped, tag = 'scoped memory for tpu_custom_call.1']
    #allocation8 [shape = 's32[2]{0}', space=sflag, size = 0x8, scoped, tag = 'scoped memory for tpu_custom_call.1']
    #allocation9 [shape = 'u8[4096]{0}', space=vmem, size = 0x1000, scoped, tag = 'input window, operand 3, single buffered']
    #allocation10 [shape = 's32[1]{0}', space=sflag, size = 0x4, scoped, tag = 'scoped memory for tpu_custom_call.1']
    #allocation11 [shape = 'u8[16384]{0}', space=vmem, size = 0x4000, scoped, tag = 'output window, operand 0']
    %10 = vsyncpa [#allocation7], 0
    %11 = vsyncpa [#allocation10], 0
    %12 = vsyncpa [#allocation8], 0
    %s13 = scalar_lea.sflag [#allocation8], 1
    %14 = vsyncpa %s13, 0
    loop: start=0, step=1, limit=4
    $region2: #{tpu_custom_call.1} parent=1 // loop_pre_header
      _
    $region3: #{tpu_custom_call.1} parent=1 // loop_header
      %s16 = sphi 0, %s20
      %p17 = scmp.ge.s32.totalorder %s16, 4
      %s26 = sphi 0, %s28
      %s29 = sphi 0, %s26
      %s30 = sphi 0, %s29
      %s46 = sphi 0, %s30
      %s50 = sphi 0, %s50
      %s52 = sphi 0, %s50
      %s53 = sphi 0, %s52
      %s67 = sphi 0, %s53
      %s71 = sphi 0, %s71
      %s73 = sphi 0, %s71
      %s74 = sphi 0, %s73
      %s88 = sphi 0, %s74
      %s92 = sphi 0, %s92
      %s94 = sphi 0, %s92
      %s95 = sphi 0, %s94
      %s109 = sphi 0, %s95
      %s113 = sphi 0, %s113
      %s115 = sphi 0, %s113
      %s116 = sphi 0, %s115
      %s130 = sphi 0, %s116
      %s136 = sphi 0, %s138
      %s139 = sphi 0, %s136
      %s140 = sphi 0, %s139
      %s156 = sphi 0, %s140
    $region4: #{tpu_custom_call.1} parent=1 // loop_header_branch
      %19 = sbr.rel (%p17) target = $region8
    $region5: #{tpu_custom_call.1} parent=1 // loop_body
      %s21 = ssub.s32 %s16, 1
      %s22 = ssub.s32 %s16, 2
      %s23 = sadd.s32 %s16, 1
      %s24 = ssub.s32 %s16, %s23
      %p25 = scmp.eq.s32.totalorder %s24, 0
      %s27 = sadd.s32 %s26, 1
      %s28 = scalar_select %p25, %s26, %s27
      %p31 = pneg %p25
      %p32 = scmp.eq.s32.totalorder %s16, 1
      %p33 = por %p31, %p32
      %p34 = scmp.ne.s32.totalorder %s26, %s29
      %p35 = scmp.eq.s32.totalorder %s16, 0
      %p36 = por %p34, %p35
      %p37 = scmp.ne.s32.totalorder %s26, %s29
      %p38 = scmp.eq.s32.totalorder %s21, 1
      %p39 = por %p37, %p38
      %p40 = scmp.ne.s32.totalorder %s29, %s30
      %p41 = scmp.eq.s32.totalorder %s21, 0
      %p42 = por %p40, %p41
      %p43 = scmp.ne.s32.totalorder %s29, %s30
      %p44 = scmp.eq.s32.totalorder %s22, 1
      %p45 = por %p43, %p44
      %p47 = scmp.ne.s32.totalorder %s30, %s46
      %p48 = scmp.eq.s32.totalorder %s22, 0
      %p49 = por %p47, %p48
      %s51 = sadd.s32 %s50, 1
      %p54 = scmp.eq.s32.totalorder %s16, 1
      %p55 = scmp.ne.s32.totalorder %s50, %s52
      %p56 = scmp.eq.s32.totalorder %s16, 0
      %p57 = por %p55, %p56
      %p58 = scmp.ne.s32.totalorder %s50, %s52
      %p59 = scmp.eq.s32.totalorder %s21, 1
      %p60 = por %p58, %p59
      %p61 = scmp.ne.s32.totalorder %s52, %s53
      %p62 = scmp.eq.s32.totalorder %s21, 0
      %p63 = por %p61, %p62
      %p64 = scmp.ne.s32.totalorder %s52, %s53
      %p65 = scmp.eq.s32.totalorder %s22, 1
      %p66 = por %p64, %p65
      %p68 = scmp.ne.s32.totalorder %s53, %s67
      %p69 = scmp.eq.s32.totalorder %s22, 0
      %p70 = por %p68, %p69
      %s72 = sadd.s32 %s71, 1
      %p75 = scmp.eq.s32.totalorder %s16, 1
      %p76 = scmp.ne.s32.totalorder %s71, %s73
      %p77 = scmp.eq.s32.totalorder %s16, 0
      %p78 = por %p76, %p77
      %p79 = scmp.ne.s32.totalorder %s71, %s73
      %p80 = scmp.eq.s32.totalorder %s21, 1
      %p81 = por %p79, %p80
      %p82 = scmp.ne.s32.totalorder %s73, %s74
      %p83 = scmp.eq.s32.totalorder %s21, 0
      %p84 = por %p82, %p83
      %p85 = scmp.ne.s32.totalorder %s73, %s74
      %p86 = scmp.eq.s32.totalorder %s22, 1
      %p87 = por %p85, %p86
      %p89 = scmp.ne.s32.totalorder %s74, %s88
      %p90 = scmp.eq.s32.totalorder %s22, 0
      %p91 = por %p89, %p90
      %s93 = sadd.s32 %s92, 1
      %p96 = scmp.eq.s32.totalorder %s16, 1
      %p97 = scmp.ne.s32.totalorder %s92, %s94
      %p98 = scmp.eq.s32.totalorder %s16, 0
      %p99 = por %p97, %p98
      %p100 = scmp.ne.s32.totalorder %s92, %s94
      %p101 = scmp.eq.s32.totalorder %s21, 1
      %p102 = por %p100, %p101
      %p103 = scmp.ne.s32.totalorder %s94, %s95
      %p104 = scmp.eq.s32.totalorder %s21, 0
      %p105 = por %p103, %p104
      %p106 = scmp.ne.s32.totalorder %s94, %s95
      %p107 = scmp.eq.s32.totalorder %s22, 1
      %p108 = por %p106, %p107
      %p110 = scmp.ne.s32.totalorder %s95, %s109
      %p111 = scmp.eq.s32.totalorder %s22, 0
      %p112 = por %p110, %p111
      %s114 = sadd.s32 %s113, 1
      %p117 = scmp.eq.s32.totalorder %s16, 1
      %p118 = scmp.ne.s32.totalorder %s113, %s115
      %p119 = scmp.eq.s32.totalorder %s16, 0
      %p120 = por %p118, %p119
      %p121 = scmp.ne.s32.totalorder %s113, %s115
      %p122 = scmp.eq.s32.totalorder %s21, 1
      %p123 = por %p121, %p122
      %p124 = scmp.ne.s32.totalorder %s115, %s116
      %p125 = scmp.eq.s32.totalorder %s21, 0
      %p126 = por %p124, %p125
      %p127 = scmp.ne.s32.totalorder %s115, %s116
      %p128 = scmp.eq.s32.totalorder %s22, 1
      %p129 = por %p127, %p128
      %p131 = scmp.ne.s32.totalorder %s116, %s130
      %p132 = scmp.eq.s32.totalorder %s22, 0
      %p133 = por %p131, %p132
      %s134 = ssub.s32 %s16, %s23
      %p135 = scmp.eq.s32.totalorder %s134, 0
      %s137 = sadd.s32 %s136, 1
      %s138 = scalar_select %p135, %s136, %s137
      %p141 = pneg %p135
      %p142 = scmp.eq.s32.totalorder %s16, 1
      %p143 = por %p141, %p142
      %p144 = scmp.ne.s32.totalorder %s136, %s139
      %p145 = scmp.eq.s32.totalorder %s16, 0
      %p146 = por %p144, %p145
      %p147 = scmp.ne.s32.totalorder %s136, %s139
      %p148 = scmp.eq.s32.totalorder %s21, 1
      %p149 = por %p147, %p148
      %p150 = scmp.ne.s32.totalorder %s139, %s140
      %p151 = scmp.eq.s32.totalorder %s21, 0
      %p152 = por %p150, %p151
      %p153 = scmp.ne.s32.totalorder %s139, %s140
      %p154 = scmp.eq.s32.totalorder %s22, 1
      %p155 = por %p153, %p154
      %p157 = scmp.ne.s32.totalorder %s140, %s156
      %p158 = scmp.eq.s32.totalorder %s22, 0
      %p159 = por %p157, %p158
      %p160 = scmp.le.s32.totalorder 1, %s16
      %p161 = scmp.lt.s32.totalorder %s16, 3
      %p162 = pnand %p160, %p161
      %p163 = pneg %p162
      // Predicated region
      $region9: #{tpu_custom_call.1} parent=5 // pred_check
        _
      $region10: #{tpu_custom_call.1} parent=5 // pred_check_branch
        %165 = sbr.rel (%p162) target = $region12
      $region11: #{tpu_custom_call.1} parent=5 // pred_region
        %s166 = ssub.s32 %s16, 1
        // Predicated region
        $region13: #{tpu_custom_call.1} parent=11 // pred_check
          %p167 = pneg %p63
        $region14: #{tpu_custom_call.1} parent=11 // pred_check_branch
          %169 = sbr.rel (%p167) target = $region16
        $region15: #{tpu_custom_call.1} parent=11 // pred_region
          %s171 = ssub.s32 128, 128
          %172 = vsyncadd [#allocation7], %s171
          %s174 = sshll.u32 [#allocation6], 4
          %s175 = int_to_ptr.vmem [resolvable:$true] %s174
          %177 = dma.hbm_to_vmem [thread:$0]  %s1, 128, %s175, [#allocation7]
        $region16: #{tpu_custom_call.1} parent=11 // pred_fallthru
          _
        // Predicated region
        $region17: #{tpu_custom_call.1} parent=11 // pred_check
          %p178 = pneg %p84
        $region18: #{tpu_custom_call.1} parent=11 // pred_check_branch
          %180 = sbr.rel (%p178) target = $region20
        $region19: #{tpu_custom_call.1} parent=11 // pred_region
          _
        $region20: #{tpu_custom_call.1} parent=11 // pred_fallthru
          _
        // Predicated region
        $region21: #{tpu_custom_call.1} parent=11 // pred_check
          %p181 = pneg %p105
        $region22: #{tpu_custom_call.1} parent=11 // pred_check_branch
          %183 = sbr.rel (%p181) target = $region24
        $region23: #{tpu_custom_call.1} parent=11 // pred_region
          %s185 = ssub.s32 128, 128
          %186 = vsyncadd [#allocation10], %s185
          %s188 = sshll.u32 [#allocation9], 4
          %s189 = int_to_ptr.vmem [resolvable:$true] %s188
          %191 = dma.hbm_to_vmem [thread:$0]  %s3, 128, %s189, [#allocation10]
        $region24: #{tpu_custom_call.1} parent=11 // pred_fallthru
          _
        // Predicated region
        $region25: #{tpu_custom_call.1} parent=11 // pred_check
          %p192 = pneg %p126
        $region26: #{tpu_custom_call.1} parent=11 // pred_check_branch
          %194 = sbr.rel (%p192) target = $region28
        $region27: #{tpu_custom_call.1} parent=11 // pred_region
          _
        $region28: #{tpu_custom_call.1} parent=11 // pred_fallthru
          _
      $region12: #{tpu_custom_call.1} parent=5 // pred_fallthru
        _
      %p195 = scmp.lt.s32.totalorder %s16, 2
      // Predicated region
      $region29: #{tpu_custom_call.1} parent=5 // pred_check
        %p196 = pneg %p195
      $region30: #{tpu_custom_call.1} parent=5 // pred_check_branch
        %198 = sbr.rel (%p196) target = $region32
      $region31: #{tpu_custom_call.1} parent=5 // pred_region
        // Predicated region
        $region33: #{tpu_custom_call.1} parent=31 // pred_check
          %p199 = pneg %p36
        $region34: #{tpu_custom_call.1} parent=31 // pred_check_branch
          %201 = sbr.rel (%p199) target = $region36
        $region35: #{tpu_custom_call.1} parent=31 // pred_region
          %p202 = scmp.lt.s32.totalorder %s16, 1
          %s203 = scalar_select %p202, %s16, 1
          %s204 = smul.addr %s203, 2
          %s205 = smul.addr %s204, 4
          %s206 = scalar_lea.vmem %s0, %s205
        $region36: #{tpu_custom_call.1} parent=31 // pred_fallthru
          _
      $region32: #{tpu_custom_call.1} parent=5 // pred_fallthru
        _
      %p207 = scmp.le.s32.totalorder 1, %s16
      %p208 = scmp.lt.s32.totalorder %s16, 3
      %p209 = pnand %p207, %p208
      %p210 = pneg %p209
      // Predicated region
      $region37: #{tpu_custom_call.1} parent=5 // pred_check
        _
      $region38: #{tpu_custom_call.1} parent=5 // pred_check_branch
        %212 = sbr.rel (%p209) target = $region40
      $region39: #{tpu_custom_call.1} parent=5 // pred_region
        %s213 = ssub.s32 %s16, 1
        // Predicated region
        $region41: #{tpu_custom_call.1} parent=39 // pred_check
          %p214 = pneg %p63
        $region42: #{tpu_custom_call.1} parent=39 // pred_check_branch
          %216 = sbr.rel (%p214) target = $region44
        $region43: #{tpu_custom_call.1} parent=39 // pred_region
          %217 = dma.done [#allocation7], 128
        $region44: #{tpu_custom_call.1} parent=39 // pred_fallthru
          _
        // Predicated region
        $region45: #{tpu_custom_call.1} parent=39 // pred_check
          %p218 = pneg %p105
        $region46: #{tpu_custom_call.1} parent=39 // pred_check_branch
          %220 = sbr.rel (%p218) target = $region48
        $region47: #{tpu_custom_call.1} parent=39 // pred_region
          %221 = dma.done [#allocation10], 128
        $region48: #{tpu_custom_call.1} parent=39 // pred_fallthru
          _
        %p222 = scmp.lt.s32.totalorder %s21, 1
        %s223 = scalar_select %p222, %s21, 1
        %s224 = smul.addr %s223, 2
        %s225 = smul.addr %s224, 4
        %s226 = scalar_lea.vmem %s0, %s225
        %p227 = pneg %p42
        %p228 = pneg %p39
        %p229 = pneg %p63
        %p230 = pneg %p60
        %p231 = pneg %p84
        %p232 = pneg %p81
        %p233 = pneg %p105
        %p234 = pneg %p102
        %p235 = pneg %p126
        %p236 = pneg %p123
        %p237 = pneg %p152
        %p238 = pneg %p149
        %s239 = sand.u32 %s139, 1
        %s240 = scalar_lea.sflag [#allocation8], %s239
        %s241 = sand.u32 %s139, 1
        %s242 = smul.addr %s241, 16
        %s243 = scalar_lea.vmem [#allocation11], %s242
        %p244 = scmp.lt.s32.totalorder %s21, 1
        %s245 = scalar_select %p244, %s21, 1
        %s246 = smul.addr %s245, 2
        %s247 = smul.addr %s246, 4
        %s248 = scalar_lea.vmem %s0, %s247
        %vm249 = vcmask 146432
        %250 = vst.msk [vmem:[#allocation2] sm:$0xff] %vm249, 0.0
        %251 = vst.msk [vmem:[#allocation2 + $0x8] sm:$0xff] %vm249, 0.0
        %vm252 = vcmask 140288
        %253 = vst.msk [vmem:[#allocation2 + $0x10] sm:$0x3] %vm252, 0.0
        %254 = vst.msk [vmem:[#allocation2 + $0x18] sm:$0xff] %vm249, 0.0
        %255 = vst.msk [vmem:[#allocation2 + $0x20] sm:$0xff] %vm249, 0.0
        %256 = vst.msk [vmem:[#allocation2 + $0x28] sm:$0x3] %vm252, 0.0
        %257 = vst.msk [vmem:[#allocation2 + $0x30] sm:$0xff] %vm249, 0.0
        %258 = vst.msk [vmem:[#allocation2 + $0x38] sm:$0xff] %vm249, 0.0
        %259 = vst.msk [vmem:[#allocation2 + $0x40] sm:$0x3] %vm252, 0.0
        %260 = vst.msk [vmem:[#allocation2 + $0x48] sm:$0xff] %vm249, 0.0
        %261 = vst.msk [vmem:[#allocation2 + $0x50] sm:$0xff] %vm249, 0.0
        %262 = vst.msk [vmem:[#allocation2 + $0x58] sm:$0x3] %vm252, 0.0
        %263 = vst.msk [vmem:[#allocation4] sm:$0xff] %vm249, 0.0
        %264 = vst.msk [vmem:[#allocation4 + $0x8] sm:$0xff] %vm249, 0.0
        %265 = vst.msk [vmem:[#allocation4 + $0x10] sm:$0x3] %vm252, 0.0
        %266 = vst.msk [vmem:[#allocation4 + $0x18] sm:$0xff] %vm249, 0.0
        %267 = vst.msk [vmem:[#allocation4 + $0x20] sm:$0xff] %vm249, 0.0
        %268 = vst.msk [vmem:[#allocation4 + $0x28] sm:$0x3] %vm252, 0.0
        %269 = vst.msk [vmem:[#allocation4 + $0x30] sm:$0xff] %vm249, 0.0
        %270 = vst.msk [vmem:[#allocation4 + $0x38] sm:$0xff] %vm249, 0.0
        %271 = vst.msk [vmem:[#allocation4 + $0x40] sm:$0x3] %vm252, 0.0
        %272 = vst.msk [vmem:[#allocation4 + $0x48] sm:$0xff] %vm249, 0.0
        %273 = vst.msk [vmem:[#allocation4 + $0x50] sm:$0xff] %vm249, 0.0
        %274 = vst.msk [vmem:[#allocation4 + $0x58] sm:$0x3] %vm252, 0.0
        %275 = vst.msk [vmem:[#allocation4 + $0x60] sm:$0xff] %vm249, 0.0
        %276 = vst.msk [vmem:[#allocation4 + $0x68] sm:$0xff] %vm249, 0.0
        %277 = vst.msk [vmem:[#allocation4 + $0x70] sm:$0x3] %vm252, 0.0
        %278 = vst.msk [vmem:[#allocation4 + $0x78] sm:$0xff] %vm249, 0.0
        %279 = vst.msk [vmem:[#allocation4 + $0x80] sm:$0xff] %vm249, 0.0
        %280 = vst.msk [vmem:[#allocation4 + $0x88] sm:$0x3] %vm252, 0.0
        %281 = vst.msk [vmem:[#allocation4 + $0x90] sm:$0xff] %vm249, 0.0
        %282 = vst.msk [vmem:[#allocation4 + $0x98] sm:$0xff] %vm249, 0.0
        %283 = vst.msk [vmem:[#allocation4 + $0xa0] sm:$0x3] %vm252, 0.0
        %284 = vst.msk [vmem:[#allocation4 + $0xa8] sm:$0xff] %vm249, 0.0
        %285 = vst.msk [vmem:[#allocation4 + $0xb0] sm:$0xff] %vm249, 0.0
        %286 = vst.msk [vmem:[#allocation4 + $0xb8] sm:$0x3] %vm252, 0.0
        %v287 = vld [vmem:[%s248] sm:$0xff]
        %v289 = vrot.slane %v287, 4
        %291 = vrot.lane.b32.xlu0 %v287, 112
        %v292 = vpop.permute.xlu0 %291
        %v293 = vrot.slane %v292, 4
        %295 = vrot.lane.b32.xlu0 %v287, 96
        %v296 = vpop.permute.xlu0 %295
        %v297 = vrot.slane %v296, 4
        %299 = vrot.lane.b32.xlu0 %v287, 80
        %v300 = vpop.permute.xlu0 %299
        %v301 = vrot.slane %v300, 4
        %303 = vrot.lane.b32.xlu0 %v287, 64
        %v304 = vpop.permute.xlu0 %303
        %v305 = vrot.slane %v304, 4
        %307 = vrot.lane.b32.xlu0 %v287, 48
        %v308 = vpop.permute.xlu0 %307
        %v309 = vrot.slane %v308, 4
        %311 = vrot.lane.b32.xlu0 %v287, 32
        %v312 = vpop.permute.xlu0 %311
        %v313 = vrot.slane %v312, 4
        %315 = vrot.lane.b32.xlu0 %v287, 16
        %v316 = vpop.permute.xlu0 %315
        %v317 = vrot.slane %v316, 4
        %v326 = vcombine.low %v287, %v296
        %v328 = vunpack.c.l.s4 1983009808
        %v329 = vunpack.c.0.s8 %v328
        %v330 = vlaneseq
        %v331 = vshrl.u32 %v330, 7
        %v332 = vsub.s32 %v329, %v331
        %v333 = vrot.slane %v326, %v332
        %v334 = vcombine.low %v292, %v300
        %v336 = vunpack.c.l.s4 1983009808
        %v337 = vunpack.c.0.s8 %v336
        %v338 = vlaneseq
        %v339 = vshrl.u32 %v338, 7
        %v340 = vsub.s32 %v337, %v339
        %v341 = vrot.slane %v334, %v340
        %v342 = vcombine.low %v333, %v341
        %v343 = vcombine.high %v333, %v341
        %v345 = vunpack.c.l.s4 1934713408
        %v346 = vunpack.c.0.s8 %v345
        %v347 = vlaneseq
        %v348 = vshrl.u32 %v347, 7
        %v349 = vsub.s32 %v346, %v348
        %v350 = vrot.slane %v342, %v349
        %v352 = vunpack.c.l.s4 1934713408
        %v353 = vunpack.c.0.s8 %v352
        %v354 = vlaneseq
        %v355 = vshrl.u32 %v354, 7
        %v356 = vsub.s32 %v353, %v355
        %v357 = vrot.slane %v343, %v356
        %v358 = vcombine.high %v350, 0.0
        %v359 = vcombine.high %v357, 0.0
        %v360 = vcombine.low %v304, %v312
        %v362 = vunpack.c.l.s4 1983009808
        %v363 = vunpack.c.0.s8 %v362
        %v364 = vlaneseq
        %v365 = vshrl.u32 %v364, 7
        %v366 = vsub.s32 %v363, %v365
        %v367 = vrot.slane %v360, %v366
        %v368 = vcombine.low %v308, %v316
        %v370 = vunpack.c.l.s4 1983009808
        %v371 = vunpack.c.0.s8 %v370
        %v372 = vlaneseq
        %v373 = vshrl.u32 %v372, 7
        %v374 = vsub.s32 %v371, %v373
        %v375 = vrot.slane %v368, %v374
        %v376 = vcombine.low %v367, %v375
        %v377 = vcombine.high %v367, %v375
        %v379 = vunpack.c.l.s4 1934713408
        %v380 = vunpack.c.0.s8 %v379
        %v381 = vlaneseq
        %v382 = vshrl.u32 %v381, 7
        %v383 = vsub.s32 %v380, %v382
        %v384 = vrot.slane %v376, %v383
        %v386 = vunpack.c.l.s4 1934713408
        %v387 = vunpack.c.0.s8 %v386
        %v388 = vlaneseq
        %v389 = vshrl.u32 %v388, 7
        %v390 = vsub.s32 %v387, %v389
        %v391 = vrot.slane %v377, %v390
        %v392 = vcombine.high %v384, 0.0
        %v393 = vcombine.high %v391, 0.0
        %v394 = vcombine.low %v289, %v297
        %v396 = vunpack.c.l.s4 1983009808
        %v397 = vunpack.c.0.s8 %v396
        %v398 = vlaneseq
        %v399 = vshrl.u32 %v398, 7
        %v400 = vsub.s32 %v397, %v399
        %v401 = vrot.slane %v394, %v400
        %v402 = vcombine.low %v293, %v301
        %v404 = vunpack.c.l.s4 1983009808
        %v405 = vunpack.c.0.s8 %v404
        %v406 = vlaneseq
        %v407 = vshrl.u32 %v406, 7
        %v408 = vsub.s32 %v405, %v407
        %v409 = vrot.slane %v402, %v408
        %v410 = vcombine.low %v401, %v409
        %v411 = vcombine.high %v401, %v409
        %v413 = vunpack.c.l.s4 1934713408
        %v414 = vunpack.c.0.s8 %v413
        %v415 = vlaneseq
        %v416 = vshrl.u32 %v415, 7
        %v417 = vsub.s32 %v414, %v416
        %v418 = vrot.slane %v410, %v417
        %v420 = vunpack.c.l.s4 1934713408
        %v421 = vunpack.c.0.s8 %v420
        %v422 = vlaneseq
        %v423 = vshrl.u32 %v422, 7
        %v424 = vsub.s32 %v421, %v423
        %v425 = vrot.slane %v411, %v424
        %v426 = vcombine.high %v418, 0.0
        %v427 = vcombine.high %v425, 0.0
        %v428 = vcombine.low %v305, %v313
        %v430 = vunpack.c.l.s4 1983009808
        %v431 = vunpack.c.0.s8 %v430
        %v432 = vlaneseq
        %v433 = vshrl.u32 %v432, 7
        %v434 = vsub.s32 %v431, %v433
        %v435 = vrot.slane %v428, %v434
        %v436 = vcombine.low %v309, %v317
        %v438 = vunpack.c.l.s4 1983009808
        %v439 = vunpack.c.0.s8 %v438
        %v440 = vlaneseq
        %v441 = vshrl.u32 %v440, 7
        %v442 = vsub.s32 %v439, %v441
        %v443 = vrot.slane %v436, %v442
        %v444 = vcombine.low %v435, %v443
        %v445 = vcombine.high %v435, %v443
        %v447 = vunpack.c.l.s4 1934713408
        %v448 = vunpack.c.0.s8 %v447
        %v449 = vlaneseq
        %v450 = vshrl.u32 %v449, 7
        %v451 = vsub.s32 %v448, %v450
        %v452 = vrot.slane %v444, %v451
        %v454 = vunpack.c.l.s4 1934713408
        %v455 = vunpack.c.0.s8 %v454
        %v456 = vlaneseq
        %v457 = vshrl.u32 %v456, 7
        %v458 = vsub.s32 %v455, %v457
        %v459 = vrot.slane %v445, %v458
        %v460 = vcombine.high %v452, 0.0
        %v461 = vcombine.high %v459, 0.0
        %v478 = vcombine.low %v350, %v384
        %v479 = vcombine.low %v418, %v452
        %v480 = vcombine.low %v358, %v392
        %v481 = vcombine.low %v426, %v460
        %v482 = vcombine.low %v357, %v391
        %v483 = vcombine.low %v425, %v459
        %v484 = vcombine.low %v359, %v393
        %v485 = vcombine.low %v427, %v461
        %486 = vrot.lane.b32.xlu0 %v478, 1
        %v487 = vpop.permute.xlu0 %486
        %488 = vrot.lane.b32.xlu0 %v479, 1
        %v489 = vpop.permute.xlu0 %488
        %490 = vrot.lane.b32.xlu0 %v480, 1
        %v491 = vpop.permute.xlu0 %490
        %492 = vrot.lane.b32.xlu0 %v481, 1
        %v493 = vpop.permute.xlu0 %492
        %494 = vrot.lane.b32.xlu0 %v482, 1
        %v495 = vpop.permute.xlu0 %494
        %496 = vrot.lane.b32.xlu0 %v483, 1
        %v497 = vpop.permute.xlu0 %496
        %498 = vrot.lane.b32.xlu0 %v484, 1
        %v499 = vpop.permute.xlu0 %498
        %500 = vrot.lane.b32.xlu0 %v485, 1
        %v501 = vpop.permute.xlu0 %500
        %vm510 = vcmask 138248
        %511 = vst.msk [vmem:[#allocation2 + $0x1] sm:$0xff] %vm510, %v487
        %512 = vst.msk [vmem:[#allocation2 + $0x9] sm:$0xff] %vm510, %v489
        %513 = vst.msk [vmem:[#allocation2 + $0x19] sm:$0xff] %vm510, %v491
        %514 = vst.msk [vmem:[#allocation2 + $0x21] sm:$0xff] %vm510, %v493
        %515 = vst.msk [vmem:[#allocation2 + $0x31] sm:$0xff] %vm510, %v495
        %516 = vst.msk [vmem:[#allocation2 + $0x39] sm:$0xff] %vm510, %v497
        %517 = vst.msk [vmem:[#allocation2 + $0x49] sm:$0xff] %vm510, %v499
        %518 = vst.msk [vmem:[#allocation2 + $0x51] sm:$0xff] %vm510, %v501
        %v519 = vld [vmem:[#allocation2] sm:$0xff]
        %v520 = vld [vmem:[#allocation2 + $0x8] sm:$0xff]
        %v521 = vld [vmem:[#allocation2 + $0x10] sm:$0x3]
        %v522 = vld [vmem:[#allocation2 + $0x18] sm:$0xff]
        %v523 = vld [vmem:[#allocation2 + $0x20] sm:$0xff]
        %v524 = vld [vmem:[#allocation2 + $0x28] sm:$0x3]
        %v525 = vld [vmem:[#allocation2 + $0x30] sm:$0xff]
        %v526 = vld [vmem:[#allocation2 + $0x38] sm:$0xff]
        %v527 = vld [vmem:[#allocation2 + $0x40] sm:$0x3]
        %v528 = vld [vmem:[#allocation2 + $0x48] sm:$0xff]
        %v529 = vld [vmem:[#allocation2 + $0x50] sm:$0xff]
        %v530 = vld [vmem:[#allocation2 + $0x58] sm:$0x3]
        %v531 = vcombine.low %v519, %v525
        %v532 = vcombine.high %v519, %v525
        %v534 = vunpack.c.l.s4 1983009808
        %v535 = vunpack.c.0.s8 %v534
        %v536 = vlaneseq
        %v537 = vshrl.u32 %v536, 7
        %v538 = vsub.s32 %v535, %v537
        %v539 = vrot.slane %v531, %v538
        %v541 = vunpack.c.l.s4 1983009808
        %v542 = vunpack.c.0.s8 %v541
        %v543 = vlaneseq
        %v544 = vshrl.u32 %v543, 7
        %v545 = vsub.s32 %v542, %v544
        %v546 = vrot.slane %v532, %v545
        %v547 = vcombine.low %v522, %v528
        %v548 = vcombine.high %v522, %v528
        %v550 = vunpack.c.l.s4 1983009808
        %v551 = vunpack.c.0.s8 %v550
        %v552 = vlaneseq
        %v553 = vshrl.u32 %v552, 7
        %v554 = vsub.s32 %v551, %v553
        %v555 = vrot.slane %v547, %v554
        %v557 = vunpack.c.l.s4 1983009808
        %v558 = vunpack.c.0.s8 %v557
        %v559 = vlaneseq
        %v560 = vshrl.u32 %v559, 7
        %v561 = vsub.s32 %v558, %v560
        %v562 = vrot.slane %v548, %v561
        %v563 = vcombine.low %v539, %v555
        %v564 = vcombine.high %v539, %v555
        %v566 = vunpack.c.l.s4 1934713408
        %v567 = vunpack.c.0.s8 %v566
        %v568 = vlaneseq
        %v569 = vshrl.u32 %v568, 7
        %v570 = vsub.s32 %v567, %v569
        %v571 = vrot.slane %v563, %v570
        %v573 = vunpack.c.l.s4 1934713408
        %v574 = vunpack.c.0.s8 %v573
        %v575 = vlaneseq
        %v576 = vshrl.u32 %v575, 7
        %v577 = vsub.s32 %v574, %v576
        %v578 = vrot.slane %v564, %v577
        %v579 = vcombine.low %v546, %v562
        %v580 = vcombine.high %v546, %v562
        %v582 = vunpack.c.l.s4 1934713408
        %v583 = vunpack.c.0.s8 %v582
        %v584 = vlaneseq
        %v585 = vshrl.u32 %v584, 7
        %v586 = vsub.s32 %v583, %v585
        %v587 = vrot.slane %v579, %v586
        %v589 = vunpack.c.l.s4 1934713408
        %v590 = vunpack.c.0.s8 %v589
        %v591 = vlaneseq
        %v592 = vshrl.u32 %v591, 7
        %v593 = vsub.s32 %v590, %v592
        %v594 = vrot.slane %v580, %v593
        %v595 = vcombine.high %v571, 0.0
        %v596 = vcombine.high %v578, 0.0
        %v597 = vcombine.high %v587, 0.0
        %v598 = vcombine.high %v594, 0.0
        %v599 = vcombine.low %v520, %v526
        %v600 = vcombine.high %v520, %v526
        %v602 = vunpack.c.l.s4 1983009808
        %v603 = vunpack.c.0.s8 %v602
        %v604 = vlaneseq
        %v605 = vshrl.u32 %v604, 7
        %v606 = vsub.s32 %v603, %v605
        %v607 = vrot.slane %v599, %v606
        %v609 = vunpack.c.l.s4 1983009808
        %v610 = vunpack.c.0.s8 %v609
        %v611 = vlaneseq
        %v612 = vshrl.u32 %v611, 7
        %v613 = vsub.s32 %v610, %v612
        %v614 = vrot.slane %v600, %v613
        %v615 = vcombine.low %v523, %v529
        %v616 = vcombine.high %v523, %v529
        %v618 = vunpack.c.l.s4 1983009808
        %v619 = vunpack.c.0.s8 %v618
        %v620 = vlaneseq
        %v621 = vshrl.u32 %v620, 7
        %v622 = vsub.s32 %v619, %v621
        %v623 = vrot.slane %v615, %v622
        %v625 = vunpack.c.l.s4 1983009808
        %v626 = vunpack.c.0.s8 %v625
        %v627 = vlaneseq
        %v628 = vshrl.u32 %v627, 7
        %v629 = vsub.s32 %v626, %v628
        %v630 = vrot.slane %v616, %v629
        %v631 = vcombine.low %v607, %v623
        %v632 = vcombine.high %v607, %v623
        %v634 = vunpack.c.l.s4 1934713408
        %v635 = vunpack.c.0.s8 %v634
        %v636 = vlaneseq
        %v637 = vshrl.u32 %v636, 7
        %v638 = vsub.s32 %v635, %v637
        %v639 = vrot.slane %v631, %v638
        %v641 = vunpack.c.l.s4 1934713408
        %v642 = vunpack.c.0.s8 %v641
        %v643 = vlaneseq
        %v644 = vshrl.u32 %v643, 7
        %v645 = vsub.s32 %v642, %v644
        %v646 = vrot.slane %v632, %v645
        %v647 = vcombine.low %v614, %v630
        %v648 = vcombine.high %v614, %v630
        %v650 = vunpack.c.l.s4 1934713408
        %v651 = vunpack.c.0.s8 %v650
        %v652 = vlaneseq
        %v653 = vshrl.u32 %v652, 7
        %v654 = vsub.s32 %v651, %v653
        %v655 = vrot.slane %v647, %v654
        %v657 = vunpack.c.l.s4 1934713408
        %v658 = vunpack.c.0.s8 %v657
        %v659 = vlaneseq
        %v660 = vshrl.u32 %v659, 7
        %v661 = vsub.s32 %v658, %v660
        %v662 = vrot.slane %v648, %v661
        %v663 = vcombine.high %v639, 0.0
        %v664 = vcombine.high %v646, 0.0
        %v665 = vcombine.high %v655, 0.0
        %v666 = vcombine.high %v662, 0.0
        %668 = vrot.lane.b32.xlu0 %v595, 16
        %v669 = vpop.permute.xlu0 %668
        %672 = vrot.lane.b32.xlu0 %v578, 32
        %v673 = vpop.permute.xlu0 %672
        %676 = vrot.lane.b32.xlu0 %v596, 48
        %v677 = vpop.permute.xlu0 %676
        %680 = vrot.lane.b32.xlu0 %v587, 64
        %v681 = vpop.permute.xlu0 %680
        %684 = vrot.lane.b32.xlu0 %v597, 80
        %v685 = vpop.permute.xlu0 %684
        %688 = vrot.lane.b32.xlu0 %v594, 96
        %v689 = vpop.permute.xlu0 %688
        %692 = vrot.lane.b32.xlu0 %v598, 112
        %v693 = vpop.permute.xlu0 %692
        %696 = vrot.lane.b32.xlu0 %v663, 16
        %v697 = vpop.permute.xlu0 %696
        %700 = vrot.lane.b32.xlu0 %v646, 32
        %v701 = vpop.permute.xlu0 %700
        %704 = vrot.lane.b32.xlu0 %v664, 48
        %v705 = vpop.permute.xlu0 %704
        %708 = vrot.lane.b32.xlu0 %v655, 64
        %v709 = vpop.permute.xlu0 %708
        %712 = vrot.lane.b32.xlu0 %v665, 80
        %v713 = vpop.permute.xlu0 %712
        %716 = vrot.lane.b32.xlu0 %v662, 96
        %v717 = vpop.permute.xlu0 %716
        %720 = vrot.lane.b32.xlu0 %v666, 112
        %v721 = vpop.permute.xlu0 %720
        %vm723 = vcmask 130048
        %v724 = vsel %vm723, %v571, %v669
        %vm725 = vcmask 261120
        %v726 = vsel %vm725, %v724, %v673
        %vm727 = vcmask 392192
        %v728 = vsel %vm727, %v726, %v677
        %vm729 = vcmask 523264
        %v730 = vsel %vm729, %v728, %v681
        %vm731 = vcmask 654336
        %v732 = vsel %vm731, %v730, %v685
        %vm733 = vcmask 785408
        %v734 = vsel %vm733, %v732, %v689
        %vm735 = vcmask 916480
        %v736 = vsel %vm735, %v734, %v693
        %v737 = vsel %vm723, %v639, %v697
        %v738 = vsel %vm725, %v737, %v701
        %v739 = vsel %vm727, %v738, %v705
        %v740 = vsel %vm729, %v739, %v709
        %v741 = vsel %vm731, %v740, %v713
        %v742 = vsel %vm733, %v741, %v717
        %v743 = vsel %vm735, %v742, %v721
        %744 = vst [vmem:[#allocation3] sm:$0xf] %v736
        %745 = vst [vmem:[#allocation3 + $0x8] sm:$0xf] %v743
        %754 = vrot.lane.b32.xlu0 %v519, 127
        %v755 = vpop.permute.xlu0 %754
        %756 = vrot.lane.b32.xlu0 %v520, 127
        %v757 = vpop.permute.xlu0 %756
        %758 = vrot.lane.b32.xlu0 %v522, 127
        %v759 = vpop.permute.xlu0 %758
        %760 = vrot.lane.b32.xlu0 %v523, 127
        %v761 = vpop.permute.xlu0 %760
        %762 = vrot.lane.b32.xlu0 %v525, 127
        %v763 = vpop.permute.xlu0 %762
        %764 = vrot.lane.b32.xlu0 %v526, 127
        %v765 = vpop.permute.xlu0 %764
        %766 = vrot.lane.b32.xlu0 %v528, 127
        %v767 = vpop.permute.xlu0 %766
        %768 = vrot.lane.b32.xlu0 %v529, 127
        %v769 = vpop.permute.xlu0 %768
        %v778 = vcombine.low %v755, %v763
        %v779 = vcombine.high %v755, %v763
        %v781 = vunpack.c.l.s4 1983009808
        %v782 = vunpack.c.0.s8 %v781
        %v783 = vlaneseq
        %v784 = vshrl.u32 %v783, 7
        %v785 = vsub.s32 %v782, %v784
        %v786 = vrot.slane %v778, %v785
        %v788 = vunpack.c.l.s4 1983009808
        %v789 = vunpack.c.0.s8 %v788
        %v790 = vlaneseq
        %v791 = vshrl.u32 %v790, 7
        %v792 = vsub.s32 %v789, %v791
        %v793 = vrot.slane %v779, %v792
        %v794 = vcombine.low %v759, %v767
        %v795 = vcombine.high %v759, %v767
        %v797 = vunpack.c.l.s4 1983009808
        %v798 = vunpack.c.0.s8 %v797
        %v799 = vlaneseq
        %v800 = vshrl.u32 %v799, 7
        %v801 = vsub.s32 %v798, %v800
        %v802 = vrot.slane %v794, %v801
        %v804 = vunpack.c.l.s4 1983009808
        %v805 = vunpack.c.0.s8 %v804
        %v806 = vlaneseq
        %v807 = vshrl.u32 %v806, 7
        %v808 = vsub.s32 %v805, %v807
        %v809 = vrot.slane %v795, %v808
        %v810 = vcombine.low %v786, %v802
        %v811 = vcombine.high %v786, %v802
        %v813 = vunpack.c.l.s4 1934713408
        %v814 = vunpack.c.0.s8 %v813
        %v815 = vlaneseq
        %v816 = vshrl.u32 %v815, 7
        %v817 = vsub.s32 %v814, %v816
        %v818 = vrot.slane %v810, %v817
        %v820 = vunpack.c.l.s4 1934713408
        %v821 = vunpack.c.0.s8 %v820
        %v822 = vlaneseq
        %v823 = vshrl.u32 %v822, 7
        %v824 = vsub.s32 %v821, %v823
        %v825 = vrot.slane %v811, %v824
        %v826 = vcombine.low %v793, %v809
        %v827 = vcombine.high %v793, %v809
        %v829 = vunpack.c.l.s4 1934713408
        %v830 = vunpack.c.0.s8 %v829
        %v831 = vlaneseq
        %v832 = vshrl.u32 %v831, 7
        %v833 = vsub.s32 %v830, %v832
        %v834 = vrot.slane %v826, %v833
        %v836 = vunpack.c.l.s4 1934713408
        %v837 = vunpack.c.0.s8 %v836
        %v838 = vlaneseq
        %v839 = vshrl.u32 %v838, 7
        %v840 = vsub.s32 %v837, %v839
        %v841 = vrot.slane %v827, %v840
        %v842 = vcombine.high %v818, 0.0
        %v843 = vcombine.high %v825, 0.0
        %v844 = vcombine.high %v834, 0.0
        %v845 = vcombine.high %v841, 0.0
        %v846 = vcombine.low %v757, %v765
        %v847 = vcombine.high %v757, %v765
        %v849 = vunpack.c.l.s4 1983009808
        %v850 = vunpack.c.0.s8 %v849
        %v851 = vlaneseq
        %v852 = vshrl.u32 %v851, 7
        %v853 = vsub.s32 %v850, %v852
        %v854 = vrot.slane %v846, %v853
        %v856 = vunpack.c.l.s4 1983009808
        %v857 = vunpack.c.0.s8 %v856
        %v858 = vlaneseq
        %v859 = vshrl.u32 %v858, 7
        %v860 = vsub.s32 %v857, %v859
        %v861 = vrot.slane %v847, %v860
        %v862 = vcombine.low %v761, %v769
        %v863 = vcombine.high %v761, %v769
        %v865 = vunpack.c.l.s4 1983009808
        %v866 = vunpack.c.0.s8 %v865
        %v867 = vlaneseq
        %v868 = vshrl.u32 %v867, 7
        %v869 = vsub.s32 %v866, %v868
        %v870 = vrot.slane %v862, %v869
        %v872 = vunpack.c.l.s4 1983009808
        %v873 = vunpack.c.0.s8 %v872
        %v874 = vlaneseq
        %v875 = vshrl.u32 %v874, 7
        %v876 = vsub.s32 %v873, %v875
        %v877 = vrot.slane %v863, %v876
        %v878 = vcombine.low %v854, %v870
        %v879 = vcombine.high %v854, %v870
        %v881 = vunpack.c.l.s4 1934713408
        %v882 = vunpack.c.0.s8 %v881
        %v883 = vlaneseq
        %v884 = vshrl.u32 %v883, 7
        %v885 = vsub.s32 %v882, %v884
        %v886 = vrot.slane %v878, %v885
        %v888 = vunpack.c.l.s4 1934713408
        %v889 = vunpack.c.0.s8 %v888
        %v890 = vlaneseq
        %v891 = vshrl.u32 %v890, 7
        %v892 = vsub.s32 %v889, %v891
        %v893 = vrot.slane %v879, %v892
        %v894 = vcombine.low %v861, %v877
        %v895 = vcombine.high %v861, %v877
        %v897 = vunpack.c.l.s4 1934713408
        %v898 = vunpack.c.0.s8 %v897
        %v899 = vlaneseq
        %v900 = vshrl.u32 %v899, 7
        %v901 = vsub.s32 %v898, %v900
        %v902 = vrot.slane %v894, %v901
        %v904 = vunpack.c.l.s4 1934713408
        %v905 = vunpack.c.0.s8 %v904
        %v906 = vlaneseq
        %v907 = vshrl.u32 %v906, 7
        %v908 = vsub.s32 %v905, %v907
        %v909 = vrot.slane %v895, %v908
        %v910 = vcombine.high %v886, 0.0
        %v911 = vcombine.high %v893, 0.0
        %v912 = vcombine.high %v902, 0.0
        %v913 = vcombine.high %v909, 0.0
        %915 = vrot.lane.b32.xlu0 %v842, 16
        %v916 = vpop.permute.xlu0 %915
        %919 = vrot.lane.b32.xlu0 %v825, 32
        %v920 = vpop.permute.xlu0 %919
        %923 = vrot.lane.b32.xlu0 %v843, 48
        %v924 = vpop.permute.xlu0 %923
        %927 = vrot.lane.b32.xlu0 %v834, 64
        %v928 = vpop.permute.xlu0 %927
        %931 = vrot.lane.b32.xlu0 %v844, 80
        %v932 = vpop.permute.xlu0 %931
        %935 = vrot.lane.b32.xlu0 %v841, 96
        %v936 = vpop.permute.xlu0 %935
        %939 = vrot.lane.b32.xlu0 %v845, 112
        %v940 = vpop.permute.xlu0 %939
        %943 = vrot.lane.b32.xlu0 %v910, 16
        %v944 = vpop.permute.xlu0 %943
        %947 = vrot.lane.b32.xlu0 %v893, 32
        %v948 = vpop.permute.xlu0 %947
        %951 = vrot.lane.b32.xlu0 %v911, 48
        %v952 = vpop.permute.xlu0 %951
        %955 = vrot.lane.b32.xlu0 %v902, 64
        %v956 = vpop.permute.xlu0 %955
        %959 = vrot.lane.b32.xlu0 %v912, 80
        %v960 = vpop.permute.xlu0 %959
        %963 = vrot.lane.b32.xlu0 %v909, 96
        %v964 = vpop.permute.xlu0 %963
        %967 = vrot.lane.b32.xlu0 %v913, 112
        %v968 = vpop.permute.xlu0 %967
        %v970 = vsel %vm723, %v818, %v916
        %v971 = vsel %vm725, %v970, %v920
        %v972 = vsel %vm727, %v971, %v924
        %v973 = vsel %vm729, %v972, %v928
        %v974 = vsel %vm731, %v973, %v932
        %v975 = vsel %vm733, %v974, %v936
        %v976 = vsel %vm735, %v975, %v940
        %v977 = vsel %vm723, %v886, %v944
        %v978 = vsel %vm725, %v977, %v948
        %v979 = vsel %vm727, %v978, %v952
        %v980 = vsel %vm729, %v979, %v956
        %v981 = vsel %vm731, %v980, %v960
        %v982 = vsel %vm733, %v981, %v964
        %v983 = vsel %vm735, %v982, %v968
        %v986 = vrot.slane %v976, 4
        %v987 = vrot.slane %v983, 4
        %990 = vst [vmem:[#allocation3] sm:$0xf0] %v986
        %991 = vst [vmem:[#allocation3 + $0x8] sm:$0xf0] %v987
        %992 = vrot.lane.b32.xlu0 %v519, 126
        %v993 = vpop.permute.xlu0 %992
        %994 = vrot.lane.b32.xlu0 %v520, 126
        %v995 = vpop.permute.xlu0 %994
        %996 = vrot.lane.b32.xlu0 %v522, 126
        %v997 = vpop.permute.xlu0 %996
        %998 = vrot.lane.b32.xlu0 %v523, 126
        %v999 = vpop.permute.xlu0 %998
        %1000 = vrot.lane.b32.xlu0 %v525, 126
        %v1001 = vpop.permute.xlu0 %1000
        %1002 = vrot.lane.b32.xlu0 %v526, 126
        %v1003 = vpop.permute.xlu0 %1002
        %1004 = vrot.lane.b32.xlu0 %v528, 126
        %v1005 = vpop.permute.xlu0 %1004
        %1006 = vrot.lane.b32.xlu0 %v529, 126
        %v1007 = vpop.permute.xlu0 %1006
        %v1016 = vcombine.low %v993, %v1001
        %v1017 = vcombine.high %v993, %v1001
        %v1019 = vunpack.c.l.s4 1983009808
        %v1020 = vunpack.c.0.s8 %v1019
        %v1021 = vlaneseq
        %v1022 = vshrl.u32 %v1021, 7
        %v1023 = vsub.s32 %v1020, %v1022
        %v1024 = vrot.slane %v1016, %v1023
        %v1026 = vunpack.c.l.s4 1983009808
        %v1027 = vunpack.c.0.s8 %v1026
        %v1028 = vlaneseq
        %v1029 = vshrl.u32 %v1028, 7
        %v1030 = vsub.s32 %v1027, %v1029
        %v1031 = vrot.slane %v1017, %v1030
        %v1032 = vcombine.low %v997, %v1005
        %v1033 = vcombine.high %v997, %v1005
        %v1035 = vunpack.c.l.s4 1983009808
        %v1036 = vunpack.c.0.s8 %v1035
        %v1037 = vlaneseq
        %v1038 = vshrl.u32 %v1037, 7
        %v1039 = vsub.s32 %v1036, %v1038
        %v1040 = vrot.slane %v1032, %v1039
        %v1042 = vunpack.c.l.s4 1983009808
        %v1043 = vunpack.c.0.s8 %v1042
        %v1044 = vlaneseq
        %v1045 = vshrl.u32 %v1044, 7
        %v1046 = vsub.s32 %v1043, %v1045
        %v1047 = vrot.slane %v1033, %v1046
        %v1048 = vcombine.low %v1024, %v1040
        %v1049 = vcombine.high %v1024, %v1040
        %v1051 = vunpack.c.l.s4 1934713408
        %v1052 = vunpack.c.0.s8 %v1051
        %v1053 = vlaneseq
        %v1054 = vshrl.u32 %v1053, 7
        %v1055 = vsub.s32 %v1052, %v1054
        %v1056 = vrot.slane %v1048, %v1055
        %v1058 = vunpack.c.l.s4 1934713408
        %v1059 = vunpack.c.0.s8 %v1058
        %v1060 = vlaneseq
        %v1061 = vshrl.u32 %v1060, 7
        %v1062 = vsub.s32 %v1059, %v1061
        %v1063 = vrot.slane %v1049, %v1062
        %v1064 = vcombine.low %v1031, %v1047
        %v1065 = vcombine.high %v1031, %v1047
        %v1067 = vunpack.c.l.s4 1934713408
        %v1068 = vunpack.c.0.s8 %v1067
        %v1069 = vlaneseq
        %v1070 = vshrl.u32 %v1069, 7
        %v1071 = vsub.s32 %v1068, %v1070
        %v1072 = vrot.slane %v1064, %v1071
        %v1074 = vunpack.c.l.s4 1934713408
        %v1075 = vunpack.c.0.s8 %v1074
        %v1076 = vlaneseq
        %v1077 = vshrl.u32 %v1076, 7
        %v1078 = vsub.s32 %v1075, %v1077
        %v1079 = vrot.slane %v1065, %v1078
        %v1080 = vcombine.high %v1056, 0.0
        %v1081 = vcombine.high %v1063, 0.0
        %v1082 = vcombine.high %v1072, 0.0
        %v1083 = vcombine.high %v1079, 0.0
        %v1084 = vcombine.low %v995, %v1003
        %v1085 = vcombine.high %v995, %v1003
        %v1087 = vunpack.c.l.s4 1983009808
        %v1088 = vunpack.c.0.s8 %v1087
        %v1089 = vlaneseq
        %v1090 = vshrl.u32 %v1089, 7
        %v1091 = vsub.s32 %v1088, %v1090
        %v1092 = vrot.slane %v1084, %v1091
        %v1094 = vunpack.c.l.s4 1983009808
        %v1095 = vunpack.c.0.s8 %v1094
        %v1096 = vlaneseq
        %v1097 = vshrl.u32 %v1096, 7
        %v1098 = vsub.s32 %v1095, %v1097
        %v1099 = vrot.slane %v1085, %v1098
        %v1100 = vcombine.low %v999, %v1007
        %v1101 = vcombine.high %v999, %v1007
        %v1103 = vunpack.c.l.s4 1983009808
        %v1104 = vunpack.c.0.s8 %v1103
        %v1105 = vlaneseq
        %v1106 = vshrl.u32 %v1105, 7
        %v1107 = vsub.s32 %v1104, %v1106
        %v1108 = vrot.slane %v1100, %v1107
        %v1110 = vunpack.c.l.s4 1983009808
        %v1111 = vunpack.c.0.s8 %v1110
        %v1112 = vlaneseq
        %v1113 = vshrl.u32 %v1112, 7
        %v1114 = vsub.s32 %v1111, %v1113
        %v1115 = vrot.slane %v1101, %v1114
        %v1116 = vcombine.low %v1092, %v1108
        %v1117 = vcombine.high %v1092, %v1108
        %v1119 = vunpack.c.l.s4 1934713408
        %v1120 = vunpack.c.0.s8 %v1119
        %v1121 = vlaneseq
        %v1122 = vshrl.u32 %v1121, 7
        %v1123 = vsub.s32 %v1120, %v1122
        %v1124 = vrot.slane %v1116, %v1123
        %v1126 = vunpack.c.l.s4 1934713408
        %v1127 = vunpack.c.0.s8 %v1126
        %v1128 = vlaneseq
        %v1129 = vshrl.u32 %v1128, 7
        %v1130 = vsub.s32 %v1127, %v1129
        %v1131 = vrot.slane %v1117, %v1130
        %v1132 = vcombine.low %v1099, %v1115
        %v1133 = vcombine.high %v1099, %v1115
        %v1135 = vunpack.c.l.s4 1934713408
        %v1136 = vunpack.c.0.s8 %v1135
        %v1137 = vlaneseq
        %v1138 = vshrl.u32 %v1137, 7
        %v1139 = vsub.s32 %v1136, %v1138
        %v1140 = vrot.slane %v1132, %v1139
        %v1142 = vunpack.c.l.s4 1934713408
        %v1143 = vunpack.c.0.s8 %v1142
        %v1144 = vlaneseq
        %v1145 = vshrl.u32 %v1144, 7
        %v1146 = vsub.s32 %v1143, %v1145
        %v1147 = vrot.slane %v1133, %v1146
        %v1148 = vcombine.high %v1124, 0.0
        %v1149 = vcombine.high %v1131, 0.0
        %v1150 = vcombine.high %v1140, 0.0
        %v1151 = vcombine.high %v1147, 0.0
        %1153 = vrot.lane.b32.xlu0 %v1080, 16
        %v1154 = vpop.permute.xlu0 %1153
        %1157 = vrot.lane.b32.xlu0 %v1063, 32
        %v1158 = vpop.permute.xlu0 %1157
        %1161 = vrot.lane.b32.xlu0 %v1081, 48
        %v1162 = vpop.permute.xlu0 %1161
        %1165 = vrot.lane.b32.xlu0 %v1072, 64
        %v1166 = vpop.permute.xlu0 %1165
        %1169 = vrot.lane.b32.xlu0 %v1082, 80
        %v1170 = vpop.permute.xlu0 %1169
        %1173 = vrot.lane.b32.xlu0 %v1079, 96
        %v1174 = vpop.permute.xlu0 %1173
        %1177 = vrot.lane.b32.xlu0 %v1083, 112
        %v1178 = vpop.permute.xlu0 %1177
        %1181 = vrot.lane.b32.xlu0 %v1148, 16
        %v1182 = vpop.permute.xlu0 %1181
        %1185 = vrot.lane.b32.xlu0 %v1131, 32
        %v1186 = vpop.permute.xlu0 %1185
        %1189 = vrot.lane.b32.xlu0 %v1149, 48
        %v1190 = vpop.permute.xlu0 %1189
        %1193 = vrot.lane.b32.xlu0 %v1140, 64
        %v1194 = vpop.permute.xlu0 %1193
        %1197 = vrot.lane.b32.xlu0 %v1150, 80
        %v1198 = vpop.permute.xlu0 %1197
        %1201 = vrot.lane.b32.xlu0 %v1147, 96
        %v1202 = vpop.permute.xlu0 %1201
        %1205 = vrot.lane.b32.xlu0 %v1151, 112
        %v1206 = vpop.permute.xlu0 %1205
        %v1208 = vsel %vm723, %v1056, %v1154
        %v1209 = vsel %vm725, %v1208, %v1158
        %v1210 = vsel %vm727, %v1209, %v1162
        %v1211 = vsel %vm729, %v1210, %v1166
        %v1212 = vsel %vm731, %v1211, %v1170
        %v1213 = vsel %vm733, %v1212, %v1174
        %v1214 = vsel %vm735, %v1213, %v1178
        %v1215 = vsel %vm723, %v1124, %v1182
        %v1216 = vsel %vm725, %v1215, %v1186
        %v1217 = vsel %vm727, %v1216, %v1190
        %v1218 = vsel %vm729, %v1217, %v1194
        %v1219 = vsel %vm731, %v1218, %v1198
        %v1220 = vsel %vm733, %v1219, %v1202
        %v1221 = vsel %vm735, %v1220, %v1206
        %1222 = vst [vmem:[#allocation3 + $0x10] sm:$0xf] %v1214
        %1223 = vst [vmem:[#allocation3 + $0x18] sm:$0xf] %v1221
        %vm1228 = vcmask 1046528
        %v1229 = vrot.slane %v519, 1
        %v1230 = vrot.slane %v520, 1
        %v1231 = vsel %vm1228, %v1229, %v1230
        %v1232 = vrot.slane %v521, 1
        %v1233 = vsel %vm1228, %v1230, %v1232
        %v1234 = vrot.slane %v522, 1
        %v1235 = vrot.slane %v523, 1
        %v1236 = vsel %vm1228, %v1234, %v1235
        %v1237 = vrot.slane %v524, 1
        %v1238 = vsel %vm1228, %v1235, %v1237
        %v1239 = vrot.slane %v525, 1
        %v1240 = vrot.slane %v526, 1
        %v1241 = vsel %vm1228, %v1239, %v1240
        %v1242 = vrot.slane %v527, 1
        %v1243 = vsel %vm1228, %v1240, %v1242
        %v1244 = vrot.slane %v528, 1
        %v1245 = vrot.slane %v529, 1
        %v1246 = vsel %vm1228, %v1244, %v1245
        %v1247 = vrot.slane %v530, 1
        %v1248 = vsel %vm1228, %v1245, %v1247
        %v1257 = vcombine.low %v1231, %v1241
        %v1258 = vcombine.high %v1231, %v1241
        %v1260 = vunpack.c.l.s4 1983009808
        %v1261 = vunpack.c.0.s8 %v1260
        %v1262 = vlaneseq
        %v1263 = vshrl.u32 %v1262, 7
        %v1264 = vsub.s32 %v1261, %v1263
        %v1265 = vrot.slane %v1257, %v1264
        %v1267 = vunpack.c.l.s4 1983009808
        %v1268 = vunpack.c.0.s8 %v1267
        %v1269 = vlaneseq
        %v1270 = vshrl.u32 %v1269, 7
        %v1271 = vsub.s32 %v1268, %v1270
        %v1272 = vrot.slane %v1258, %v1271
        %v1273 = vcombine.low %v1236, %v1246
        %v1274 = vcombine.high %v1236, %v1246
        %v1276 = vunpack.c.l.s4 1983009808
        %v1277 = vunpack.c.0.s8 %v1276
        %v1278 = vlaneseq
        %v1279 = vshrl.u32 %v1278, 7
        %v1280 = vsub.s32 %v1277, %v1279
        %v1281 = vrot.slane %v1273, %v1280
        %v1283 = vunpack.c.l.s4 1983009808
        %v1284 = vunpack.c.0.s8 %v1283
        %v1285 = vlaneseq
        %v1286 = vshrl.u32 %v1285, 7
        %v1287 = vsub.s32 %v1284, %v1286
        %v1288 = vrot.slane %v1274, %v1287
        %v1289 = vcombine.low %v1265, %v1281
        %v1290 = vcombine.high %v1265, %v1281
        %v1292 = vunpack.c.l.s4 1934713408
        %v1293 = vunpack.c.0.s8 %v1292
        %v1294 = vlaneseq
        %v1295 = vshrl.u32 %v1294, 7
        %v1296 = vsub.s32 %v1293, %v1295
        %v1297 = vrot.slane %v1289, %v1296
        %v1299 = vunpack.c.l.s4 1934713408
        %v1300 = vunpack.c.0.s8 %v1299
        %v1301 = vlaneseq
        %v1302 = vshrl.u32 %v1301, 7
        %v1303 = vsub.s32 %v1300, %v1302
        %v1304 = vrot.slane %v1290, %v1303
        %v1305 = vcombine.low %v1272, %v1288
        %v1306 = vcombine.high %v1272, %v1288
        %v1308 = vunpack.c.l.s4 1934713408
        %v1309 = vunpack.c.0.s8 %v1308
        %v1310 = vlaneseq
        %v1311 = vshrl.u32 %v1310, 7
        %v1312 = vsub.s32 %v1309, %v1311
        %v1313 = vrot.slane %v1305, %v1312
        %v1315 = vunpack.c.l.s4 1934713408
        %v1316 = vunpack.c.0.s8 %v1315
        %v1317 = vlaneseq
        %v1318 = vshrl.u32 %v1317, 7
        %v1319 = vsub.s32 %v1316, %v1318
        %v1320 = vrot.slane %v1306, %v1319
        %v1321 = vcombine.high %v1297, 0.0
        %v1322 = vcombine.high %v1304, 0.0
        %v1323 = vcombine.high %v1313, 0.0
        %v1324 = vcombine.high %v1320, 0.0
        %v1325 = vcombine.low %v1233, %v1243
        %v1326 = vcombine.high %v1233, %v1243
        %v1328 = vunpack.c.l.s4 1983009808
        %v1329 = vunpack.c.0.s8 %v1328
        %v1330 = vlaneseq
        %v1331 = vshrl.u32 %v1330, 7
        %v1332 = vsub.s32 %v1329, %v1331
        %v1333 = vrot.slane %v1325, %v1332
        %v1335 = vunpack.c.l.s4 1983009808
        %v1336 = vunpack.c.0.s8 %v1335
        %v1337 = vlaneseq
        %v1338 = vshrl.u32 %v1337, 7
        %v1339 = vsub.s32 %v1336, %v1338
        %v1340 = vrot.slane %v1326, %v1339
        %v1341 = vcombine.low %v1238, %v1248
        %v1342 = vcombine.high %v1238, %v1248
        %v1344 = vunpack.c.l.s4 1983009808
        %v1345 = vunpack.c.0.s8 %v1344
        %v1346 = vlaneseq
        %v1347 = vshrl.u32 %v1346, 7
        %v1348 = vsub.s32 %v1345, %v1347
        %v1349 = vrot.slane %v1341, %v1348
        %v1351 = vunpack.c.l.s4 1983009808
        %v1352 = vunpack.c.0.s8 %v1351
        %v1353 = vlaneseq
        %v1354 = vshrl.u32 %v1353, 7
        %v1355 = vsub.s32 %v1352, %v1354
        %v1356 = vrot.slane %v1342, %v1355
        %v1357 = vcombine.low %v1333, %v1349
        %v1358 = vcombine.high %v1333, %v1349
        %v1360 = vunpack.c.l.s4 1934713408
        %v1361 = vunpack.c.0.s8 %v1360
        %v1362 = vlaneseq
        %v1363 = vshrl.u32 %v1362, 7
        %v1364 = vsub.s32 %v1361, %v1363
        %v1365 = vrot.slane %v1357, %v1364
        %v1367 = vunpack.c.l.s4 1934713408
        %v1368 = vunpack.c.0.s8 %v1367
        %v1369 = vlaneseq
        %v1370 = vshrl.u32 %v1369, 7
        %v1371 = vsub.s32 %v1368, %v1370
        %v1372 = vrot.slane %v1358, %v1371
        %v1373 = vcombine.low %v1340, %v1356
        %v1374 = vcombine.high %v1340, %v1356
        %v1376 = vunpack.c.l.s4 1934713408
        %v1377 = vunpack.c.0.s8 %v1376
        %v1378 = vlaneseq
        %v1379 = vshrl.u32 %v1378, 7
        %v1380 = vsub.s32 %v1377, %v1379
        %v1381 = vrot.slane %v1373, %v1380
        %v1383 = vunpack.c.l.s4 1934713408
        %v1384 = vunpack.c.0.s8 %v1383
        %v1385 = vlaneseq
        %v1386 = vshrl.u32 %v1385, 7
        %v1387 = vsub.s32 %v1384, %v1386
        %v1388 = vrot.slane %v1374, %v1387
        %v1389 = vcombine.high %v1365, 0.0
        %v1390 = vcombine.high %v1372, 0.0
        %v1391 = vcombine.high %v1381, 0.0
        %v1392 = vcombine.high %v1388, 0.0
        %1394 = vrot.lane.b32.xlu0 %v1321, 16
        %v1395 = vpop.permute.xlu0 %1394
        %1398 = vrot.lane.b32.xlu0 %v1304, 32
        %v1399 = vpop.permute.xlu0 %1398
        %1402 = vrot.lane.b32.xlu0 %v1322, 48
        %v1403 = vpop.permute.xlu0 %1402
        %1406 = vrot.lane.b32.xlu0 %v1313, 64
        %v1407 = vpop.permute.xlu0 %1406
        %1410 = vrot.lane.b32.xlu0 %v1323, 80
        %v1411 = vpop.permute.xlu0 %1410
        %1414 = vrot.lane.b32.xlu0 %v1320, 96
        %v1415 = vpop.permute.xlu0 %1414
        %1418 = vrot.lane.b32.xlu0 %v1324, 112
        %v1419 = vpop.permute.xlu0 %1418
        %1422 = vrot.lane.b32.xlu0 %v1389, 16
        %v1423 = vpop.permute.xlu0 %1422
        %1426 = vrot.lane.b32.xlu0 %v1372, 32
        %v1427 = vpop.permute.xlu0 %1426
        %1430 = vrot.lane.b32.xlu0 %v1390, 48
        %v1431 = vpop.permute.xlu0 %1430
        %1434 = vrot.lane.b32.xlu0 %v1381, 64
        %v1435 = vpop.permute.xlu0 %1434
        %1438 = vrot.lane.b32.xlu0 %v1391, 80
        %v1439 = vpop.permute.xlu0 %1438
        %1442 = vrot.lane.b32.xlu0 %v1388, 96
        %v1443 = vpop.permute.xlu0 %1442
        %1446 = vrot.lane.b32.xlu0 %v1392, 112
        %v1447 = vpop.permute.xlu0 %1446
        %v1449 = vsel %vm723, %v1297, %v1395
        %v1450 = vsel %vm725, %v1449, %v1399
        %v1451 = vsel %vm727, %v1450, %v1403
        %v1452 = vsel %vm729, %v1451, %v1407
        %v1453 = vsel %vm731, %v1452, %v1411
        %v1454 = vsel %vm733, %v1453, %v1415
        %v1455 = vsel %vm735, %v1454, %v1419
        %v1456 = vsel %vm723, %v1365, %v1423
        %v1457 = vsel %vm725, %v1456, %v1427
        %v1458 = vsel %vm727, %v1457, %v1431
        %v1459 = vsel %vm729, %v1458, %v1435
        %v1460 = vsel %vm731, %v1459, %v1439
        %v1461 = vsel %vm733, %v1460, %v1443
        %v1462 = vsel %vm735, %v1461, %v1447
        %v1465 = vrot.slane %v1455, 4
        %v1466 = vrot.slane %v1462, 4
        %1469 = vst [vmem:[#allocation3 + $0x10] sm:$0xf0] %v1465
        %1470 = vst [vmem:[#allocation3 + $0x18] sm:$0xf0] %v1466
        %1471 = vrot.lane.b32.xlu0 %v1231, 127
        %v1472 = vpop.permute.xlu0 %1471
        %1473 = vrot.lane.b32.xlu0 %v1233, 127
        %v1474 = vpop.permute.xlu0 %1473
        %1475 = vrot.lane.b32.xlu0 %v1236, 127
        %v1476 = vpop.permute.xlu0 %1475
        %1477 = vrot.lane.b32.xlu0 %v1238, 127
        %v1478 = vpop.permute.xlu0 %1477
        %1479 = vrot.lane.b32.xlu0 %v1241, 127
        %v1480 = vpop.permute.xlu0 %1479
        %1481 = vrot.lane.b32.xlu0 %v1243, 127
        %v1482 = vpop.permute.xlu0 %1481
        %1483 = vrot.lane.b32.xlu0 %v1246, 127
        %v1484 = vpop.permute.xlu0 %1483
        %1485 = vrot.lane.b32.xlu0 %v1248, 127
        %v1486 = vpop.permute.xlu0 %1485
        %v1495 = vcombine.low %v1472, %v1480
        %v1496 = vcombine.high %v1472, %v1480
        %v1498 = vunpack.c.l.s4 1983009808
        %v1499 = vunpack.c.0.s8 %v1498
        %v1500 = vlaneseq
        %v1501 = vshrl.u32 %v1500, 7
        %v1502 = vsub.s32 %v1499, %v1501
        %v1503 = vrot.slane %v1495, %v1502
        %v1505 = vunpack.c.l.s4 1983009808
        %v1506 = vunpack.c.0.s8 %v1505
        %v1507 = vlaneseq
        %v1508 = vshrl.u32 %v1507, 7
        %v1509 = vsub.s32 %v1506, %v1508
        %v1510 = vrot.slane %v1496, %v1509
        %v1511 = vcombine.low %v1476, %v1484
        %v1512 = vcombine.high %v1476, %v1484
        %v1514 = vunpack.c.l.s4 1983009808
        %v1515 = vunpack.c.0.s8 %v1514
        %v1516 = vlaneseq
        %v1517 = vshrl.u32 %v1516, 7
        %v1518 = vsub.s32 %v1515, %v1517
        %v1519 = vrot.slane %v1511, %v1518
        %v1521 = vunpack.c.l.s4 1983009808
        %v1522 = vunpack.c.0.s8 %v1521
        %v1523 = vlaneseq
        %v1524 = vshrl.u32 %v1523, 7
        %v1525 = vsub.s32 %v1522, %v1524
        %v1526 = vrot.slane %v1512, %v1525
        %v1527 = vcombine.low %v1503, %v1519
        %v1528 = vcombine.high %v1503, %v1519
        %v1530 = vunpack.c.l.s4 1934713408
        %v1531 = vunpack.c.0.s8 %v1530
        %v1532 = vlaneseq
        %v1533 = vshrl.u32 %v1532, 7
        %v1534 = vsub.s32 %v1531, %v1533
        %v1535 = vrot.slane %v1527, %v1534
        %v1537 = vunpack.c.l.s4 1934713408
        %v1538 = vunpack.c.0.s8 %v1537
        %v1539 = vlaneseq
        %v1540 = vshrl.u32 %v1539, 7
        %v1541 = vsub.s32 %v1538, %v1540
        %v1542 = vrot.slane %v1528, %v1541
        %v1543 = vcombine.low %v1510, %v1526
        %v1544 = vcombine.high %v1510, %v1526
        %v1546 = vunpack.c.l.s4 1934713408
        %v1547 = vunpack.c.0.s8 %v1546
        %v1548 = vlaneseq
        %v1549 = vshrl.u32 %v1548, 7
        %v1550 = vsub.s32 %v1547, %v1549
        %v1551 = vrot.slane %v1543, %v1550
        %v1553 = vunpack.c.l.s4 1934713408
        %v1554 = vunpack.c.0.s8 %v1553
        %v1555 = vlaneseq
        %v1556 = vshrl.u32 %v1555, 7
        %v1557 = vsub.s32 %v1554, %v1556
        %v1558 = vrot.slane %v1544, %v1557
        %v1559 = vcombine.high %v1535, 0.0
        %v1560 = vcombine.high %v1542, 0.0
        %v1561 = vcombine.high %v1551, 0.0
        %v1562 = vcombine.high %v1558, 0.0
        %v1563 = vcombine.low %v1474, %v1482
        %v1564 = vcombine.high %v1474, %v1482
        %v1566 = vunpack.c.l.s4 1983009808
        %v1567 = vunpack.c.0.s8 %v1566
        %v1568 = vlaneseq
        %v1569 = vshrl.u32 %v1568, 7
        %v1570 = vsub.s32 %v1567, %v1569
        %v1571 = vrot.slane %v1563, %v1570
        %v1573 = vunpack.c.l.s4 1983009808
        %v1574 = vunpack.c.0.s8 %v1573
        %v1575 = vlaneseq
        %v1576 = vshrl.u32 %v1575, 7
        %v1577 = vsub.s32 %v1574, %v1576
        %v1578 = vrot.slane %v1564, %v1577
        %v1579 = vcombine.low %v1478, %v1486
        %v1580 = vcombine.high %v1478, %v1486
        %v1582 = vunpack.c.l.s4 1983009808
        %v1583 = vunpack.c.0.s8 %v1582
        %v1584 = vlaneseq
        %v1585 = vshrl.u32 %v1584, 7
        %v1586 = vsub.s32 %v1583, %v1585
        %v1587 = vrot.slane %v1579, %v1586
        %v1589 = vunpack.c.l.s4 1983009808
        %v1590 = vunpack.c.0.s8 %v1589
        %v1591 = vlaneseq
        %v1592 = vshrl.u32 %v1591, 7
        %v1593 = vsub.s32 %v1590, %v1592
        %v1594 = vrot.slane %v1580, %v1593
        %v1595 = vcombine.low %v1571, %v1587
        %v1596 = vcombine.high %v1571, %v1587
        %v1598 = vunpack.c.l.s4 1934713408
        %v1599 = vunpack.c.0.s8 %v1598
        %v1600 = vlaneseq
        %v1601 = vshrl.u32 %v1600, 7
        %v1602 = vsub.s32 %v1599, %v1601
        %v1603 = vrot.slane %v1595, %v1602
        %v1605 = vunpack.c.l.s4 1934713408
        %v1606 = vunpack.c.0.s8 %v1605
        %v1607 = vlaneseq
        %v1608 = vshrl.u32 %v1607, 7
        %v1609 = vsub.s32 %v1606, %v1608
        %v1610 = vrot.slane %v1596, %v1609
        %v1611 = vcombine.low %v1578, %v1594
        %v1612 = vcombine.high %v1578, %v1594
        %v1614 = vunpack.c.l.s4 1934713408
        %v1615 = vunpack.c.0.s8 %v1614
        %v1616 = vlaneseq
        %v1617 = vshrl.u32 %v1616, 7
        %v1618 = vsub.s32 %v1615, %v1617
        %v1619 = vrot.slane %v1611, %v1618
        %v1621 = vunpack.c.l.s4 1934713408
        %v1622 = vunpack.c.0.s8 %v1621
        %v1623 = vlaneseq
        %v1624 = vshrl.u32 %v1623, 7
        %v1625 = vsub.s32 %v1622, %v1624
        %v1626 = vrot.slane %v1612, %v1625
        %v1627 = vcombine.high %v1603, 0.0
        %v1628 = vcombine.high %v1610, 0.0
        %v1629 = vcombine.high %v1619, 0.0
        %v1630 = vcombine.high %v1626, 0.0
        %1632 = vrot.lane.b32.xlu0 %v1559, 16
        %v1633 = vpop.permute.xlu0 %1632
        %1636 = vrot.lane.b32.xlu0 %v1542, 32
        %v1637 = vpop.permute.xlu0 %1636
        %1640 = vrot.lane.b32.xlu0 %v1560, 48
        %v1641 = vpop.permute.xlu0 %1640
        %1644 = vrot.lane.b32.xlu0 %v1551, 64
        %v1645 = vpop.permute.xlu0 %1644
        %1648 = vrot.lane.b32.xlu0 %v1561, 80
        %v1649 = vpop.permute.xlu0 %1648
        %1652 = vrot.lane.b32.xlu0 %v1558, 96
        %v1653 = vpop.permute.xlu0 %1652
        %1656 = vrot.lane.b32.xlu0 %v1562, 112
        %v1657 = vpop.permute.xlu0 %1656
        %1660 = vrot.lane.b32.xlu0 %v1627, 16
        %v1661 = vpop.permute.xlu0 %1660
        %1664 = vrot.lane.b32.xlu0 %v1610, 32
        %v1665 = vpop.permute.xlu0 %1664
        %1668 = vrot.lane.b32.xlu0 %v1628, 48
        %v1669 = vpop.permute.xlu0 %1668
        %1672 = vrot.lane.b32.xlu0 %v1619, 64
        %v1673 = vpop.permute.xlu0 %1672
        %1676 = vrot.lane.b32.xlu0 %v1629, 80
        %v1677 = vpop.permute.xlu0 %1676
        %1680 = vrot.lane.b32.xlu0 %v1626, 96
        %v1681 = vpop.permute.xlu0 %1680
        %1684 = vrot.lane.b32.xlu0 %v1630, 112
        %v1685 = vpop.permute.xlu0 %1684
        %v1687 = vsel %vm723, %v1535, %v1633
        %v1688 = vsel %vm725, %v1687, %v1637
        %v1689 = vsel %vm727, %v1688, %v1641
        %v1690 = vsel %vm729, %v1689, %v1645
        %v1691 = vsel %vm731, %v1690, %v1649
        %v1692 = vsel %vm733, %v1691, %v1653
        %v1693 = vsel %vm735, %v1692, %v1657
        %v1694 = vsel %vm723, %v1603, %v1661
        %v1695 = vsel %vm725, %v1694, %v1665
        %v1696 = vsel %vm727, %v1695, %v1669
        %v1697 = vsel %vm729, %v1696, %v1673
        %v1698 = vsel %vm731, %v1697, %v1677
        %v1699 = vsel %vm733, %v1698, %v1681
        %v1700 = vsel %vm735, %v1699, %v1685
        %1701 = vst [vmem:[#allocation3 + $0x20] sm:$0xf] %v1693
        %1702 = vst [vmem:[#allocation3 + $0x28] sm:$0xf] %v1700
        %1703 = vrot.lane.b32.xlu0 %v1231, 126
        %v1704 = vpop.permute.xlu0 %1703
        %1705 = vrot.lane.b32.xlu0 %v1233, 126
        %v1706 = vpop.permute.xlu0 %1705
        %1707 = vrot.lane.b32.xlu0 %v1236, 126
        %v1708 = vpop.permute.xlu0 %1707
        %1709 = vrot.lane.b32.xlu0 %v1238, 126
        %v1710 = vpop.permute.xlu0 %1709
        %1711 = vrot.lane.b32.xlu0 %v1241, 126
        %v1712 = vpop.permute.xlu0 %1711
        %1713 = vrot.lane.b32.xlu0 %v1243, 126
        %v1714 = vpop.permute.xlu0 %1713
        %1715 = vrot.lane.b32.xlu0 %v1246, 126
        %v1716 = vpop.permute.xlu0 %1715
        %1717 = vrot.lane.b32.xlu0 %v1248, 126
        %v1718 = vpop.permute.xlu0 %1717
        %v1727 = vcombine.low %v1704, %v1712
        %v1728 = vcombine.high %v1704, %v1712
        %v1730 = vunpack.c.l.s4 1983009808
        %v1731 = vunpack.c.0.s8 %v1730
        %v1732 = vlaneseq
        %v1733 = vshrl.u32 %v1732, 7
        %v1734 = vsub.s32 %v1731, %v1733
        %v1735 = vrot.slane %v1727, %v1734
        %v1737 = vunpack.c.l.s4 1983009808
        %v1738 = vunpack.c.0.s8 %v1737
        %v1739 = vlaneseq
        %v1740 = vshrl.u32 %v1739, 7
        %v1741 = vsub.s32 %v1738, %v1740
        %v1742 = vrot.slane %v1728, %v1741
        %v1743 = vcombine.low %v1708, %v1716
        %v1744 = vcombine.high %v1708, %v1716
        %v1746 = vunpack.c.l.s4 1983009808
        %v1747 = vunpack.c.0.s8 %v1746
        %v1748 = vlaneseq
        %v1749 = vshrl.u32 %v1748, 7
        %v1750 = vsub.s32 %v1747, %v1749
        %v1751 = vrot.slane %v1743, %v1750
        %v1753 = vunpack.c.l.s4 1983009808
        %v1754 = vunpack.c.0.s8 %v1753
        %v1755 = vlaneseq
        %v1756 = vshrl.u32 %v1755, 7
        %v1757 = vsub.s32 %v1754, %v1756
        %v1758 = vrot.slane %v1744, %v1757
        %v1759 = vcombine.low %v1735, %v1751
        %v1760 = vcombine.high %v1735, %v1751
        %v1762 = vunpack.c.l.s4 1934713408
        %v1763 = vunpack.c.0.s8 %v1762
        %v1764 = vlaneseq
        %v1765 = vshrl.u32 %v1764, 7
        %v1766 = vsub.s32 %v1763, %v1765
        %v1767 = vrot.slane %v1759, %v1766
        %v1769 = vunpack.c.l.s4 1934713408
        %v1770 = vunpack.c.0.s8 %v1769
        %v1771 = vlaneseq
        %v1772 = vshrl.u32 %v1771, 7
        %v1773 = vsub.s32 %v1770, %v1772
        %v1774 = vrot.slane %v1760, %v1773
        %v1775 = vcombine.low %v1742, %v1758
        %v1776 = vcombine.high %v1742, %v1758
        %v1778 = vunpack.c.l.s4 1934713408
        %v1779 = vunpack.c.0.s8 %v1778
        %v1780 = vlaneseq
        %v1781 = vshrl.u32 %v1780, 7
        %v1782 = vsub.s32 %v1779, %v1781
        %v1783 = vrot.slane %v1775, %v1782
        %v1785 = vunpack.c.l.s4 1934713408
        %v1786 = vunpack.c.0.s8 %v1785
        %v1787 = vlaneseq
        %v1788 = vshrl.u32 %v1787, 7
        %v1789 = vsub.s32 %v1786, %v1788
        %v1790 = vrot.slane %v1776, %v1789
        %v1791 = vcombine.high %v1767, 0.0
        %v1792 = vcombine.high %v1774, 0.0
        %v1793 = vcombine.high %v1783, 0.0
        %v1794 = vcombine.high %v1790, 0.0
        %v1795 = vcombine.low %v1706, %v1714
        %v1796 = vcombine.high %v1706, %v1714
        %v1798 = vunpack.c.l.s4 1983009808
        %v1799 = vunpack.c.0.s8 %v1798
        %v1800 = vlaneseq
        %v1801 = vshrl.u32 %v1800, 7
        %v1802 = vsub.s32 %v1799, %v1801
        %v1803 = vrot.slane %v1795, %v1802
        %v1805 = vunpack.c.l.s4 1983009808
        %v1806 = vunpack.c.0.s8 %v1805
        %v1807 = vlaneseq
        %v1808 = vshrl.u32 %v1807, 7
        %v1809 = vsub.s32 %v1806, %v1808
        %v1810 = vrot.slane %v1796, %v1809
        %v1811 = vcombine.low %v1710, %v1718
        %v1812 = vcombine.high %v1710, %v1718
        %v1814 = vunpack.c.l.s4 1983009808
        %v1815 = vunpack.c.0.s8 %v1814
        %v1816 = vlaneseq
        %v1817 = vshrl.u32 %v1816, 7
        %v1818 = vsub.s32 %v1815, %v1817
        %v1819 = vrot.slane %v1811, %v1818
        %v1821 = vunpack.c.l.s4 1983009808
        %v1822 = vunpack.c.0.s8 %v1821
        %v1823 = vlaneseq
        %v1824 = vshrl.u32 %v1823, 7
        %v1825 = vsub.s32 %v1822, %v1824
        %v1826 = vrot.slane %v1812, %v1825
        %v1827 = vcombine.low %v1803, %v1819
        %v1828 = vcombine.high %v1803, %v1819
        %v1830 = vunpack.c.l.s4 1934713408
        %v1831 = vunpack.c.0.s8 %v1830
        %v1832 = vlaneseq
        %v1833 = vshrl.u32 %v1832, 7
        %v1834 = vsub.s32 %v1831, %v1833
        %v1835 = vrot.slane %v1827, %v1834
        %v1837 = vunpack.c.l.s4 1934713408
        %v1838 = vunpack.c.0.s8 %v1837
        %v1839 = vlaneseq
        %v1840 = vshrl.u32 %v1839, 7
        %v1841 = vsub.s32 %v1838, %v1840
        %v1842 = vrot.slane %v1828, %v1841
        %v1843 = vcombine.low %v1810, %v1826
        %v1844 = vcombine.high %v1810, %v1826
        %v1846 = vunpack.c.l.s4 1934713408
        %v1847 = vunpack.c.0.s8 %v1846
        %v1848 = vlaneseq
        %v1849 = vshrl.u32 %v1848, 7
        %v1850 = vsub.s32 %v1847, %v1849
        %v1851 = vrot.slane %v1843, %v1850
        %v1853 = vunpack.c.l.s4 1934713408
        %v1854 = vunpack.c.0.s8 %v1853
        %v1855 = vlaneseq
        %v1856 = vshrl.u32 %v1855, 7
        %v1857 = vsub.s32 %v1854, %v1856
        %v1858 = vrot.slane %v1844, %v1857
        %v1859 = vcombine.high %v1835, 0.0
        %v1860 = vcombine.high %v1842, 0.0
        %v1861 = vcombine.high %v1851, 0.0
        %v1862 = vcombine.high %v1858, 0.0
        %1864 = vrot.lane.b32.xlu0 %v1791, 16
        %v1865 = vpop.permute.xlu0 %1864
        %1868 = vrot.lane.b32.xlu0 %v1774, 32
        %v1869 = vpop.permute.xlu0 %1868
        %1872 = vrot.lane.b32.xlu0 %v1792, 48
        %v1873 = vpop.permute.xlu0 %1872
        %1876 = vrot.lane.b32.xlu0 %v1783, 64
        %v1877 = vpop.permute.xlu0 %1876
        %1880 = vrot.lane.b32.xlu0 %v1793, 80
        %v1881 = vpop.permute.xlu0 %1880
        %1884 = vrot.lane.b32.xlu0 %v1790, 96
        %v1885 = vpop.permute.xlu0 %1884
        %1888 = vrot.lane.b32.xlu0 %v1794, 112
        %v1889 = vpop.permute.xlu0 %1888
        %1892 = vrot.lane.b32.xlu0 %v1859, 16
        %v1893 = vpop.permute.xlu0 %1892
        %1896 = vrot.lane.b32.xlu0 %v1842, 32
        %v1897 = vpop.permute.xlu0 %1896
        %1900 = vrot.lane.b32.xlu0 %v1860, 48
        %v1901 = vpop.permute.xlu0 %1900
        %1904 = vrot.lane.b32.xlu0 %v1851, 64
        %v1905 = vpop.permute.xlu0 %1904
        %1908 = vrot.lane.b32.xlu0 %v1861, 80
        %v1909 = vpop.permute.xlu0 %1908
        %1912 = vrot.lane.b32.xlu0 %v1858, 96
        %v1913 = vpop.permute.xlu0 %1912
        %1916 = vrot.lane.b32.xlu0 %v1862, 112
        %v1917 = vpop.permute.xlu0 %1916
        %v1919 = vsel %vm723, %v1767, %v1865
        %v1920 = vsel %vm725, %v1919, %v1869
        %v1921 = vsel %vm727, %v1920, %v1873
        %v1922 = vsel %vm729, %v1921, %v1877
        %v1923 = vsel %vm731, %v1922, %v1881
        %v1924 = vsel %vm733, %v1923, %v1885
        %v1925 = vsel %vm735, %v1924, %v1889
        %v1926 = vsel %vm723, %v1835, %v1893
        %v1927 = vsel %vm725, %v1926, %v1897
        %v1928 = vsel %vm727, %v1927, %v1901
        %v1929 = vsel %vm729, %v1928, %v1905
        %v1930 = vsel %vm731, %v1929, %v1909
        %v1931 = vsel %vm733, %v1930, %v1913
        %v1932 = vsel %vm735, %v1931, %v1917
        %v1935 = vrot.slane %v1925, 4
        %v1936 = vrot.slane %v1932, 4
        %1939 = vst [vmem:[#allocation3 + $0x20] sm:$0xf0] %v1935
        %1940 = vst [vmem:[#allocation3 + $0x28] sm:$0xf0] %v1936
        %vm1941 = vcmask 1045504
        %v1942 = vrot.slane %v519, 2
        %v1943 = vrot.slane %v520, 2
        %v1944 = vsel %vm1941, %v1942, %v1943
        %v1945 = vrot.slane %v521, 2
        %v1946 = vsel %vm1941, %v1943, %v1945
        %v1947 = vrot.slane %v522, 2
        %v1948 = vrot.slane %v523, 2
        %v1949 = vsel %vm1941, %v1947, %v1948
        %v1950 = vrot.slane %v524, 2
        %v1951 = vsel %vm1941, %v1948, %v1950
        %v1952 = vrot.slane %v525, 2
        %v1953 = vrot.slane %v526, 2
        %v1954 = vsel %vm1941, %v1952, %v1953
        %v1955 = vrot.slane %v527, 2
        %v1956 = vsel %vm1941, %v1953, %v1955
        %v1957 = vrot.slane %v528, 2
        %v1958 = vrot.slane %v529, 2
        %v1959 = vsel %vm1941, %v1957, %v1958
        %v1960 = vrot.slane %v530, 2
        %v1961 = vsel %vm1941, %v1958, %v1960
        %v1970 = vcombine.low %v1944, %v1954
        %v1971 = vcombine.high %v1944, %v1954
        %v1973 = vunpack.c.l.s4 1983009808
        %v1974 = vunpack.c.0.s8 %v1973
        %v1975 = vlaneseq
        %v1976 = vshrl.u32 %v1975, 7
        %v1977 = vsub.s32 %v1974, %v1976
        %v1978 = vrot.slane %v1970, %v1977
        %v1980 = vunpack.c.l.s4 1983009808
        %v1981 = vunpack.c.0.s8 %v1980
        %v1982 = vlaneseq
        %v1983 = vshrl.u32 %v1982, 7
        %v1984 = vsub.s32 %v1981, %v1983
        %v1985 = vrot.slane %v1971, %v1984
        %v1986 = vcombine.low %v1949, %v1959
        %v1987 = vcombine.high %v1949, %v1959
        %v1989 = vunpack.c.l.s4 1983009808
        %v1990 = vunpack.c.0.s8 %v1989
        %v1991 = vlaneseq
        %v1992 = vshrl.u32 %v1991, 7
        %v1993 = vsub.s32 %v1990, %v1992
        %v1994 = vrot.slane %v1986, %v1993
        %v1996 = vunpack.c.l.s4 1983009808
        %v1997 = vunpack.c.0.s8 %v1996
        %v1998 = vlaneseq
        %v1999 = vshrl.u32 %v1998, 7
        %v2000 = vsub.s32 %v1997, %v1999
        %v2001 = vrot.slane %v1987, %v2000
        %v2002 = vcombine.low %v1978, %v1994
        %v2003 = vcombine.high %v1978, %v1994
        %v2005 = vunpack.c.l.s4 1934713408
        %v2006 = vunpack.c.0.s8 %v2005
        %v2007 = vlaneseq
        %v2008 = vshrl.u32 %v2007, 7
        %v2009 = vsub.s32 %v2006, %v2008
        %v2010 = vrot.slane %v2002, %v2009
        %v2012 = vunpack.c.l.s4 1934713408
        %v2013 = vunpack.c.0.s8 %v2012
        %v2014 = vlaneseq
        %v2015 = vshrl.u32 %v2014, 7
        %v2016 = vsub.s32 %v2013, %v2015
        %v2017 = vrot.slane %v2003, %v2016
        %v2018 = vcombine.low %v1985, %v2001
        %v2019 = vcombine.high %v1985, %v2001
        %v2021 = vunpack.c.l.s4 1934713408
        %v2022 = vunpack.c.0.s8 %v2021
        %v2023 = vlaneseq
        %v2024 = vshrl.u32 %v2023, 7
        %v2025 = vsub.s32 %v2022, %v2024
        %v2026 = vrot.slane %v2018, %v2025
        %v2028 = vunpack.c.l.s4 1934713408
        %v2029 = vunpack.c.0.s8 %v2028
        %v2030 = vlaneseq
        %v2031 = vshrl.u32 %v2030, 7
        %v2032 = vsub.s32 %v2029, %v2031
        %v2033 = vrot.slane %v2019, %v2032
        %v2034 = vcombine.high %v2010, 0.0
        %v2035 = vcombine.high %v2017, 0.0
        %v2036 = vcombine.high %v2026, 0.0
        %v2037 = vcombine.high %v2033, 0.0
        %v2038 = vcombine.low %v1946, %v1956
        %v2039 = vcombine.high %v1946, %v1956
        %v2041 = vunpack.c.l.s4 1983009808
        %v2042 = vunpack.c.0.s8 %v2041
        %v2043 = vlaneseq
        %v2044 = vshrl.u32 %v2043, 7
        %v2045 = vsub.s32 %v2042, %v2044
        %v2046 = vrot.slane %v2038, %v2045
        %v2048 = vunpack.c.l.s4 1983009808
        %v2049 = vunpack.c.0.s8 %v2048
        %v2050 = vlaneseq
        %v2051 = vshrl.u32 %v2050, 7
        %v2052 = vsub.s32 %v2049, %v2051
        %v2053 = vrot.slane %v2039, %v2052
        %v2054 = vcombine.low %v1951, %v1961
        %v2055 = vcombine.high %v1951, %v1961
        %v2057 = vunpack.c.l.s4 1983009808
        %v2058 = vunpack.c.0.s8 %v2057
        %v2059 = vlaneseq
        %v2060 = vshrl.u32 %v2059, 7
        %v2061 = vsub.s32 %v2058, %v2060
        %v2062 = vrot.slane %v2054, %v2061
        %v2064 = vunpack.c.l.s4 1983009808
        %v2065 = vunpack.c.0.s8 %v2064
        %v2066 = vlaneseq
        %v2067 = vshrl.u32 %v2066, 7
        %v2068 = vsub.s32 %v2065, %v2067
        %v2069 = vrot.slane %v2055, %v2068
        %v2070 = vcombine.low %v2046, %v2062
        %v2071 = vcombine.high %v2046, %v2062
        %v2073 = vunpack.c.l.s4 1934713408
        %v2074 = vunpack.c.0.s8 %v2073
        %v2075 = vlaneseq
        %v2076 = vshrl.u32 %v2075, 7
        %v2077 = vsub.s32 %v2074, %v2076
        %v2078 = vrot.slane %v2070, %v2077
        %v2080 = vunpack.c.l.s4 1934713408
        %v2081 = vunpack.c.0.s8 %v2080
        %v2082 = vlaneseq
        %v2083 = vshrl.u32 %v2082, 7
        %v2084 = vsub.s32 %v2081, %v2083
        %v2085 = vrot.slane %v2071, %v2084
        %v2086 = vcombine.low %v2053, %v2069
        %v2087 = vcombine.high %v2053, %v2069
        %v2089 = vunpack.c.l.s4 1934713408
        %v2090 = vunpack.c.0.s8 %v2089
        %v2091 = vlaneseq
        %v2092 = vshrl.u32 %v2091, 7
        %v2093 = vsub.s32 %v2090, %v2092
        %v2094 = vrot.slane %v2086, %v2093
        %v2096 = vunpack.c.l.s4 1934713408
        %v2097 = vunpack.c.0.s8 %v2096
        %v2098 = vlaneseq
        %v2099 = vshrl.u32 %v2098, 7
        %v2100 = vsub.s32 %v2097, %v2099
        %v2101 = vrot.slane %v2087, %v2100
        %v2102 = vcombine.high %v2078, 0.0
        %v2103 = vcombine.high %v2085, 0.0
        %v2104 = vcombine.high %v2094, 0.0
        %v2105 = vcombine.high %v2101, 0.0
        %2107 = vrot.lane.b32.xlu0 %v2034, 16
        %v2108 = vpop.permute.xlu0 %2107
        %2111 = vrot.lane.b32.xlu0 %v2017, 32
        %v2112 = vpop.permute.xlu0 %2111
        %2115 = vrot.lane.b32.xlu0 %v2035, 48
        %v2116 = vpop.permute.xlu0 %2115
        %2119 = vrot.lane.b32.xlu0 %v2026, 64
        %v2120 = vpop.permute.xlu0 %2119
        %2123 = vrot.lane.b32.xlu0 %v2036, 80
        %v2124 = vpop.permute.xlu0 %2123
        %2127 = vrot.lane.b32.xlu0 %v2033, 96
        %v2128 = vpop.permute.xlu0 %2127
        %2131 = vrot.lane.b32.xlu0 %v2037, 112
        %v2132 = vpop.permute.xlu0 %2131
        %2135 = vrot.lane.b32.xlu0 %v2102, 16
        %v2136 = vpop.permute.xlu0 %2135
        %2139 = vrot.lane.b32.xlu0 %v2085, 32
        %v2140 = vpop.permute.xlu0 %2139
        %2143 = vrot.lane.b32.xlu0 %v2103, 48
        %v2144 = vpop.permute.xlu0 %2143
        %2147 = vrot.lane.b32.xlu0 %v2094, 64
        %v2148 = vpop.permute.xlu0 %2147
        %2151 = vrot.lane.b32.xlu0 %v2104, 80
        %v2152 = vpop.permute.xlu0 %2151
        %2155 = vrot.lane.b32.xlu0 %v2101, 96
        %v2156 = vpop.permute.xlu0 %2155
        %2159 = vrot.lane.b32.xlu0 %v2105, 112
        %v2160 = vpop.permute.xlu0 %2159
        %v2162 = vsel %vm723, %v2010, %v2108
        %v2163 = vsel %vm725, %v2162, %v2112
        %v2164 = vsel %vm727, %v2163, %v2116
        %v2165 = vsel %vm729, %v2164, %v2120
        %v2166 = vsel %vm731, %v2165, %v2124
        %v2167 = vsel %vm733, %v2166, %v2128
        %v2168 = vsel %vm735, %v2167, %v2132
        %v2169 = vsel %vm723, %v2078, %v2136
        %v2170 = vsel %vm725, %v2169, %v2140
        %v2171 = vsel %vm727, %v2170, %v2144
        %v2172 = vsel %vm729, %v2171, %v2148
        %v2173 = vsel %vm731, %v2172, %v2152
        %v2174 = vsel %vm733, %v2173, %v2156
        %v2175 = vsel %vm735, %v2174, %v2160
        %2176 = vst [vmem:[#allocation3 + $0x30] sm:$0xf] %v2168
        %2177 = vst [vmem:[#allocation3 + $0x38] sm:$0xf] %v2175
        %2178 = vrot.lane.b32.xlu0 %v1944, 127
        %v2179 = vpop.permute.xlu0 %2178
        %2180 = vrot.lane.b32.xlu0 %v1946, 127
        %v2181 = vpop.permute.xlu0 %2180
        %2182 = vrot.lane.b32.xlu0 %v1949, 127
        %v2183 = vpop.permute.xlu0 %2182
        %2184 = vrot.lane.b32.xlu0 %v1951, 127
        %v2185 = vpop.permute.xlu0 %2184
        %2186 = vrot.lane.b32.xlu0 %v1954, 127
        %v2187 = vpop.permute.xlu0 %2186
        %2188 = vrot.lane.b32.xlu0 %v1956, 127
        %v2189 = vpop.permute.xlu0 %2188
        %2190 = vrot.lane.b32.xlu0 %v1959, 127
        %v2191 = vpop.permute.xlu0 %2190
        %2192 = vrot.lane.b32.xlu0 %v1961, 127
        %v2193 = vpop.permute.xlu0 %2192
        %v2202 = vcombine.low %v2179, %v2187
        %v2203 = vcombine.high %v2179, %v2187
        %v2205 = vunpack.c.l.s4 1983009808
        %v2206 = vunpack.c.0.s8 %v2205
        %v2207 = vlaneseq
        %v2208 = vshrl.u32 %v2207, 7
        %v2209 = vsub.s32 %v2206, %v2208
        %v2210 = vrot.slane %v2202, %v2209
        %v2212 = vunpack.c.l.s4 1983009808
        %v2213 = vunpack.c.0.s8 %v2212
        %v2214 = vlaneseq
        %v2215 = vshrl.u32 %v2214, 7
        %v2216 = vsub.s32 %v2213, %v2215
        %v2217 = vrot.slane %v2203, %v2216
        %v2218 = vcombine.low %v2183, %v2191
        %v2219 = vcombine.high %v2183, %v2191
        %v2221 = vunpack.c.l.s4 1983009808
        %v2222 = vunpack.c.0.s8 %v2221
        %v2223 = vlaneseq
        %v2224 = vshrl.u32 %v2223, 7
        %v2225 = vsub.s32 %v2222, %v2224
        %v2226 = vrot.slane %v2218, %v2225
        %v2228 = vunpack.c.l.s4 1983009808
        %v2229 = vunpack.c.0.s8 %v2228
        %v2230 = vlaneseq
        %v2231 = vshrl.u32 %v2230, 7
        %v2232 = vsub.s32 %v2229, %v2231
        %v2233 = vrot.slane %v2219, %v2232
        %v2234 = vcombine.low %v2210, %v2226
        %v2235 = vcombine.high %v2210, %v2226
        %v2237 = vunpack.c.l.s4 1934713408
        %v2238 = vunpack.c.0.s8 %v2237
        %v2239 = vlaneseq
        %v2240 = vshrl.u32 %v2239, 7
        %v2241 = vsub.s32 %v2238, %v2240
        %v2242 = vrot.slane %v2234, %v2241
        %v2244 = vunpack.c.l.s4 1934713408
        %v2245 = vunpack.c.0.s8 %v2244
        %v2246 = vlaneseq
        %v2247 = vshrl.u32 %v2246, 7
        %v2248 = vsub.s32 %v2245, %v2247
        %v2249 = vrot.slane %v2235, %v2248
        %v2250 = vcombine.low %v2217, %v2233
        %v2251 = vcombine.high %v2217, %v2233
        %v2253 = vunpack.c.l.s4 1934713408
        %v2254 = vunpack.c.0.s8 %v2253
        %v2255 = vlaneseq
        %v2256 = vshrl.u32 %v2255, 7
        %v2257 = vsub.s32 %v2254, %v2256
        %v2258 = vrot.slane %v2250, %v2257
        %v2260 = vunpack.c.l.s4 1934713408
        %v2261 = vunpack.c.0.s8 %v2260
        %v2262 = vlaneseq
        %v2263 = vshrl.u32 %v2262, 7
        %v2264 = vsub.s32 %v2261, %v2263
        %v2265 = vrot.slane %v2251, %v2264
        %v2266 = vcombine.high %v2242, 0.0
        %v2267 = vcombine.high %v2249, 0.0
        %v2268 = vcombine.high %v2258, 0.0
        %v2269 = vcombine.high %v2265, 0.0
        %v2270 = vcombine.low %v2181, %v2189
        %v2271 = vcombine.high %v2181, %v2189
        %v2273 = vunpack.c.l.s4 1983009808
        %v2274 = vunpack.c.0.s8 %v2273
        %v2275 = vlaneseq
        %v2276 = vshrl.u32 %v2275, 7
        %v2277 = vsub.s32 %v2274, %v2276
        %v2278 = vrot.slane %v2270, %v2277
        %v2280 = vunpack.c.l.s4 1983009808
        %v2281 = vunpack.c.0.s8 %v2280
        %v2282 = vlaneseq
        %v2283 = vshrl.u32 %v2282, 7
        %v2284 = vsub.s32 %v2281, %v2283
        %v2285 = vrot.slane %v2271, %v2284
        %v2286 = vcombine.low %v2185, %v2193
        %v2287 = vcombine.high %v2185, %v2193
        %v2289 = vunpack.c.l.s4 1983009808
        %v2290 = vunpack.c.0.s8 %v2289
        %v2291 = vlaneseq
        %v2292 = vshrl.u32 %v2291, 7
        %v2293 = vsub.s32 %v2290, %v2292
        %v2294 = vrot.slane %v2286, %v2293
        %v2296 = vunpack.c.l.s4 1983009808
        %v2297 = vunpack.c.0.s8 %v2296
        %v2298 = vlaneseq
        %v2299 = vshrl.u32 %v2298, 7
        %v2300 = vsub.s32 %v2297, %v2299
        %v2301 = vrot.slane %v2287, %v2300
        %v2302 = vcombine.low %v2278, %v2294
        %v2303 = vcombine.high %v2278, %v2294
        %v2305 = vunpack.c.l.s4 1934713408
        %v2306 = vunpack.c.0.s8 %v2305
        %v2307 = vlaneseq
        %v2308 = vshrl.u32 %v2307, 7
        %v2309 = vsub.s32 %v2306, %v2308
        %v2310 = vrot.slane %v2302, %v2309
        %v2312 = vunpack.c.l.s4 1934713408
        %v2313 = vunpack.c.0.s8 %v2312
        %v2314 = vlaneseq
        %v2315 = vshrl.u32 %v2314, 7
        %v2316 = vsub.s32 %v2313, %v2315
        %v2317 = vrot.slane %v2303, %v2316
        %v2318 = vcombine.low %v2285, %v2301
        %v2319 = vcombine.high %v2285, %v2301
        %v2321 = vunpack.c.l.s4 1934713408
        %v2322 = vunpack.c.0.s8 %v2321
        %v2323 = vlaneseq
        %v2324 = vshrl.u32 %v2323, 7
        %v2325 = vsub.s32 %v2322, %v2324
        %v2326 = vrot.slane %v2318, %v2325
        %v2328 = vunpack.c.l.s4 1934713408
        %v2329 = vunpack.c.0.s8 %v2328
        %v2330 = vlaneseq
        %v2331 = vshrl.u32 %v2330, 7
        %v2332 = vsub.s32 %v2329, %v2331
        %v2333 = vrot.slane %v2319, %v2332
        %v2334 = vcombine.high %v2310, 0.0
        %v2335 = vcombine.high %v2317, 0.0
        %v2336 = vcombine.high %v2326, 0.0
        %v2337 = vcombine.high %v2333, 0.0
        %2339 = vrot.lane.b32.xlu0 %v2266, 16
        %v2340 = vpop.permute.xlu0 %2339
        %2343 = vrot.lane.b32.xlu0 %v2249, 32
        %v2344 = vpop.permute.xlu0 %2343
        %2347 = vrot.lane.b32.xlu0 %v2267, 48
        %v2348 = vpop.permute.xlu0 %2347
        %2351 = vrot.lane.b32.xlu0 %v2258, 64
        %v2352 = vpop.permute.xlu0 %2351
        %2355 = vrot.lane.b32.xlu0 %v2268, 80
        %v2356 = vpop.permute.xlu0 %2355
        %2359 = vrot.lane.b32.xlu0 %v2265, 96
        %v2360 = vpop.permute.xlu0 %2359
        %2363 = vrot.lane.b32.xlu0 %v2269, 112
        %v2364 = vpop.permute.xlu0 %2363
        %2367 = vrot.lane.b32.xlu0 %v2334, 16
        %v2368 = vpop.permute.xlu0 %2367
        %2371 = vrot.lane.b32.xlu0 %v2317, 32
        %v2372 = vpop.permute.xlu0 %2371
        %2375 = vrot.lane.b32.xlu0 %v2335, 48
        %v2376 = vpop.permute.xlu0 %2375
        %2379 = vrot.lane.b32.xlu0 %v2326, 64
        %v2380 = vpop.permute.xlu0 %2379
        %2383 = vrot.lane.b32.xlu0 %v2336, 80
        %v2384 = vpop.permute.xlu0 %2383
        %2387 = vrot.lane.b32.xlu0 %v2333, 96
        %v2388 = vpop.permute.xlu0 %2387
        %2391 = vrot.lane.b32.xlu0 %v2337, 112
        %v2392 = vpop.permute.xlu0 %2391
        %v2394 = vsel %vm723, %v2242, %v2340
        %v2395 = vsel %vm725, %v2394, %v2344
        %v2396 = vsel %vm727, %v2395, %v2348
        %v2397 = vsel %vm729, %v2396, %v2352
        %v2398 = vsel %vm731, %v2397, %v2356
        %v2399 = vsel %vm733, %v2398, %v2360
        %v2400 = vsel %vm735, %v2399, %v2364
        %v2401 = vsel %vm723, %v2310, %v2368
        %v2402 = vsel %vm725, %v2401, %v2372
        %v2403 = vsel %vm727, %v2402, %v2376
        %v2404 = vsel %vm729, %v2403, %v2380
        %v2405 = vsel %vm731, %v2404, %v2384
        %v2406 = vsel %vm733, %v2405, %v2388
        %v2407 = vsel %vm735, %v2406, %v2392
        %v2410 = vrot.slane %v2400, 4
        %v2411 = vrot.slane %v2407, 4
        %2414 = vst [vmem:[#allocation3 + $0x30] sm:$0xf0] %v2410
        %2415 = vst [vmem:[#allocation3 + $0x38] sm:$0xf0] %v2411
        %2416 = vrot.lane.b32.xlu0 %v1944, 126
        %v2417 = vpop.permute.xlu0 %2416
        %2418 = vrot.lane.b32.xlu0 %v1946, 126
        %v2419 = vpop.permute.xlu0 %2418
        %2420 = vrot.lane.b32.xlu0 %v1949, 126
        %v2421 = vpop.permute.xlu0 %2420
        %2422 = vrot.lane.b32.xlu0 %v1951, 126
        %v2423 = vpop.permute.xlu0 %2422
        %2424 = vrot.lane.b32.xlu0 %v1954, 126
        %v2425 = vpop.permute.xlu0 %2424
        %2426 = vrot.lane.b32.xlu0 %v1956, 126
        %v2427 = vpop.permute.xlu0 %2426
        %2428 = vrot.lane.b32.xlu0 %v1959, 126
        %v2429 = vpop.permute.xlu0 %2428
        %2430 = vrot.lane.b32.xlu0 %v1961, 126
        %v2431 = vpop.permute.xlu0 %2430
        %v2440 = vcombine.low %v2417, %v2425
        %v2441 = vcombine.high %v2417, %v2425
        %v2443 = vunpack.c.l.s4 1983009808
        %v2444 = vunpack.c.0.s8 %v2443
        %v2445 = vlaneseq
        %v2446 = vshrl.u32 %v2445, 7
        %v2447 = vsub.s32 %v2444, %v2446
        %v2448 = vrot.slane %v2440, %v2447
        %v2450 = vunpack.c.l.s4 1983009808
        %v2451 = vunpack.c.0.s8 %v2450
        %v2452 = vlaneseq
        %v2453 = vshrl.u32 %v2452, 7
        %v2454 = vsub.s32 %v2451, %v2453
        %v2455 = vrot.slane %v2441, %v2454
        %v2456 = vcombine.low %v2421, %v2429
        %v2457 = vcombine.high %v2421, %v2429
        %v2459 = vunpack.c.l.s4 1983009808
        %v2460 = vunpack.c.0.s8 %v2459
        %v2461 = vlaneseq
        %v2462 = vshrl.u32 %v2461, 7
        %v2463 = vsub.s32 %v2460, %v2462
        %v2464 = vrot.slane %v2456, %v2463
        %v2466 = vunpack.c.l.s4 1983009808
        %v2467 = vunpack.c.0.s8 %v2466
        %v2468 = vlaneseq
        %v2469 = vshrl.u32 %v2468, 7
        %v2470 = vsub.s32 %v2467, %v2469
        %v2471 = vrot.slane %v2457, %v2470
        %v2472 = vcombine.low %v2448, %v2464
        %v2473 = vcombine.high %v2448, %v2464
        %v2475 = vunpack.c.l.s4 1934713408
        %v2476 = vunpack.c.0.s8 %v2475
        %v2477 = vlaneseq
        %v2478 = vshrl.u32 %v2477, 7
        %v2479 = vsub.s32 %v2476, %v2478
        %v2480 = vrot.slane %v2472, %v2479
        %v2482 = vunpack.c.l.s4 1934713408
        %v2483 = vunpack.c.0.s8 %v2482
        %v2484 = vlaneseq
        %v2485 = vshrl.u32 %v2484, 7
        %v2486 = vsub.s32 %v2483, %v2485
        %v2487 = vrot.slane %v2473, %v2486
        %v2488 = vcombine.low %v2455, %v2471
        %v2489 = vcombine.high %v2455, %v2471
        %v2491 = vunpack.c.l.s4 1934713408
        %v2492 = vunpack.c.0.s8 %v2491
        %v2493 = vlaneseq
        %v2494 = vshrl.u32 %v2493, 7
        %v2495 = vsub.s32 %v2492, %v2494
        %v2496 = vrot.slane %v2488, %v2495
        %v2498 = vunpack.c.l.s4 1934713408
        %v2499 = vunpack.c.0.s8 %v2498
        %v2500 = vlaneseq
        %v2501 = vshrl.u32 %v2500, 7
        %v2502 = vsub.s32 %v2499, %v2501
        %v2503 = vrot.slane %v2489, %v2502
        %v2504 = vcombine.high %v2480, 0.0
        %v2505 = vcombine.high %v2487, 0.0
        %v2506 = vcombine.high %v2496, 0.0
        %v2507 = vcombine.high %v2503, 0.0
        %v2508 = vcombine.low %v2419, %v2427
        %v2509 = vcombine.high %v2419, %v2427
        %v2511 = vunpack.c.l.s4 1983009808
        %v2512 = vunpack.c.0.s8 %v2511
        %v2513 = vlaneseq
        %v2514 = vshrl.u32 %v2513, 7
        %v2515 = vsub.s32 %v2512, %v2514
        %v2516 = vrot.slane %v2508, %v2515
        %v2518 = vunpack.c.l.s4 1983009808
        %v2519 = vunpack.c.0.s8 %v2518
        %v2520 = vlaneseq
        %v2521 = vshrl.u32 %v2520, 7
        %v2522 = vsub.s32 %v2519, %v2521
        %v2523 = vrot.slane %v2509, %v2522
        %v2524 = vcombine.low %v2423, %v2431
        %v2525 = vcombine.high %v2423, %v2431
        %v2527 = vunpack.c.l.s4 1983009808
        %v2528 = vunpack.c.0.s8 %v2527
        %v2529 = vlaneseq
        %v2530 = vshrl.u32 %v2529, 7
        %v2531 = vsub.s32 %v2528, %v2530
        %v2532 = vrot.slane %v2524, %v2531
        %v2534 = vunpack.c.l.s4 1983009808
        %v2535 = vunpack.c.0.s8 %v2534
        %v2536 = vlaneseq
        %v2537 = vshrl.u32 %v2536, 7
        %v2538 = vsub.s32 %v2535, %v2537
        %v2539 = vrot.slane %v2525, %v2538
        %v2540 = vcombine.low %v2516, %v2532
        %v2541 = vcombine.high %v2516, %v2532
        %v2543 = vunpack.c.l.s4 1934713408
        %v2544 = vunpack.c.0.s8 %v2543
        %v2545 = vlaneseq
        %v2546 = vshrl.u32 %v2545, 7
        %v2547 = vsub.s32 %v2544, %v2546
        %v2548 = vrot.slane %v2540, %v2547
        %v2550 = vunpack.c.l.s4 1934713408
        %v2551 = vunpack.c.0.s8 %v2550
        %v2552 = vlaneseq
        %v2553 = vshrl.u32 %v2552, 7
        %v2554 = vsub.s32 %v2551, %v2553
        %v2555 = vrot.slane %v2541, %v2554
        %v2556 = vcombine.low %v2523, %v2539
        %v2557 = vcombine.high %v2523, %v2539
        %v2559 = vunpack.c.l.s4 1934713408
        %v2560 = vunpack.c.0.s8 %v2559
        %v2561 = vlaneseq
        %v2562 = vshrl.u32 %v2561, 7
        %v2563 = vsub.s32 %v2560, %v2562
        %v2564 = vrot.slane %v2556, %v2563
        %v2566 = vunpack.c.l.s4 1934713408
        %v2567 = vunpack.c.0.s8 %v2566
        %v2568 = vlaneseq
        %v2569 = vshrl.u32 %v2568, 7
        %v2570 = vsub.s32 %v2567, %v2569
        %v2571 = vrot.slane %v2557, %v2570
        %v2572 = vcombine.high %v2548, 0.0
        %v2573 = vcombine.high %v2555, 0.0
        %v2574 = vcombine.high %v2564, 0.0
        %v2575 = vcombine.high %v2571, 0.0
        %2577 = vrot.lane.b32.xlu0 %v2504, 16
        %v2578 = vpop.permute.xlu0 %2577
        %2581 = vrot.lane.b32.xlu0 %v2487, 32
        %v2582 = vpop.permute.xlu0 %2581
        %2585 = vrot.lane.b32.xlu0 %v2505, 48
        %v2586 = vpop.permute.xlu0 %2585
        %2589 = vrot.lane.b32.xlu0 %v2496, 64
        %v2590 = vpop.permute.xlu0 %2589
        %2593 = vrot.lane.b32.xlu0 %v2506, 80
        %v2594 = vpop.permute.xlu0 %2593
        %2597 = vrot.lane.b32.xlu0 %v2503, 96
        %v2598 = vpop.permute.xlu0 %2597
        %2601 = vrot.lane.b32.xlu0 %v2507, 112
        %v2602 = vpop.permute.xlu0 %2601
        %2605 = vrot.lane.b32.xlu0 %v2572, 16
        %v2606 = vpop.permute.xlu0 %2605
        %2609 = vrot.lane.b32.xlu0 %v2555, 32
        %v2610 = vpop.permute.xlu0 %2609
        %2613 = vrot.lane.b32.xlu0 %v2573, 48
        %v2614 = vpop.permute.xlu0 %2613
        %2617 = vrot.lane.b32.xlu0 %v2564, 64
        %v2618 = vpop.permute.xlu0 %2617
        %2621 = vrot.lane.b32.xlu0 %v2574, 80
        %v2622 = vpop.permute.xlu0 %2621
        %2625 = vrot.lane.b32.xlu0 %v2571, 96
        %v2626 = vpop.permute.xlu0 %2625
        %2629 = vrot.lane.b32.xlu0 %v2575, 112
        %v2630 = vpop.permute.xlu0 %2629
        %v2632 = vsel %vm723, %v2480, %v2578
        %v2633 = vsel %vm725, %v2632, %v2582
        %v2634 = vsel %vm727, %v2633, %v2586
        %v2635 = vsel %vm729, %v2634, %v2590
        %v2636 = vsel %vm731, %v2635, %v2594
        %v2637 = vsel %vm733, %v2636, %v2598
        %v2638 = vsel %vm735, %v2637, %v2602
        %v2639 = vsel %vm723, %v2548, %v2606
        %v2640 = vsel %vm725, %v2639, %v2610
        %v2641 = vsel %vm727, %v2640, %v2614
        %v2642 = vsel %vm729, %v2641, %v2618
        %v2643 = vsel %vm731, %v2642, %v2622
        %v2644 = vsel %vm733, %v2643, %v2626
        %v2645 = vsel %vm735, %v2644, %v2630
        %2646 = vst [vmem:[#allocation3 + $0x40] sm:$0xf] %v2638
        %2647 = vst [vmem:[#allocation3 + $0x48] sm:$0xf] %v2645
        %v2648 = vld [vmem:[#allocation6] sm:$0xff]
        %v2649 = vld [vmem:[#allocation3] sm:$0xff]
        %v2650 = vld [vmem:[#allocation3 + $0x8] sm:$0xff]
        %v2651 = vld [vmem:[#allocation3 + $0x10] sm:$0xff]
        %v2652 = vld [vmem:[#allocation3 + $0x18] sm:$0xff]
        %v2653 = vld [vmem:[#allocation3 + $0x20] sm:$0xff]
        %v2654 = vld [vmem:[#allocation3 + $0x28] sm:$0xff]
        %v2655 = vld [vmem:[#allocation3 + $0x30] sm:$0xff]
        %v2656 = vld [vmem:[#allocation3 + $0x38] sm:$0xff]
        %v2657 = vld [vmem:[#allocation3 + $0x40] sm:$0xf]
        %v2658 = vld [vmem:[#allocation3 + $0x48] sm:$0xf]
        %v2659 = vld [vmem:[%s2] sm:$0xff]
        %2661 = vset.pattern.permute.xlu0 0
        %2662 = vperm.xlu0 %2661, %v2659
        %v2663 = vpop.permute.xlu0 %2662
        %vm2665 = vcmask 293888
        %v2667 = vsel %vm2665, %v2648, 0
        %vm2669 = vcmask 1043456
        %v2671 = vsel %vm2669, %v2657, 0
        %v2674 = vsel %vm2669, %v2658, 0
        %2676 = vmatprep.subr.mxu0 0.0
        %2677 = vmatpush1.msra.mxu0 0.0
        %2678 = vmatprep.subr.mxu0 0.0
        %2679 = vmatpush1.msra.mxu0 0.0
        %2680 = vmatprep.subr.mxu0 0.0
        %2681 = vmatpush1.msra.mxu0 0.0
        %2682 = vmatprep.subr.mxu0 0.0
        %2683 = vmatpush1.msra.mxu0 0.0
        %2684 = vmatprep.subr.mxu0 0.0
        %2685 = vmatpush1.msra.mxu0 0.0
        %2686 = vmatprep.subr.mxu0 0.0
        %2687 = vmatpush1.msra.mxu0 0.0
        %2688 = vmatprep.subr.mxu0 0.0
        %2689 = vmatpush1.msra.mxu0 0.0
        %2690 = vmatprep.subr.mxu0 0.0
        %2691 = vmatpush1.msra.mxu0 0.0
        %2692 = vmatprep.subr.mxu0 0.0
        %2693 = vmatpush1.msra.mxu0 0.0
        %2694 = vmatprep.subr.mxu0 0.0
        %2695 = vmatpush1.msra.mxu0 0.0
        %2696 = vmatprep.subr.mxu0 0.0
        %2697 = vmatpush1.msra.mxu0 0.0
        %2698 = vmatprep.subr.mxu0 %v2674
        %2699 = vmatpush1.msra.mxu0 %v2671
        %2700 = vmatprep.subr.mxu0 %v2656
        %2701 = vmatpush1.msra.mxu0 %v2655
        %2702 = vmatprep.subr.mxu0 %v2654
        %2703 = vmatpush1.msra.mxu0 %v2653
        %2704 = vmatprep.subr.mxu0 %v2652
        %2705 = vmatpush1.msra.mxu0 %v2651
        %2706 = vmatprep.subr.mxu0 %v2650
        %2707 = vmatpush1.msra.mxu0 %v2649
        %2708 = vmatprep.subr.mxu0 0.0
        %2709 = vmatpush2.msra.mxu0 0.0
        %2710 = vmatprep.subr.mxu0 0.0
        %2711 = vmatpush2.msra.mxu0 0.0
        %2712 = vmatprep.subr.mxu0 0.0
        %2713 = vmatpush2.msra.mxu0 0.0
        %2714 = vmatprep.subr.mxu0 0.0
        %2715 = vmatpush2.msra.mxu0 0.0
        %2716 = vmatprep.subr.mxu0 0.0
        %2717 = vmatpush2.msra.mxu0 0.0
        %2718 = vmatprep.subr.mxu0 0.0
        %2719 = vmatpush2.msra.mxu0 0.0
        %2720 = vmatprep.subr.mxu0 0.0
        %2721 = vmatpush2.msra.mxu0 0.0
        %2722 = vmatprep.subr.mxu0 0.0
        %2723 = vmatpush2.msra.mxu0 0.0
        %2724 = vmatprep.subr.mxu0 0.0
        %2725 = vmatpush2.msra.mxu0 0.0
        %2726 = vmatprep.subr.mxu0 0.0
        %2727 = vmatpush2.msra.mxu0 0.0
        %2728 = vmatprep.subr.mxu0 0.0
        %2729 = vmatpush2.msra.mxu0 0.0
        %2730 = vmatprep.subr.mxu0 0.0
        %2731 = vmatpush2.msra.mxu0 0.0
        %2732 = vmatprep.subr.mxu0 0.0
        %2733 = vmatpush2.msra.mxu0 0.0
        %2734 = vmatprep.subr.mxu0 0.0
        %2735 = vmatpush2.msra.mxu0 0.0
        %2736 = vmatprep.subr.mxu0 0.0
        %2737 = vmatpush2.msra.mxu0 0.0
        %2738 = vmatprep.subr.mxu0 0.0
        %2739 = vmatpush2.msra.mxu0 0.0
        %2740 = vmatprep.mubr.f32.mxu0 0.0
        %2741 = vmatmul.mubr.f32.gmra.mxu0 %v2667
        %v2742 = vpop.f32.mrf.mxu0
        %v2743 = vadd.f32 %v2663, %v2742
        %v2744 = vpop.f32.mrf.mxu0
        %v2745 = vadd.f32 %v2663, %v2744
        %2746 = vdwg.mxu0
        %v2747 = vmax.f32 %v2743, 0.0
        %v2748 = vmax.f32 %v2745, 0.0
        %2750 = vrot.lane.b32.xlu0 %v2747, 112
        %v2751 = vpop.permute.xlu0 %2750
        %2753 = vrot.lane.b32.xlu0 %v2747, 96
        %v2754 = vpop.permute.xlu0 %2753
        %2756 = vrot.lane.b32.xlu0 %v2747, 80
        %v2757 = vpop.permute.xlu0 %2756
        %2759 = vrot.lane.b32.xlu0 %v2747, 64
        %v2760 = vpop.permute.xlu0 %2759
        %2762 = vrot.lane.b32.xlu0 %v2747, 48
        %v2763 = vpop.permute.xlu0 %2762
        %2765 = vrot.lane.b32.xlu0 %v2747, 32
        %v2766 = vpop.permute.xlu0 %2765
        %2768 = vrot.lane.b32.xlu0 %v2747, 16
        %v2769 = vpop.permute.xlu0 %2768
        %2772 = vrot.lane.b32.xlu0 %v2748, 112
        %v2773 = vpop.permute.xlu0 %2772
        %2775 = vrot.lane.b32.xlu0 %v2748, 96
        %v2776 = vpop.permute.xlu0 %2775
        %2778 = vrot.lane.b32.xlu0 %v2748, 80
        %v2779 = vpop.permute.xlu0 %2778
        %2781 = vrot.lane.b32.xlu0 %v2748, 64
        %v2782 = vpop.permute.xlu0 %2781
        %2784 = vrot.lane.b32.xlu0 %v2748, 48
        %v2785 = vpop.permute.xlu0 %2784
        %2787 = vrot.lane.b32.xlu0 %v2748, 32
        %v2788 = vpop.permute.xlu0 %2787
        %2790 = vrot.lane.b32.xlu0 %v2748, 16
        %v2791 = vpop.permute.xlu0 %2790
        %v2793 = vcombine.low %v2747, %v2754
        %v2794 = vcombine.high %v2747, %v2754
        %v2796 = vunpack.c.l.s4 1983009808
        %v2797 = vunpack.c.0.s8 %v2796
        %v2798 = vlaneseq
        %v2799 = vshrl.u32 %v2798, 7
        %v2800 = vsub.s32 %v2797, %v2799
        %v2801 = vrot.slane %v2793, %v2800
        %v2803 = vunpack.c.l.s4 1983009808
        %v2804 = vunpack.c.0.s8 %v2803
        %v2805 = vlaneseq
        %v2806 = vshrl.u32 %v2805, 7
        %v2807 = vsub.s32 %v2804, %v2806
        %v2808 = vrot.slane %v2794, %v2807
        %v2809 = vcombine.low %v2751, %v2757
        %v2810 = vcombine.high %v2751, %v2757
        %v2812 = vunpack.c.l.s4 1983009808
        %v2813 = vunpack.c.0.s8 %v2812
        %v2814 = vlaneseq
        %v2815 = vshrl.u32 %v2814, 7
        %v2816 = vsub.s32 %v2813, %v2815
        %v2817 = vrot.slane %v2809, %v2816
        %v2819 = vunpack.c.l.s4 1983009808
        %v2820 = vunpack.c.0.s8 %v2819
        %v2821 = vlaneseq
        %v2822 = vshrl.u32 %v2821, 7
        %v2823 = vsub.s32 %v2820, %v2822
        %v2824 = vrot.slane %v2810, %v2823
        %v2825 = vcombine.low %v2760, %v2766
        %v2826 = vcombine.high %v2760, %v2766
        %v2828 = vunpack.c.l.s4 1983009808
        %v2829 = vunpack.c.0.s8 %v2828
        %v2830 = vlaneseq
        %v2831 = vshrl.u32 %v2830, 7
        %v2832 = vsub.s32 %v2829, %v2831
        %v2833 = vrot.slane %v2825, %v2832
        %v2835 = vunpack.c.l.s4 1983009808
        %v2836 = vunpack.c.0.s8 %v2835
        %v2837 = vlaneseq
        %v2838 = vshrl.u32 %v2837, 7
        %v2839 = vsub.s32 %v2836, %v2838
        %v2840 = vrot.slane %v2826, %v2839
        %v2841 = vcombine.low %v2763, %v2769
        %v2842 = vcombine.high %v2763, %v2769
        %v2844 = vunpack.c.l.s4 1983009808
        %v2845 = vunpack.c.0.s8 %v2844
        %v2846 = vlaneseq
        %v2847 = vshrl.u32 %v2846, 7
        %v2848 = vsub.s32 %v2845, %v2847
        %v2849 = vrot.slane %v2841, %v2848
        %v2851 = vunpack.c.l.s4 1983009808
        %v2852 = vunpack.c.0.s8 %v2851
        %v2853 = vlaneseq
        %v2854 = vshrl.u32 %v2853, 7
        %v2855 = vsub.s32 %v2852, %v2854
        %v2856 = vrot.slane %v2842, %v2855
        %v2857 = vcombine.low %v2801, %v2817
        %v2858 = vcombine.high %v2801, %v2817
        %v2860 = vunpack.c.l.s4 1934713408
        %v2861 = vunpack.c.0.s8 %v2860
        %v2862 = vlaneseq
        %v2863 = vshrl.u32 %v2862, 7
        %v2864 = vsub.s32 %v2861, %v2863
        %v2865 = vrot.slane %v2857, %v2864
        %v2867 = vunpack.c.l.s4 1934713408
        %v2868 = vunpack.c.0.s8 %v2867
        %v2869 = vlaneseq
        %v2870 = vshrl.u32 %v2869, 7
        %v2871 = vsub.s32 %v2868, %v2870
        %v2872 = vrot.slane %v2858, %v2871
        %v2873 = vcombine.low %v2808, %v2824
        %v2874 = vcombine.high %v2808, %v2824
        %v2876 = vunpack.c.l.s4 1934713408
        %v2877 = vunpack.c.0.s8 %v2876
        %v2878 = vlaneseq
        %v2879 = vshrl.u32 %v2878, 7
        %v2880 = vsub.s32 %v2877, %v2879
        %v2881 = vrot.slane %v2873, %v2880
        %v2883 = vunpack.c.l.s4 1934713408
        %v2884 = vunpack.c.0.s8 %v2883
        %v2885 = vlaneseq
        %v2886 = vshrl.u32 %v2885, 7
        %v2887 = vsub.s32 %v2884, %v2886
        %v2888 = vrot.slane %v2874, %v2887
        %v2889 = vcombine.low %v2833, %v2849
        %v2890 = vcombine.high %v2833, %v2849
        %v2892 = vunpack.c.l.s4 1934713408
        %v2893 = vunpack.c.0.s8 %v2892
        %v2894 = vlaneseq
        %v2895 = vshrl.u32 %v2894, 7
        %v2896 = vsub.s32 %v2893, %v2895
        %v2897 = vrot.slane %v2889, %v2896
        %v2899 = vunpack.c.l.s4 1934713408
        %v2900 = vunpack.c.0.s8 %v2899
        %v2901 = vlaneseq
        %v2902 = vshrl.u32 %v2901, 7
        %v2903 = vsub.s32 %v2900, %v2902
        %v2904 = vrot.slane %v2890, %v2903
        %v2905 = vcombine.low %v2840, %v2856
        %v2906 = vcombine.high %v2840, %v2856
        %v2908 = vunpack.c.l.s4 1934713408
        %v2909 = vunpack.c.0.s8 %v2908
        %v2910 = vlaneseq
        %v2911 = vshrl.u32 %v2910, 7
        %v2912 = vsub.s32 %v2909, %v2911
        %v2913 = vrot.slane %v2905, %v2912
        %v2915 = vunpack.c.l.s4 1934713408
        %v2916 = vunpack.c.0.s8 %v2915
        %v2917 = vlaneseq
        %v2918 = vshrl.u32 %v2917, 7
        %v2919 = vsub.s32 %v2916, %v2918
        %v2920 = vrot.slane %v2906, %v2919
        %v2921 = vcombine.low %v2865, %v2897
        %v2922 = vcombine.high %v2865, %v2897
        %v2923 = vcombine.low %v2872, %v2904
        %v2924 = vcombine.high %v2872, %v2904
        %v2925 = vcombine.low %v2881, %v2913
        %v2926 = vcombine.high %v2881, %v2913
        %v2927 = vcombine.low %v2888, %v2920
        %v2928 = vcombine.high %v2888, %v2920
        %v2929 = vcombine.low %v2748, %v2776
        %v2930 = vcombine.high %v2748, %v2776
        %v2932 = vunpack.c.l.s4 1983009808
        %v2933 = vunpack.c.0.s8 %v2932
        %v2934 = vlaneseq
        %v2935 = vshrl.u32 %v2934, 7
        %v2936 = vsub.s32 %v2933, %v2935
        %v2937 = vrot.slane %v2929, %v2936
        %v2939 = vunpack.c.l.s4 1983009808
        %v2940 = vunpack.c.0.s8 %v2939
        %v2941 = vlaneseq
        %v2942 = vshrl.u32 %v2941, 7
        %v2943 = vsub.s32 %v2940, %v2942
        %v2944 = vrot.slane %v2930, %v2943
        %v2945 = vcombine.low %v2773, %v2779
        %v2946 = vcombine.high %v2773, %v2779
        %v2948 = vunpack.c.l.s4 1983009808
        %v2949 = vunpack.c.0.s8 %v2948
        %v2950 = vlaneseq
        %v2951 = vshrl.u32 %v2950, 7
        %v2952 = vsub.s32 %v2949, %v2951
        %v2953 = vrot.slane %v2945, %v2952
        %v2955 = vunpack.c.l.s4 1983009808
        %v2956 = vunpack.c.0.s8 %v2955
        %v2957 = vlaneseq
        %v2958 = vshrl.u32 %v2957, 7
        %v2959 = vsub.s32 %v2956, %v2958
        %v2960 = vrot.slane %v2946, %v2959
        %v2961 = vcombine.low %v2782, %v2788
        %v2962 = vcombine.high %v2782, %v2788
        %v2964 = vunpack.c.l.s4 1983009808
        %v2965 = vunpack.c.0.s8 %v2964
        %v2966 = vlaneseq
        %v2967 = vshrl.u32 %v2966, 7
        %v2968 = vsub.s32 %v2965, %v2967
        %v2969 = vrot.slane %v2961, %v2968
        %v2971 = vunpack.c.l.s4 1983009808
        %v2972 = vunpack.c.0.s8 %v2971
        %v2973 = vlaneseq
        %v2974 = vshrl.u32 %v2973, 7
        %v2975 = vsub.s32 %v2972, %v2974
        %v2976 = vrot.slane %v2962, %v2975
        %v2977 = vcombine.low %v2785, %v2791
        %v2978 = vcombine.high %v2785, %v2791
        %v2980 = vunpack.c.l.s4 1983009808
        %v2981 = vunpack.c.0.s8 %v2980
        %v2982 = vlaneseq
        %v2983 = vshrl.u32 %v2982, 7
        %v2984 = vsub.s32 %v2981, %v2983
        %v2985 = vrot.slane %v2977, %v2984
        %v2987 = vunpack.c.l.s4 1983009808
        %v2988 = vunpack.c.0.s8 %v2987
        %v2989 = vlaneseq
        %v2990 = vshrl.u32 %v2989, 7
        %v2991 = vsub.s32 %v2988, %v2990
        %v2992 = vrot.slane %v2978, %v2991
        %v2993 = vcombine.low %v2937, %v2953
        %v2994 = vcombine.high %v2937, %v2953
        %v2996 = vunpack.c.l.s4 1934713408
        %v2997 = vunpack.c.0.s8 %v2996
        %v2998 = vlaneseq
        %v2999 = vshrl.u32 %v2998, 7
        %v3000 = vsub.s32 %v2997, %v2999
        %v3001 = vrot.slane %v2993, %v3000
        %v3003 = vunpack.c.l.s4 1934713408
        %v3004 = vunpack.c.0.s8 %v3003
        %v3005 = vlaneseq
        %v3006 = vshrl.u32 %v3005, 7
        %v3007 = vsub.s32 %v3004, %v3006
        %v3008 = vrot.slane %v2994, %v3007
        %v3009 = vcombine.low %v2944, %v2960
        %v3010 = vcombine.high %v2944, %v2960
        %v3012 = vunpack.c.l.s4 1934713408
        %v3013 = vunpack.c.0.s8 %v3012
        %v3014 = vlaneseq
        %v3015 = vshrl.u32 %v3014, 7
        %v3016 = vsub.s32 %v3013, %v3015
        %v3017 = vrot.slane %v3009, %v3016
        %v3019 = vunpack.c.l.s4 1934713408
        %v3020 = vunpack.c.0.s8 %v3019
        %v3021 = vlaneseq
        %v3022 = vshrl.u32 %v3021, 7
        %v3023 = vsub.s32 %v3020, %v3022
        %v3024 = vrot.slane %v3010, %v3023
        %v3025 = vcombine.low %v2969, %v2985
        %v3026 = vcombine.high %v2969, %v2985
        %v3028 = vunpack.c.l.s4 1934713408
        %v3029 = vunpack.c.0.s8 %v3028
        %v3030 = vlaneseq
        %v3031 = vshrl.u32 %v3030, 7
        %v3032 = vsub.s32 %v3029, %v3031
        %v3033 = vrot.slane %v3025, %v3032
        %v3035 = vunpack.c.l.s4 1934713408
        %v3036 = vunpack.c.0.s8 %v3035
        %v3037 = vlaneseq
        %v3038 = vshrl.u32 %v3037, 7
        %v3039 = vsub.s32 %v3036, %v3038
        %v3040 = vrot.slane %v3026, %v3039
        %v3041 = vcombine.low %v2976, %v2992
        %v3042 = vcombine.high %v2976, %v2992
        %v3044 = vunpack.c.l.s4 1934713408
        %v3045 = vunpack.c.0.s8 %v3044
        %v3046 = vlaneseq
        %v3047 = vshrl.u32 %v3046, 7
        %v3048 = vsub.s32 %v3045, %v3047
        %v3049 = vrot.slane %v3041, %v3048
        %v3051 = vunpack.c.l.s4 1934713408
        %v3052 = vunpack.c.0.s8 %v3051
        %v3053 = vlaneseq
        %v3054 = vshrl.u32 %v3053, 7
        %v3055 = vsub.s32 %v3052, %v3054
        %v3056 = vrot.slane %v3042, %v3055
        %v3057 = vcombine.low %v3001, %v3033
        %v3058 = vcombine.high %v3001, %v3033
        %v3059 = vcombine.low %v3008, %v3040
        %v3060 = vcombine.high %v3008, %v3040
        %v3061 = vcombine.low %v3017, %v3049
        %v3062 = vcombine.high %v3017, %v3049
        %v3063 = vcombine.low %v3024, %v3056
        %v3064 = vcombine.high %v3024, %v3056
        %3081 = vrot.lane.b32.xlu0 %v2921, 1
        %v3082 = vpop.permute.xlu0 %3081
        %3083 = vrot.lane.b32.xlu0 %v3057, 1
        %v3084 = vpop.permute.xlu0 %3083
        %3085 = vrot.lane.b32.xlu0 %v2922, 1
        %v3086 = vpop.permute.xlu0 %3085
        %3087 = vrot.lane.b32.xlu0 %v3058, 1
        %v3088 = vpop.permute.xlu0 %3087
        %3089 = vrot.lane.b32.xlu0 %v2923, 1
        %v3090 = vpop.permute.xlu0 %3089
        %3091 = vrot.lane.b32.xlu0 %v3059, 1
        %v3092 = vpop.permute.xlu0 %3091
        %3093 = vrot.lane.b32.xlu0 %v2924, 1
        %v3094 = vpop.permute.xlu0 %3093
        %3095 = vrot.lane.b32.xlu0 %v3060, 1
        %v3096 = vpop.permute.xlu0 %3095
        %3097 = vrot.lane.b32.xlu0 %v2925, 1
        %v3098 = vpop.permute.xlu0 %3097
        %3099 = vrot.lane.b32.xlu0 %v3061, 1
        %v3100 = vpop.permute.xlu0 %3099
        %3101 = vrot.lane.b32.xlu0 %v2926, 1
        %v3102 = vpop.permute.xlu0 %3101
        %3103 = vrot.lane.b32.xlu0 %v3062, 1
        %v3104 = vpop.permute.xlu0 %3103
        %3105 = vrot.lane.b32.xlu0 %v2927, 1
        %v3106 = vpop.permute.xlu0 %3105
        %3107 = vrot.lane.b32.xlu0 %v3063, 1
        %v3108 = vpop.permute.xlu0 %3107
        %3109 = vrot.lane.b32.xlu0 %v2928, 1
        %v3110 = vpop.permute.xlu0 %3109
        %3111 = vrot.lane.b32.xlu0 %v3064, 1
        %v3112 = vpop.permute.xlu0 %3111
        %3129 = vst.msk [vmem:[#allocation4 + $0x1] sm:$0xff] %vm510, %v3082
        %3130 = vst.msk [vmem:[#allocation4 + $0x9] sm:$0xff] %vm510, %v3084
        %3131 = vst.msk [vmem:[#allocation4 + $0x19] sm:$0xff] %vm510, %v3086
        %3132 = vst.msk [vmem:[#allocation4 + $0x21] sm:$0xff] %vm510, %v3088
        %3133 = vst.msk [vmem:[#allocation4 + $0x31] sm:$0xff] %vm510, %v3090
        %3134 = vst.msk [vmem:[#allocation4 + $0x39] sm:$0xff] %vm510, %v3092
        %3135 = vst.msk [vmem:[#allocation4 + $0x49] sm:$0xff] %vm510, %v3094
        %3136 = vst.msk [vmem:[#allocation4 + $0x51] sm:$0xff] %vm510, %v3096
        %3137 = vst.msk [vmem:[#allocation4 + $0x61] sm:$0xff] %vm510, %v3098
        %3138 = vst.msk [vmem:[#allocation4 + $0x69] sm:$0xff] %vm510, %v3100
        %3139 = vst.msk [vmem:[#allocation4 + $0x79] sm:$0xff] %vm510, %v3102
        %3140 = vst.msk [vmem:[#allocation4 + $0x81] sm:$0xff] %vm510, %v3104
        %3141 = vst.msk [vmem:[#allocation4 + $0x91] sm:$0xff] %vm510, %v3106
        %3142 = vst.msk [vmem:[#allocation4 + $0x99] sm:$0xff] %vm510, %v3108
        %3143 = vst.msk [vmem:[#allocation4 + $0xa9] sm:$0xff] %vm510, %v3110
        %3144 = vst.msk [vmem:[#allocation4 + $0xb1] sm:$0xff] %vm510, %v3112
        %v3145 = vld [vmem:[#allocation4] sm:$0xff]
        %v3146 = vld [vmem:[#allocation4 + $0x8] sm:$0xff]
        %v3147 = vld [vmem:[#allocation4 + $0x10] sm:$0x3]
        %v3148 = vld [vmem:[#allocation4 + $0x18] sm:$0xff]
        %v3149 = vld [vmem:[#allocation4 + $0x20] sm:$0xff]
        %v3150 = vld [vmem:[#allocation4 + $0x28] sm:$0x3]
        %v3151 = vld [vmem:[#allocation4 + $0x30] sm:$0xff]
        %v3152 = vld [vmem:[#allocation4 + $0x38] sm:$0xff]
        %v3153 = vld [vmem:[#allocation4 + $0x40] sm:$0x3]
        %v3154 = vld [vmem:[#allocation4 + $0x48] sm:$0xff]
        %v3155 = vld [vmem:[#allocation4 + $0x50] sm:$0xff]
        %v3156 = vld [vmem:[#allocation4 + $0x58] sm:$0x3]
        %v3157 = vld [vmem:[#allocation4 + $0x60] sm:$0xff]
        %v3158 = vld [vmem:[#allocation4 + $0x68] sm:$0xff]
        %v3159 = vld [vmem:[#allocation4 + $0x70] sm:$0x3]
        %v3160 = vld [vmem:[#allocation4 + $0x78] sm:$0xff]
        %v3161 = vld [vmem:[#allocation4 + $0x80] sm:$0xff]
        %v3162 = vld [vmem:[#allocation4 + $0x88] sm:$0x3]
        %v3163 = vld [vmem:[#allocation4 + $0x90] sm:$0xff]
        %v3164 = vld [vmem:[#allocation4 + $0x98] sm:$0xff]
        %v3165 = vld [vmem:[#allocation4 + $0xa0] sm:$0x3]
        %v3166 = vld [vmem:[#allocation4 + $0xa8] sm:$0xff]
        %v3167 = vld [vmem:[#allocation4 + $0xb0] sm:$0xff]
        %v3168 = vld [vmem:[#allocation4 + $0xb8] sm:$0x3]
        %v3169 = vcombine.low %v3145, %v3151
        %v3170 = vcombine.high %v3145, %v3151
        %v3172 = vunpack.c.l.s4 1983009808
        %v3173 = vunpack.c.0.s8 %v3172
        %v3174 = vlaneseq
        %v3175 = vshrl.u32 %v3174, 7
        %v3176 = vsub.s32 %v3173, %v3175
        %v3177 = vrot.slane %v3169, %v3176
        %v3179 = vunpack.c.l.s4 1983009808
        %v3180 = vunpack.c.0.s8 %v3179
        %v3181 = vlaneseq
        %v3182 = vshrl.u32 %v3181, 7
        %v3183 = vsub.s32 %v3180, %v3182
        %v3184 = vrot.slane %v3170, %v3183
        %v3185 = vcombine.low %v3148, %v3154
        %v3186 = vcombine.high %v3148, %v3154
        %v3188 = vunpack.c.l.s4 1983009808
        %v3189 = vunpack.c.0.s8 %v3188
        %v3190 = vlaneseq
        %v3191 = vshrl.u32 %v3190, 7
        %v3192 = vsub.s32 %v3189, %v3191
        %v3193 = vrot.slane %v3185, %v3192
        %v3195 = vunpack.c.l.s4 1983009808
        %v3196 = vunpack.c.0.s8 %v3195
        %v3197 = vlaneseq
        %v3198 = vshrl.u32 %v3197, 7
        %v3199 = vsub.s32 %v3196, %v3198
        %v3200 = vrot.slane %v3186, %v3199
        %v3201 = vcombine.low %v3157, %v3163
        %v3202 = vcombine.high %v3157, %v3163
        %v3204 = vunpack.c.l.s4 1983009808
        %v3205 = vunpack.c.0.s8 %v3204
        %v3206 = vlaneseq
        %v3207 = vshrl.u32 %v3206, 7
        %v3208 = vsub.s32 %v3205, %v3207
        %v3209 = vrot.slane %v3201, %v3208
        %v3211 = vunpack.c.l.s4 1983009808
        %v3212 = vunpack.c.0.s8 %v3211
        %v3213 = vlaneseq
        %v3214 = vshrl.u32 %v3213, 7
        %v3215 = vsub.s32 %v3212, %v3214
        %v3216 = vrot.slane %v3202, %v3215
        %v3217 = vcombine.low %v3160, %v3166
        %v3218 = vcombine.high %v3160, %v3166
        %v3220 = vunpack.c.l.s4 1983009808
        %v3221 = vunpack.c.0.s8 %v3220
        %v3222 = vlaneseq
        %v3223 = vshrl.u32 %v3222, 7
        %v3224 = vsub.s32 %v3221, %v3223
        %v3225 = vrot.slane %v3217, %v3224
        %v3227 = vunpack.c.l.s4 1983009808
        %v3228 = vunpack.c.0.s8 %v3227
        %v3229 = vlaneseq
        %v3230 = vshrl.u32 %v3229, 7
        %v3231 = vsub.s32 %v3228, %v3230
        %v3232 = vrot.slane %v3218, %v3231
        %v3233 = vcombine.low %v3177, %v3193
        %v3234 = vcombine.high %v3177, %v3193
        %v3236 = vunpack.c.l.s4 1934713408
        %v3237 = vunpack.c.0.s8 %v3236
        %v3238 = vlaneseq
        %v3239 = vshrl.u32 %v3238, 7
        %v3240 = vsub.s32 %v3237, %v3239
        %v3241 = vrot.slane %v3233, %v3240
        %v3243 = vunpack.c.l.s4 1934713408
        %v3244 = vunpack.c.0.s8 %v3243
        %v3245 = vlaneseq
        %v3246 = vshrl.u32 %v3245, 7
        %v3247 = vsub.s32 %v3244, %v3246
        %v3248 = vrot.slane %v3234, %v3247
        %v3249 = vcombine.low %v3184, %v3200
        %v3250 = vcombine.high %v3184, %v3200
        %v3252 = vunpack.c.l.s4 1934713408
        %v3253 = vunpack.c.0.s8 %v3252
        %v3254 = vlaneseq
        %v3255 = vshrl.u32 %v3254, 7
        %v3256 = vsub.s32 %v3253, %v3255
        %v3257 = vrot.slane %v3249, %v3256
        %v3259 = vunpack.c.l.s4 1934713408
        %v3260 = vunpack.c.0.s8 %v3259
        %v3261 = vlaneseq
        %v3262 = vshrl.u32 %v3261, 7
        %v3263 = vsub.s32 %v3260, %v3262
        %v3264 = vrot.slane %v3250, %v3263
        %v3265 = vcombine.low %v3209, %v3225
        %v3266 = vcombine.high %v3209, %v3225
        %v3268 = vunpack.c.l.s4 1934713408
        %v3269 = vunpack.c.0.s8 %v3268
        %v3270 = vlaneseq
        %v3271 = vshrl.u32 %v3270, 7
        %v3272 = vsub.s32 %v3269, %v3271
        %v3273 = vrot.slane %v3265, %v3272
        %v3275 = vunpack.c.l.s4 1934713408
        %v3276 = vunpack.c.0.s8 %v3275
        %v3277 = vlaneseq
        %v3278 = vshrl.u32 %v3277, 7
        %v3279 = vsub.s32 %v3276, %v3278
        %v3280 = vrot.slane %v3266, %v3279
        %v3281 = vcombine.low %v3216, %v3232
        %v3282 = vcombine.high %v3216, %v3232
        %v3284 = vunpack.c.l.s4 1934713408
        %v3285 = vunpack.c.0.s8 %v3284
        %v3286 = vlaneseq
        %v3287 = vshrl.u32 %v3286, 7
        %v3288 = vsub.s32 %v3285, %v3287
        %v3289 = vrot.slane %v3281, %v3288
        %v3291 = vunpack.c.l.s4 1934713408
        %v3292 = vunpack.c.0.s8 %v3291
        %v3293 = vlaneseq
        %v3294 = vshrl.u32 %v3293, 7
        %v3295 = vsub.s32 %v3292, %v3294
        %v3296 = vrot.slane %v3282, %v3295
        %v3297 = vcombine.low %v3241, %v3273
        %v3298 = vcombine.high %v3241, %v3273
        %v3299 = vcombine.low %v3248, %v3280
        %v3300 = vcombine.high %v3248, %v3280
        %v3301 = vcombine.low %v3257, %v3289
        %v3302 = vcombine.high %v3257, %v3289
        %v3303 = vcombine.low %v3264, %v3296
        %v3304 = vcombine.high %v3264, %v3296
        %v3305 = vcombine.low %v3146, %v3152
        %v3306 = vcombine.high %v3146, %v3152
        %v3308 = vunpack.c.l.s4 1983009808
        %v3309 = vunpack.c.0.s8 %v3308
        %v3310 = vlaneseq
        %v3311 = vshrl.u32 %v3310, 7
        %v3312 = vsub.s32 %v3309, %v3311
        %v3313 = vrot.slane %v3305, %v3312
        %v3315 = vunpack.c.l.s4 1983009808
        %v3316 = vunpack.c.0.s8 %v3315
        %v3317 = vlaneseq
        %v3318 = vshrl.u32 %v3317, 7
        %v3319 = vsub.s32 %v3316, %v3318
        %v3320 = vrot.slane %v3306, %v3319
        %v3321 = vcombine.low %v3149, %v3155
        %v3322 = vcombine.high %v3149, %v3155
        %v3324 = vunpack.c.l.s4 1983009808
        %v3325 = vunpack.c.0.s8 %v3324
        %v3326 = vlaneseq
        %v3327 = vshrl.u32 %v3326, 7
        %v3328 = vsub.s32 %v3325, %v3327
        %v3329 = vrot.slane %v3321, %v3328
        %v3331 = vunpack.c.l.s4 1983009808
        %v3332 = vunpack.c.0.s8 %v3331
        %v3333 = vlaneseq
        %v3334 = vshrl.u32 %v3333, 7
        %v3335 = vsub.s32 %v3332, %v3334
        %v3336 = vrot.slane %v3322, %v3335
        %v3337 = vcombine.low %v3158, %v3164
        %v3338 = vcombine.high %v3158, %v3164
        %v3340 = vunpack.c.l.s4 1983009808
        %v3341 = vunpack.c.0.s8 %v3340
        %v3342 = vlaneseq
        %v3343 = vshrl.u32 %v3342, 7
        %v3344 = vsub.s32 %v3341, %v3343
        %v3345 = vrot.slane %v3337, %v3344
        %v3347 = vunpack.c.l.s4 1983009808
        %v3348 = vunpack.c.0.s8 %v3347
        %v3349 = vlaneseq
        %v3350 = vshrl.u32 %v3349, 7
        %v3351 = vsub.s32 %v3348, %v3350
        %v3352 = vrot.slane %v3338, %v3351
        %v3353 = vcombine.low %v3161, %v3167
        %v3354 = vcombine.high %v3161, %v3167
        %v3356 = vunpack.c.l.s4 1983009808
        %v3357 = vunpack.c.0.s8 %v3356
        %v3358 = vlaneseq
        %v3359 = vshrl.u32 %v3358, 7
        %v3360 = vsub.s32 %v3357, %v3359
        %v3361 = vrot.slane %v3353, %v3360
        %v3363 = vunpack.c.l.s4 1983009808
        %v3364 = vunpack.c.0.s8 %v3363
        %v3365 = vlaneseq
        %v3366 = vshrl.u32 %v3365, 7
        %v3367 = vsub.s32 %v3364, %v3366
        %v3368 = vrot.slane %v3354, %v3367
        %v3369 = vcombine.low %v3313, %v3329
        %v3370 = vcombine.high %v3313, %v3329
        %v3372 = vunpack.c.l.s4 1934713408
        %v3373 = vunpack.c.0.s8 %v3372
        %v3374 = vlaneseq
        %v3375 = vshrl.u32 %v3374, 7
        %v3376 = vsub.s32 %v3373, %v3375
        %v3377 = vrot.slane %v3369, %v3376
        %v3379 = vunpack.c.l.s4 1934713408
        %v3380 = vunpack.c.0.s8 %v3379
        %v3381 = vlaneseq
        %v3382 = vshrl.u32 %v3381, 7
        %v3383 = vsub.s32 %v3380, %v3382
        %v3384 = vrot.slane %v3370, %v3383
        %v3385 = vcombine.low %v3320, %v3336
        %v3386 = vcombine.high %v3320, %v3336
        %v3388 = vunpack.c.l.s4 1934713408
        %v3389 = vunpack.c.0.s8 %v3388
        %v3390 = vlaneseq
        %v3391 = vshrl.u32 %v3390, 7
        %v3392 = vsub.s32 %v3389, %v3391
        %v3393 = vrot.slane %v3385, %v3392
        %v3395 = vunpack.c.l.s4 1934713408
        %v3396 = vunpack.c.0.s8 %v3395
        %v3397 = vlaneseq
        %v3398 = vshrl.u32 %v3397, 7
        %v3399 = vsub.s32 %v3396, %v3398
        %v3400 = vrot.slane %v3386, %v3399
        %v3401 = vcombine.low %v3345, %v3361
        %v3402 = vcombine.high %v3345, %v3361
        %v3404 = vunpack.c.l.s4 1934713408
        %v3405 = vunpack.c.0.s8 %v3404
        %v3406 = vlaneseq
        %v3407 = vshrl.u32 %v3406, 7
        %v3408 = vsub.s32 %v3405, %v3407
        %v3409 = vrot.slane %v3401, %v3408
        %v3411 = vunpack.c.l.s4 1934713408
        %v3412 = vunpack.c.0.s8 %v3411
        %v3413 = vlaneseq
        %v3414 = vshrl.u32 %v3413, 7
        %v3415 = vsub.s32 %v3412, %v3414
        %v3416 = vrot.slane %v3402, %v3415
        %v3417 = vcombine.low %v3352, %v3368
        %v3418 = vcombine.high %v3352, %v3368
        %v3420 = vunpack.c.l.s4 1934713408
        %v3421 = vunpack.c.0.s8 %v3420
        %v3422 = vlaneseq
        %v3423 = vshrl.u32 %v3422, 7
        %v3424 = vsub.s32 %v3421, %v3423
        %v3425 = vrot.slane %v3417, %v3424
        %v3427 = vunpack.c.l.s4 1934713408
        %v3428 = vunpack.c.0.s8 %v3427
        %v3429 = vlaneseq
        %v3430 = vshrl.u32 %v3429, 7
        %v3431 = vsub.s32 %v3428, %v3430
        %v3432 = vrot.slane %v3418, %v3431
        %v3433 = vcombine.low %v3377, %v3409
        %v3434 = vcombine.high %v3377, %v3409
        %v3435 = vcombine.low %v3384, %v3416
        %v3436 = vcombine.high %v3384, %v3416
        %v3437 = vcombine.low %v3393, %v3425
        %v3438 = vcombine.high %v3393, %v3425
        %v3439 = vcombine.low %v3400, %v3432
        %v3440 = vcombine.high %v3400, %v3432
        %3442 = vrot.lane.b32.xlu0 %v3298, 16
        %v3443 = vpop.permute.xlu0 %3442
        %3446 = vrot.lane.b32.xlu0 %v3299, 32
        %v3447 = vpop.permute.xlu0 %3446
        %3450 = vrot.lane.b32.xlu0 %v3300, 48
        %v3451 = vpop.permute.xlu0 %3450
        %3454 = vrot.lane.b32.xlu0 %v3301, 64
        %v3455 = vpop.permute.xlu0 %3454
        %3458 = vrot.lane.b32.xlu0 %v3302, 80
        %v3459 = vpop.permute.xlu0 %3458
        %3462 = vrot.lane.b32.xlu0 %v3303, 96
        %v3463 = vpop.permute.xlu0 %3462
        %3466 = vrot.lane.b32.xlu0 %v3304, 112
        %v3467 = vpop.permute.xlu0 %3466
        %3470 = vrot.lane.b32.xlu0 %v3434, 16
        %v3471 = vpop.permute.xlu0 %3470
        %3474 = vrot.lane.b32.xlu0 %v3435, 32
        %v3475 = vpop.permute.xlu0 %3474
        %3478 = vrot.lane.b32.xlu0 %v3436, 48
        %v3479 = vpop.permute.xlu0 %3478
        %3482 = vrot.lane.b32.xlu0 %v3437, 64
        %v3483 = vpop.permute.xlu0 %3482
        %3486 = vrot.lane.b32.xlu0 %v3438, 80
        %v3487 = vpop.permute.xlu0 %3486
        %3490 = vrot.lane.b32.xlu0 %v3439, 96
        %v3491 = vpop.permute.xlu0 %3490
        %3494 = vrot.lane.b32.xlu0 %v3440, 112
        %v3495 = vpop.permute.xlu0 %3494
        %v3497 = vsel %vm723, %v3297, %v3443
        %v3498 = vsel %vm725, %v3497, %v3447
        %v3499 = vsel %vm727, %v3498, %v3451
        %v3500 = vsel %vm729, %v3499, %v3455
        %v3501 = vsel %vm731, %v3500, %v3459
        %v3502 = vsel %vm733, %v3501, %v3463
        %v3503 = vsel %vm735, %v3502, %v3467
        %v3504 = vsel %vm723, %v3433, %v3471
        %v3505 = vsel %vm725, %v3504, %v3475
        %v3506 = vsel %vm727, %v3505, %v3479
        %v3507 = vsel %vm729, %v3506, %v3483
        %v3508 = vsel %vm731, %v3507, %v3487
        %v3509 = vsel %vm733, %v3508, %v3491
        %v3510 = vsel %vm735, %v3509, %v3495
        %3511 = vst [vmem:[#allocation5] sm:$0xff] %v3503
        %3512 = vst [vmem:[#allocation5 + $0x8] sm:$0xff] %v3510
        %3529 = vrot.lane.b32.xlu0 %v3145, 127
        %v3530 = vpop.permute.xlu0 %3529
        %3531 = vrot.lane.b32.xlu0 %v3146, 127
        %v3532 = vpop.permute.xlu0 %3531
        %3533 = vrot.lane.b32.xlu0 %v3148, 127
        %v3534 = vpop.permute.xlu0 %3533
        %3535 = vrot.lane.b32.xlu0 %v3149, 127
        %v3536 = vpop.permute.xlu0 %3535
        %3537 = vrot.lane.b32.xlu0 %v3151, 127
        %v3538 = vpop.permute.xlu0 %3537
        %3539 = vrot.lane.b32.xlu0 %v3152, 127
        %v3540 = vpop.permute.xlu0 %3539
        %3541 = vrot.lane.b32.xlu0 %v3154, 127
        %v3542 = vpop.permute.xlu0 %3541
        %3543 = vrot.lane.b32.xlu0 %v3155, 127
        %v3544 = vpop.permute.xlu0 %3543
        %3545 = vrot.lane.b32.xlu0 %v3157, 127
        %v3546 = vpop.permute.xlu0 %3545
        %3547 = vrot.lane.b32.xlu0 %v3158, 127
        %v3548 = vpop.permute.xlu0 %3547
        %3549 = vrot.lane.b32.xlu0 %v3160, 127
        %v3550 = vpop.permute.xlu0 %3549
        %3551 = vrot.lane.b32.xlu0 %v3161, 127
        %v3552 = vpop.permute.xlu0 %3551
        %3553 = vrot.lane.b32.xlu0 %v3163, 127
        %v3554 = vpop.permute.xlu0 %3553
        %3555 = vrot.lane.b32.xlu0 %v3164, 127
        %v3556 = vpop.permute.xlu0 %3555
        %3557 = vrot.lane.b32.xlu0 %v3166, 127
        %v3558 = vpop.permute.xlu0 %3557
        %3559 = vrot.lane.b32.xlu0 %v3167, 127
        %v3560 = vpop.permute.xlu0 %3559
        %v3577 = vcombine.low %v3530, %v3538
        %v3578 = vcombine.high %v3530, %v3538
        %v3580 = vunpack.c.l.s4 1983009808
        %v3581 = vunpack.c.0.s8 %v3580
        %v3582 = vlaneseq
        %v3583 = vshrl.u32 %v3582, 7
        %v3584 = vsub.s32 %v3581, %v3583
        %v3585 = vrot.slane %v3577, %v3584
        %v3587 = vunpack.c.l.s4 1983009808
        %v3588 = vunpack.c.0.s8 %v3587
        %v3589 = vlaneseq
        %v3590 = vshrl.u32 %v3589, 7
        %v3591 = vsub.s32 %v3588, %v3590
        %v3592 = vrot.slane %v3578, %v3591
        %v3593 = vcombine.low %v3534, %v3542
        %v3594 = vcombine.high %v3534, %v3542
        %v3596 = vunpack.c.l.s4 1983009808
        %v3597 = vunpack.c.0.s8 %v3596
        %v3598 = vlaneseq
        %v3599 = vshrl.u32 %v3598, 7
        %v3600 = vsub.s32 %v3597, %v3599
        %v3601 = vrot.slane %v3593, %v3600
        %v3603 = vunpack.c.l.s4 1983009808
        %v3604 = vunpack.c.0.s8 %v3603
        %v3605 = vlaneseq
        %v3606 = vshrl.u32 %v3605, 7
        %v3607 = vsub.s32 %v3604, %v3606
        %v3608 = vrot.slane %v3594, %v3607
        %v3609 = vcombine.low %v3546, %v3554
        %v3610 = vcombine.high %v3546, %v3554
        %v3612 = vunpack.c.l.s4 1983009808
        %v3613 = vunpack.c.0.s8 %v3612
        %v3614 = vlaneseq
        %v3615 = vshrl.u32 %v3614, 7
        %v3616 = vsub.s32 %v3613, %v3615
        %v3617 = vrot.slane %v3609, %v3616
        %v3619 = vunpack.c.l.s4 1983009808
        %v3620 = vunpack.c.0.s8 %v3619
        %v3621 = vlaneseq
        %v3622 = vshrl.u32 %v3621, 7
        %v3623 = vsub.s32 %v3620, %v3622
        %v3624 = vrot.slane %v3610, %v3623
        %v3625 = vcombine.low %v3550, %v3558
        %v3626 = vcombine.high %v3550, %v3558
        %v3628 = vunpack.c.l.s4 1983009808
        %v3629 = vunpack.c.0.s8 %v3628
        %v3630 = vlaneseq
        %v3631 = vshrl.u32 %v3630, 7
        %v3632 = vsub.s32 %v3629, %v3631
        %v3633 = vrot.slane %v3625, %v3632
        %v3635 = vunpack.c.l.s4 1983009808
        %v3636 = vunpack.c.0.s8 %v3635
        %v3637 = vlaneseq
        %v3638 = vshrl.u32 %v3637, 7
        %v3639 = vsub.s32 %v3636, %v3638
        %v3640 = vrot.slane %v3626, %v3639
        %v3641 = vcombine.low %v3585, %v3601
        %v3642 = vcombine.high %v3585, %v3601
        %v3644 = vunpack.c.l.s4 1934713408
        %v3645 = vunpack.c.0.s8 %v3644
        %v3646 = vlaneseq
        %v3647 = vshrl.u32 %v3646, 7
        %v3648 = vsub.s32 %v3645, %v3647
        %v3649 = vrot.slane %v3641, %v3648
        %v3651 = vunpack.c.l.s4 1934713408
        %v3652 = vunpack.c.0.s8 %v3651
        %v3653 = vlaneseq
        %v3654 = vshrl.u32 %v3653, 7
        %v3655 = vsub.s32 %v3652, %v3654
        %v3656 = vrot.slane %v3642, %v3655
        %v3657 = vcombine.low %v3592, %v3608
        %v3658 = vcombine.high %v3592, %v3608
        %v3660 = vunpack.c.l.s4 1934713408
        %v3661 = vunpack.c.0.s8 %v3660
        %v3662 = vlaneseq
        %v3663 = vshrl.u32 %v3662, 7
        %v3664 = vsub.s32 %v3661, %v3663
        %v3665 = vrot.slane %v3657, %v3664
        %v3667 = vunpack.c.l.s4 1934713408
        %v3668 = vunpack.c.0.s8 %v3667
        %v3669 = vlaneseq
        %v3670 = vshrl.u32 %v3669, 7
        %v3671 = vsub.s32 %v3668, %v3670
        %v3672 = vrot.slane %v3658, %v3671
        %v3673 = vcombine.low %v3617, %v3633
        %v3674 = vcombine.high %v3617, %v3633
        %v3676 = vunpack.c.l.s4 1934713408
        %v3677 = vunpack.c.0.s8 %v3676
        %v3678 = vlaneseq
        %v3679 = vshrl.u32 %v3678, 7
        %v3680 = vsub.s32 %v3677, %v3679
        %v3681 = vrot.slane %v3673, %v3680
        %v3683 = vunpack.c.l.s4 1934713408
        %v3684 = vunpack.c.0.s8 %v3683
        %v3685 = vlaneseq
        %v3686 = vshrl.u32 %v3685, 7
        %v3687 = vsub.s32 %v3684, %v3686
        %v3688 = vrot.slane %v3674, %v3687
        %v3689 = vcombine.low %v3624, %v3640
        %v3690 = vcombine.high %v3624, %v3640
        %v3692 = vunpack.c.l.s4 1934713408
        %v3693 = vunpack.c.0.s8 %v3692
        %v3694 = vlaneseq
        %v3695 = vshrl.u32 %v3694, 7
        %v3696 = vsub.s32 %v3693, %v3695
        %v3697 = vrot.slane %v3689, %v3696
        %v3699 = vunpack.c.l.s4 1934713408
        %v3700 = vunpack.c.0.s8 %v3699
        %v3701 = vlaneseq
        %v3702 = vshrl.u32 %v3701, 7
        %v3703 = vsub.s32 %v3700, %v3702
        %v3704 = vrot.slane %v3690, %v3703
        %v3705 = vcombine.low %v3649, %v3681
        %v3706 = vcombine.high %v3649, %v3681
        %v3707 = vcombine.low %v3656, %v3688
        %v3708 = vcombine.high %v3656, %v3688
        %v3709 = vcombine.low %v3665, %v3697
        %v3710 = vcombine.high %v3665, %v3697
        %v3711 = vcombine.low %v3672, %v3704
        %v3712 = vcombine.high %v3672, %v3704
        %v3713 = vcombine.low %v3532, %v3540
        %v3714 = vcombine.high %v3532, %v3540
        %v3716 = vunpack.c.l.s4 1983009808
        %v3717 = vunpack.c.0.s8 %v3716
        %v3718 = vlaneseq
        %v3719 = vshrl.u32 %v3718, 7
        %v3720 = vsub.s32 %v3717, %v3719
        %v3721 = vrot.slane %v3713, %v3720
        %v3723 = vunpack.c.l.s4 1983009808
        %v3724 = vunpack.c.0.s8 %v3723
        %v3725 = vlaneseq
        %v3726 = vshrl.u32 %v3725, 7
        %v3727 = vsub.s32 %v3724, %v3726
        %v3728 = vrot.slane %v3714, %v3727
        %v3729 = vcombine.low %v3536, %v3544
        %v3730 = vcombine.high %v3536, %v3544
        %v3732 = vunpack.c.l.s4 1983009808
        %v3733 = vunpack.c.0.s8 %v3732
        %v3734 = vlaneseq
        %v3735 = vshrl.u32 %v3734, 7
        %v3736 = vsub.s32 %v3733, %v3735
        %v3737 = vrot.slane %v3729, %v3736
        %v3739 = vunpack.c.l.s4 1983009808
        %v3740 = vunpack.c.0.s8 %v3739
        %v3741 = vlaneseq
        %v3742 = vshrl.u32 %v3741, 7
        %v3743 = vsub.s32 %v3740, %v3742
        %v3744 = vrot.slane %v3730, %v3743
        %v3745 = vcombine.low %v3548, %v3556
        %v3746 = vcombine.high %v3548, %v3556
        %v3748 = vunpack.c.l.s4 1983009808
        %v3749 = vunpack.c.0.s8 %v3748
        %v3750 = vlaneseq
        %v3751 = vshrl.u32 %v3750, 7
        %v3752 = vsub.s32 %v3749, %v3751
        %v3753 = vrot.slane %v3745, %v3752
        %v3755 = vunpack.c.l.s4 1983009808
        %v3756 = vunpack.c.0.s8 %v3755
        %v3757 = vlaneseq
        %v3758 = vshrl.u32 %v3757, 7
        %v3759 = vsub.s32 %v3756, %v3758
        %v3760 = vrot.slane %v3746, %v3759
        %v3761 = vcombine.low %v3552, %v3560
        %v3762 = vcombine.high %v3552, %v3560
        %v3764 = vunpack.c.l.s4 1983009808
        %v3765 = vunpack.c.0.s8 %v3764
        %v3766 = vlaneseq
        %v3767 = vshrl.u32 %v3766, 7
        %v3768 = vsub.s32 %v3765, %v3767
        %v3769 = vrot.slane %v3761, %v3768
        %v3771 = vunpack.c.l.s4 1983009808
        %v3772 = vunpack.c.0.s8 %v3771
        %v3773 = vlaneseq
        %v3774 = vshrl.u32 %v3773, 7
        %v3775 = vsub.s32 %v3772, %v3774
        %v3776 = vrot.slane %v3762, %v3775
        %v3777 = vcombine.low %v3721, %v3737
        %v3778 = vcombine.high %v3721, %v3737
        %v3780 = vunpack.c.l.s4 1934713408
        %v3781 = vunpack.c.0.s8 %v3780
        %v3782 = vlaneseq
        %v3783 = vshrl.u32 %v3782, 7
        %v3784 = vsub.s32 %v3781, %v3783
        %v3785 = vrot.slane %v3777, %v3784
        %v3787 = vunpack.c.l.s4 1934713408
        %v3788 = vunpack.c.0.s8 %v3787
        %v3789 = vlaneseq
        %v3790 = vshrl.u32 %v3789, 7
        %v3791 = vsub.s32 %v3788, %v3790
        %v3792 = vrot.slane %v3778, %v3791
        %v3793 = vcombine.low %v3728, %v3744
        %v3794 = vcombine.high %v3728, %v3744
        %v3796 = vunpack.c.l.s4 1934713408
        %v3797 = vunpack.c.0.s8 %v3796
        %v3798 = vlaneseq
        %v3799 = vshrl.u32 %v3798, 7
        %v3800 = vsub.s32 %v3797, %v3799
        %v3801 = vrot.slane %v3793, %v3800
        %v3803 = vunpack.c.l.s4 1934713408
        %v3804 = vunpack.c.0.s8 %v3803
        %v3805 = vlaneseq
        %v3806 = vshrl.u32 %v3805, 7
        %v3807 = vsub.s32 %v3804, %v3806
        %v3808 = vrot.slane %v3794, %v3807
        %v3809 = vcombine.low %v3753, %v3769
        %v3810 = vcombine.high %v3753, %v3769
        %v3812 = vunpack.c.l.s4 1934713408
        %v3813 = vunpack.c.0.s8 %v3812
        %v3814 = vlaneseq
        %v3815 = vshrl.u32 %v3814, 7
        %v3816 = vsub.s32 %v3813, %v3815
        %v3817 = vrot.slane %v3809, %v3816
        %v3819 = vunpack.c.l.s4 1934713408
        %v3820 = vunpack.c.0.s8 %v3819
        %v3821 = vlaneseq
        %v3822 = vshrl.u32 %v3821, 7
        %v3823 = vsub.s32 %v3820, %v3822
        %v3824 = vrot.slane %v3810, %v3823
        %v3825 = vcombine.low %v3760, %v3776
        %v3826 = vcombine.high %v3760, %v3776
        %v3828 = vunpack.c.l.s4 1934713408
        %v3829 = vunpack.c.0.s8 %v3828
        %v3830 = vlaneseq
        %v3831 = vshrl.u32 %v3830, 7
        %v3832 = vsub.s32 %v3829, %v3831
        %v3833 = vrot.slane %v3825, %v3832
        %v3835 = vunpack.c.l.s4 1934713408
        %v3836 = vunpack.c.0.s8 %v3835
        %v3837 = vlaneseq
        %v3838 = vshrl.u32 %v3837, 7
        %v3839 = vsub.s32 %v3836, %v3838
        %v3840 = vrot.slane %v3826, %v3839
        %v3841 = vcombine.low %v3785, %v3817
        %v3842 = vcombine.high %v3785, %v3817
        %v3843 = vcombine.low %v3792, %v3824
        %v3844 = vcombine.high %v3792, %v3824
        %v3845 = vcombine.low %v3801, %v3833
        %v3846 = vcombine.high %v3801, %v3833
        %v3847 = vcombine.low %v3808, %v3840
        %v3848 = vcombine.high %v3808, %v3840
        %3850 = vrot.lane.b32.xlu0 %v3706, 16
        %v3851 = vpop.permute.xlu0 %3850
        %3854 = vrot.lane.b32.xlu0 %v3707, 32
        %v3855 = vpop.permute.xlu0 %3854
        %3858 = vrot.lane.b32.xlu0 %v3708, 48
        %v3859 = vpop.permute.xlu0 %3858
        %3862 = vrot.lane.b32.xlu0 %v3709, 64
        %v3863 = vpop.permute.xlu0 %3862
        %3866 = vrot.lane.b32.xlu0 %v3710, 80
        %v3867 = vpop.permute.xlu0 %3866
        %3870 = vrot.lane.b32.xlu0 %v3711, 96
        %v3871 = vpop.permute.xlu0 %3870
        %3874 = vrot.lane.b32.xlu0 %v3712, 112
        %v3875 = vpop.permute.xlu0 %3874
        %3878 = vrot.lane.b32.xlu0 %v3842, 16
        %v3879 = vpop.permute.xlu0 %3878
        %3882 = vrot.lane.b32.xlu0 %v3843, 32
        %v3883 = vpop.permute.xlu0 %3882
        %3886 = vrot.lane.b32.xlu0 %v3844, 48
        %v3887 = vpop.permute.xlu0 %3886
        %3890 = vrot.lane.b32.xlu0 %v3845, 64
        %v3891 = vpop.permute.xlu0 %3890
        %3894 = vrot.lane.b32.xlu0 %v3846, 80
        %v3895 = vpop.permute.xlu0 %3894
        %3898 = vrot.lane.b32.xlu0 %v3847, 96
        %v3899 = vpop.permute.xlu0 %3898
        %3902 = vrot.lane.b32.xlu0 %v3848, 112
        %v3903 = vpop.permute.xlu0 %3902
        %v3905 = vsel %vm723, %v3705, %v3851
        %v3906 = vsel %vm725, %v3905, %v3855
        %v3907 = vsel %vm727, %v3906, %v3859
        %v3908 = vsel %vm729, %v3907, %v3863
        %v3909 = vsel %vm731, %v3908, %v3867
        %v3910 = vsel %vm733, %v3909, %v3871
        %v3911 = vsel %vm735, %v3910, %v3875
        %v3912 = vsel %vm723, %v3841, %v3879
        %v3913 = vsel %vm725, %v3912, %v3883
        %v3914 = vsel %vm727, %v3913, %v3887
        %v3915 = vsel %vm729, %v3914, %v3891
        %v3916 = vsel %vm731, %v3915, %v3895
        %v3917 = vsel %vm733, %v3916, %v3899
        %v3918 = vsel %vm735, %v3917, %v3903
        %3919 = vst [vmem:[#allocation5 + $0x10] sm:$0xff] %v3911
        %3920 = vst [vmem:[#allocation5 + $0x18] sm:$0xff] %v3918
        %3921 = vrot.lane.b32.xlu0 %v3145, 126
        %v3922 = vpop.permute.xlu0 %3921
        %3923 = vrot.lane.b32.xlu0 %v3146, 126
        %v3924 = vpop.permute.xlu0 %3923
        %3925 = vrot.lane.b32.xlu0 %v3148, 126
        %v3926 = vpop.permute.xlu0 %3925
        %3927 = vrot.lane.b32.xlu0 %v3149, 126
        %v3928 = vpop.permute.xlu0 %3927
        %3929 = vrot.lane.b32.xlu0 %v3151, 126
        %v3930 = vpop.permute.xlu0 %3929
        %3931 = vrot.lane.b32.xlu0 %v3152, 126
        %v3932 = vpop.permute.xlu0 %3931
        %3933 = vrot.lane.b32.xlu0 %v3154, 126
        %v3934 = vpop.permute.xlu0 %3933
        %3935 = vrot.lane.b32.xlu0 %v3155, 126
        %v3936 = vpop.permute.xlu0 %3935
        %3937 = vrot.lane.b32.xlu0 %v3157, 126
        %v3938 = vpop.permute.xlu0 %3937
        %3939 = vrot.lane.b32.xlu0 %v3158, 126
        %v3940 = vpop.permute.xlu0 %3939
        %3941 = vrot.lane.b32.xlu0 %v3160, 126
        %v3942 = vpop.permute.xlu0 %3941
        %3943 = vrot.lane.b32.xlu0 %v3161, 126
        %v3944 = vpop.permute.xlu0 %3943
        %3945 = vrot.lane.b32.xlu0 %v3163, 126
        %v3946 = vpop.permute.xlu0 %3945
        %3947 = vrot.lane.b32.xlu0 %v3164, 126
        %v3948 = vpop.permute.xlu0 %3947
        %3949 = vrot.lane.b32.xlu0 %v3166, 126
        %v3950 = vpop.permute.xlu0 %3949
        %3951 = vrot.lane.b32.xlu0 %v3167, 126
        %v3952 = vpop.permute.xlu0 %3951
        %v3969 = vcombine.low %v3922, %v3930
        %v3970 = vcombine.high %v3922, %v3930
        %v3972 = vunpack.c.l.s4 1983009808
        %v3973 = vunpack.c.0.s8 %v3972
        %v3974 = vlaneseq
        %v3975 = vshrl.u32 %v3974, 7
        %v3976 = vsub.s32 %v3973, %v3975
        %v3977 = vrot.slane %v3969, %v3976
        %v3979 = vunpack.c.l.s4 1983009808
        %v3980 = vunpack.c.0.s8 %v3979
        %v3981 = vlaneseq
        %v3982 = vshrl.u32 %v3981, 7
        %v3983 = vsub.s32 %v3980, %v3982
        %v3984 = vrot.slane %v3970, %v3983
        %v3985 = vcombine.low %v3926, %v3934
        %v3986 = vcombine.high %v3926, %v3934
        %v3988 = vunpack.c.l.s4 1983009808
        %v3989 = vunpack.c.0.s8 %v3988
        %v3990 = vlaneseq
        %v3991 = vshrl.u32 %v3990, 7
        %v3992 = vsub.s32 %v3989, %v3991
        %v3993 = vrot.slane %v3985, %v3992
        %v3995 = vunpack.c.l.s4 1983009808
        %v3996 = vunpack.c.0.s8 %v3995
        %v3997 = vlaneseq
        %v3998 = vshrl.u32 %v3997, 7
        %v3999 = vsub.s32 %v3996, %v3998
        %v4000 = vrot.slane %v3986, %v3999
        %v4001 = vcombine.low %v3938, %v3946
        %v4002 = vcombine.high %v3938, %v3946
        %v4004 = vunpack.c.l.s4 1983009808
        %v4005 = vunpack.c.0.s8 %v4004
        %v4006 = vlaneseq
        %v4007 = vshrl.u32 %v4006, 7
        %v4008 = vsub.s32 %v4005, %v4007
        %v4009 = vrot.slane %v4001, %v4008
        %v4011 = vunpack.c.l.s4 1983009808
        %v4012 = vunpack.c.0.s8 %v4011
        %v4013 = vlaneseq
        %v4014 = vshrl.u32 %v4013, 7
        %v4015 = vsub.s32 %v4012, %v4014
        %v4016 = vrot.slane %v4002, %v4015
        %v4017 = vcombine.low %v3942, %v3950
        %v4018 = vcombine.high %v3942, %v3950
        %v4020 = vunpack.c.l.s4 1983009808
        %v4021 = vunpack.c.0.s8 %v4020
        %v4022 = vlaneseq
        %v4023 = vshrl.u32 %v4022, 7
        %v4024 = vsub.s32 %v4021, %v4023
        %v4025 = vrot.slane %v4017, %v4024
        %v4027 = vunpack.c.l.s4 1983009808
        %v4028 = vunpack.c.0.s8 %v4027
        %v4029 = vlaneseq
        %v4030 = vshrl.u32 %v4029, 7
        %v4031 = vsub.s32 %v4028, %v4030
        %v4032 = vrot.slane %v4018, %v4031
        %v4033 = vcombine.low %v3977, %v3993
        %v4034 = vcombine.high %v3977, %v3993
        %v4036 = vunpack.c.l.s4 1934713408
        %v4037 = vunpack.c.0.s8 %v4036
        %v4038 = vlaneseq
        %v4039 = vshrl.u32 %v4038, 7
        %v4040 = vsub.s32 %v4037, %v4039
        %v4041 = vrot.slane %v4033, %v4040
        %v4043 = vunpack.c.l.s4 1934713408
        %v4044 = vunpack.c.0.s8 %v4043
        %v4045 = vlaneseq
        %v4046 = vshrl.u32 %v4045, 7
        %v4047 = vsub.s32 %v4044, %v4046
        %v4048 = vrot.slane %v4034, %v4047
        %v4049 = vcombine.low %v3984, %v4000
        %v4050 = vcombine.high %v3984, %v4000
        %v4052 = vunpack.c.l.s4 1934713408
        %v4053 = vunpack.c.0.s8 %v4052
        %v4054 = vlaneseq
        %v4055 = vshrl.u32 %v4054, 7
        %v4056 = vsub.s32 %v4053, %v4055
        %v4057 = vrot.slane %v4049, %v4056
        %v4059 = vunpack.c.l.s4 1934713408
        %v4060 = vunpack.c.0.s8 %v4059
        %v4061 = vlaneseq
        %v4062 = vshrl.u32 %v4061, 7
        %v4063 = vsub.s32 %v4060, %v4062
        %v4064 = vrot.slane %v4050, %v4063
        %v4065 = vcombine.low %v4009, %v4025
        %v4066 = vcombine.high %v4009, %v4025
        %v4068 = vunpack.c.l.s4 1934713408
        %v4069 = vunpack.c.0.s8 %v4068
        %v4070 = vlaneseq
        %v4071 = vshrl.u32 %v4070, 7
        %v4072 = vsub.s32 %v4069, %v4071
        %v4073 = vrot.slane %v4065, %v4072
        %v4075 = vunpack.c.l.s4 1934713408
        %v4076 = vunpack.c.0.s8 %v4075
        %v4077 = vlaneseq
        %v4078 = vshrl.u32 %v4077, 7
        %v4079 = vsub.s32 %v4076, %v4078
        %v4080 = vrot.slane %v4066, %v4079
        %v4081 = vcombine.low %v4016, %v4032
        %v4082 = vcombine.high %v4016, %v4032
        %v4084 = vunpack.c.l.s4 1934713408
        %v4085 = vunpack.c.0.s8 %v4084
        %v4086 = vlaneseq
        %v4087 = vshrl.u32 %v4086, 7
        %v4088 = vsub.s32 %v4085, %v4087
        %v4089 = vrot.slane %v4081, %v4088
        %v4091 = vunpack.c.l.s4 1934713408
        %v4092 = vunpack.c.0.s8 %v4091
        %v4093 = vlaneseq
        %v4094 = vshrl.u32 %v4093, 7
        %v4095 = vsub.s32 %v4092, %v4094
        %v4096 = vrot.slane %v4082, %v4095
        %v4097 = vcombine.low %v4041, %v4073
        %v4098 = vcombine.high %v4041, %v4073
        %v4099 = vcombine.low %v4048, %v4080
        %v4100 = vcombine.high %v4048, %v4080
        %v4101 = vcombine.low %v4057, %v4089
        %v4102 = vcombine.high %v4057, %v4089
        %v4103 = vcombine.low %v4064, %v4096
        %v4104 = vcombine.high %v4064, %v4096
        %v4105 = vcombine.low %v3924, %v3932
        %v4106 = vcombine.high %v3924, %v3932
        %v4108 = vunpack.c.l.s4 1983009808
        %v4109 = vunpack.c.0.s8 %v4108
        %v4110 = vlaneseq
        %v4111 = vshrl.u32 %v4110, 7
        %v4112 = vsub.s32 %v4109, %v4111
        %v4113 = vrot.slane %v4105, %v4112
        %v4115 = vunpack.c.l.s4 1983009808
        %v4116 = vunpack.c.0.s8 %v4115
        %v4117 = vlaneseq
        %v4118 = vshrl.u32 %v4117, 7
        %v4119 = vsub.s32 %v4116, %v4118
        %v4120 = vrot.slane %v4106, %v4119
        %v4121 = vcombine.low %v3928, %v3936
        %v4122 = vcombine.high %v3928, %v3936
        %v4124 = vunpack.c.l.s4 1983009808
        %v4125 = vunpack.c.0.s8 %v4124
        %v4126 = vlaneseq
        %v4127 = vshrl.u32 %v4126, 7
        %v4128 = vsub.s32 %v4125, %v4127
        %v4129 = vrot.slane %v4121, %v4128
        %v4131 = vunpack.c.l.s4 1983009808
        %v4132 = vunpack.c.0.s8 %v4131
        %v4133 = vlaneseq
        %v4134 = vshrl.u32 %v4133, 7
        %v4135 = vsub.s32 %v4132, %v4134
        %v4136 = vrot.slane %v4122, %v4135
        %v4137 = vcombine.low %v3940, %v3948
        %v4138 = vcombine.high %v3940, %v3948
        %v4140 = vunpack.c.l.s4 1983009808
        %v4141 = vunpack.c.0.s8 %v4140
        %v4142 = vlaneseq
        %v4143 = vshrl.u32 %v4142, 7
        %v4144 = vsub.s32 %v4141, %v4143
        %v4145 = vrot.slane %v4137, %v4144
        %v4147 = vunpack.c.l.s4 1983009808
        %v4148 = vunpack.c.0.s8 %v4147
        %v4149 = vlaneseq
        %v4150 = vshrl.u32 %v4149, 7
        %v4151 = vsub.s32 %v4148, %v4150
        %v4152 = vrot.slane %v4138, %v4151
        %v4153 = vcombine.low %v3944, %v3952
        %v4154 = vcombine.high %v3944, %v3952
        %v4156 = vunpack.c.l.s4 1983009808
        %v4157 = vunpack.c.0.s8 %v4156
        %v4158 = vlaneseq
        %v4159 = vshrl.u32 %v4158, 7
        %v4160 = vsub.s32 %v4157, %v4159
        %v4161 = vrot.slane %v4153, %v4160
        %v4163 = vunpack.c.l.s4 1983009808
        %v4164 = vunpack.c.0.s8 %v4163
        %v4165 = vlaneseq
        %v4166 = vshrl.u32 %v4165, 7
        %v4167 = vsub.s32 %v4164, %v4166
        %v4168 = vrot.slane %v4154, %v4167
        %v4169 = vcombine.low %v4113, %v4129
        %v4170 = vcombine.high %v4113, %v4129
        %v4172 = vunpack.c.l.s4 1934713408
        %v4173 = vunpack.c.0.s8 %v4172
        %v4174 = vlaneseq
        %v4175 = vshrl.u32 %v4174, 7
        %v4176 = vsub.s32 %v4173, %v4175
        %v4177 = vrot.slane %v4169, %v4176
        %v4179 = vunpack.c.l.s4 1934713408
        %v4180 = vunpack.c.0.s8 %v4179
        %v4181 = vlaneseq
        %v4182 = vshrl.u32 %v4181, 7
        %v4183 = vsub.s32 %v4180, %v4182
        %v4184 = vrot.slane %v4170, %v4183
        %v4185 = vcombine.low %v4120, %v4136
        %v4186 = vcombine.high %v4120, %v4136
        %v4188 = vunpack.c.l.s4 1934713408
        %v4189 = vunpack.c.0.s8 %v4188
        %v4190 = vlaneseq
        %v4191 = vshrl.u32 %v4190, 7
        %v4192 = vsub.s32 %v4189, %v4191
        %v4193 = vrot.slane %v4185, %v4192
        %v4195 = vunpack.c.l.s4 1934713408
        %v4196 = vunpack.c.0.s8 %v4195
        %v4197 = vlaneseq
        %v4198 = vshrl.u32 %v4197, 7
        %v4199 = vsub.s32 %v4196, %v4198
        %v4200 = vrot.slane %v4186, %v4199
        %v4201 = vcombine.low %v4145, %v4161
        %v4202 = vcombine.high %v4145, %v4161
        %v4204 = vunpack.c.l.s4 1934713408
        %v4205 = vunpack.c.0.s8 %v4204
        %v4206 = vlaneseq
        %v4207 = vshrl.u32 %v4206, 7
        %v4208 = vsub.s32 %v4205, %v4207
        %v4209 = vrot.slane %v4201, %v4208
        %v4211 = vunpack.c.l.s4 1934713408
        %v4212 = vunpack.c.0.s8 %v4211
        %v4213 = vlaneseq
        %v4214 = vshrl.u32 %v4213, 7
        %v4215 = vsub.s32 %v4212, %v4214
        %v4216 = vrot.slane %v4202, %v4215
        %v4217 = vcombine.low %v4152, %v4168
        %v4218 = vcombine.high %v4152, %v4168
        %v4220 = vunpack.c.l.s4 1934713408
        %v4221 = vunpack.c.0.s8 %v4220
        %v4222 = vlaneseq
        %v4223 = vshrl.u32 %v4222, 7
        %v4224 = vsub.s32 %v4221, %v4223
        %v4225 = vrot.slane %v4217, %v4224
        %v4227 = vunpack.c.l.s4 1934713408
        %v4228 = vunpack.c.0.s8 %v4227
        %v4229 = vlaneseq
        %v4230 = vshrl.u32 %v4229, 7
        %v4231 = vsub.s32 %v4228, %v4230
        %v4232 = vrot.slane %v4218, %v4231
        %v4233 = vcombine.low %v4177, %v4209
        %v4234 = vcombine.high %v4177, %v4209
        %v4235 = vcombine.low %v4184, %v4216
        %v4236 = vcombine.high %v4184, %v4216
        %v4237 = vcombine.low %v4193, %v4225
        %v4238 = vcombine.high %v4193, %v4225
        %v4239 = vcombine.low %v4200, %v4232
        %v4240 = vcombine.high %v4200, %v4232
        %4242 = vrot.lane.b32.xlu0 %v4098, 16
        %v4243 = vpop.permute.xlu0 %4242
        %4246 = vrot.lane.b32.xlu0 %v4099, 32
        %v4247 = vpop.permute.xlu0 %4246
        %4250 = vrot.lane.b32.xlu0 %v4100, 48
        %v4251 = vpop.permute.xlu0 %4250
        %4254 = vrot.lane.b32.xlu0 %v4101, 64
        %v4255 = vpop.permute.xlu0 %4254
        %4258 = vrot.lane.b32.xlu0 %v4102, 80
        %v4259 = vpop.permute.xlu0 %4258
        %4262 = vrot.lane.b32.xlu0 %v4103, 96
        %v4263 = vpop.permute.xlu0 %4262
        %4266 = vrot.lane.b32.xlu0 %v4104, 112
        %v4267 = vpop.permute.xlu0 %4266
        %4270 = vrot.lane.b32.xlu0 %v4234, 16
        %v4271 = vpop.permute.xlu0 %4270
        %4274 = vrot.lane.b32.xlu0 %v4235, 32
        %v4275 = vpop.permute.xlu0 %4274
        %4278 = vrot.lane.b32.xlu0 %v4236, 48
        %v4279 = vpop.permute.xlu0 %4278
        %4282 = vrot.lane.b32.xlu0 %v4237, 64
        %v4283 = vpop.permute.xlu0 %4282
        %4286 = vrot.lane.b32.xlu0 %v4238, 80
        %v4287 = vpop.permute.xlu0 %4286
        %4290 = vrot.lane.b32.xlu0 %v4239, 96
        %v4291 = vpop.permute.xlu0 %4290
        %4294 = vrot.lane.b32.xlu0 %v4240, 112
        %v4295 = vpop.permute.xlu0 %4294
        %v4297 = vsel %vm723, %v4097, %v4243
        %v4298 = vsel %vm725, %v4297, %v4247
        %v4299 = vsel %vm727, %v4298, %v4251
        %v4300 = vsel %vm729, %v4299, %v4255
        %v4301 = vsel %vm731, %v4300, %v4259
        %v4302 = vsel %vm733, %v4301, %v4263
        %v4303 = vsel %vm735, %v4302, %v4267
        %v4304 = vsel %vm723, %v4233, %v4271
        %v4305 = vsel %vm725, %v4304, %v4275
        %v4306 = vsel %vm727, %v4305, %v4279
        %v4307 = vsel %vm729, %v4306, %v4283
        %v4308 = vsel %vm731, %v4307, %v4287
        %v4309 = vsel %vm733, %v4308, %v4291
        %v4310 = vsel %vm735, %v4309, %v4295
        %4311 = vst [vmem:[#allocation5 + $0x20] sm:$0xff] %v4303
        %4312 = vst [vmem:[#allocation5 + $0x28] sm:$0xff] %v4310
        %v4321 = vrot.slane %v3145, 1
        %v4322 = vrot.slane %v3146, 1
        %v4323 = vsel %vm1228, %v4321, %v4322
        %v4324 = vrot.slane %v3147, 1
        %v4325 = vsel %vm1228, %v4322, %v4324
        %v4326 = vrot.slane %v3148, 1
        %v4327 = vrot.slane %v3149, 1
        %v4328 = vsel %vm1228, %v4326, %v4327
        %v4329 = vrot.slane %v3150, 1
        %v4330 = vsel %vm1228, %v4327, %v4329
        %v4331 = vrot.slane %v3151, 1
        %v4332 = vrot.slane %v3152, 1
        %v4333 = vsel %vm1228, %v4331, %v4332
        %v4334 = vrot.slane %v3153, 1
        %v4335 = vsel %vm1228, %v4332, %v4334
        %v4336 = vrot.slane %v3154, 1
        %v4337 = vrot.slane %v3155, 1
        %v4338 = vsel %vm1228, %v4336, %v4337
        %v4339 = vrot.slane %v3156, 1
        %v4340 = vsel %vm1228, %v4337, %v4339
        %v4341 = vrot.slane %v3157, 1
        %v4342 = vrot.slane %v3158, 1
        %v4343 = vsel %vm1228, %v4341, %v4342
        %v4344 = vrot.slane %v3159, 1
        %v4345 = vsel %vm1228, %v4342, %v4344
        %v4346 = vrot.slane %v3160, 1
        %v4347 = vrot.slane %v3161, 1
        %v4348 = vsel %vm1228, %v4346, %v4347
        %v4349 = vrot.slane %v3162, 1
        %v4350 = vsel %vm1228, %v4347, %v4349
        %v4351 = vrot.slane %v3163, 1
        %v4352 = vrot.slane %v3164, 1
        %v4353 = vsel %vm1228, %v4351, %v4352
        %v4354 = vrot.slane %v3165, 1
        %v4355 = vsel %vm1228, %v4352, %v4354
        %v4356 = vrot.slane %v3166, 1
        %v4357 = vrot.slane %v3167, 1
        %v4358 = vsel %vm1228, %v4356, %v4357
        %v4359 = vrot.slane %v3168, 1
        %v4360 = vsel %vm1228, %v4357, %v4359
        %v4377 = vcombine.low %v4323, %v4333
        %v4378 = vcombine.high %v4323, %v4333
        %v4380 = vunpack.c.l.s4 1983009808
        %v4381 = vunpack.c.0.s8 %v4380
        %v4382 = vlaneseq
        %v4383 = vshrl.u32 %v4382, 7
        %v4384 = vsub.s32 %v4381, %v4383
        %v4385 = vrot.slane %v4377, %v4384
        %v4387 = vunpack.c.l.s4 1983009808
        %v4388 = vunpack.c.0.s8 %v4387
        %v4389 = vlaneseq
        %v4390 = vshrl.u32 %v4389, 7
        %v4391 = vsub.s32 %v4388, %v4390
        %v4392 = vrot.slane %v4378, %v4391
        %v4393 = vcombine.low %v4328, %v4338
        %v4394 = vcombine.high %v4328, %v4338
        %v4396 = vunpack.c.l.s4 1983009808
        %v4397 = vunpack.c.0.s8 %v4396
        %v4398 = vlaneseq
        %v4399 = vshrl.u32 %v4398, 7
        %v4400 = vsub.s32 %v4397, %v4399
        %v4401 = vrot.slane %v4393, %v4400
        %v4403 = vunpack.c.l.s4 1983009808
        %v4404 = vunpack.c.0.s8 %v4403
        %v4405 = vlaneseq
        %v4406 = vshrl.u32 %v4405, 7
        %v4407 = vsub.s32 %v4404, %v4406
        %v4408 = vrot.slane %v4394, %v4407
        %v4409 = vcombine.low %v4343, %v4353
        %v4410 = vcombine.high %v4343, %v4353
        %v4412 = vunpack.c.l.s4 1983009808
        %v4413 = vunpack.c.0.s8 %v4412
        %v4414 = vlaneseq
        %v4415 = vshrl.u32 %v4414, 7
        %v4416 = vsub.s32 %v4413, %v4415
        %v4417 = vrot.slane %v4409, %v4416
        %v4419 = vunpack.c.l.s4 1983009808
        %v4420 = vunpack.c.0.s8 %v4419
        %v4421 = vlaneseq
        %v4422 = vshrl.u32 %v4421, 7
        %v4423 = vsub.s32 %v4420, %v4422
        %v4424 = vrot.slane %v4410, %v4423
        %v4425 = vcombine.low %v4348, %v4358
        %v4426 = vcombine.high %v4348, %v4358
        %v4428 = vunpack.c.l.s4 1983009808
        %v4429 = vunpack.c.0.s8 %v4428
        %v4430 = vlaneseq
        %v4431 = vshrl.u32 %v4430, 7
        %v4432 = vsub.s32 %v4429, %v4431
        %v4433 = vrot.slane %v4425, %v4432
        %v4435 = vunpack.c.l.s4 1983009808
        %v4436 = vunpack.c.0.s8 %v4435
        %v4437 = vlaneseq
        %v4438 = vshrl.u32 %v4437, 7
        %v4439 = vsub.s32 %v4436, %v4438
        %v4440 = vrot.slane %v4426, %v4439
        %v4441 = vcombine.low %v4385, %v4401
        %v4442 = vcombine.high %v4385, %v4401
        %v4444 = vunpack.c.l.s4 1934713408
        %v4445 = vunpack.c.0.s8 %v4444
        %v4446 = vlaneseq
        %v4447 = vshrl.u32 %v4446, 7
        %v4448 = vsub.s32 %v4445, %v4447
        %v4449 = vrot.slane %v4441, %v4448
        %v4451 = vunpack.c.l.s4 1934713408
        %v4452 = vunpack.c.0.s8 %v4451
        %v4453 = vlaneseq
        %v4454 = vshrl.u32 %v4453, 7
        %v4455 = vsub.s32 %v4452, %v4454
        %v4456 = vrot.slane %v4442, %v4455
        %v4457 = vcombine.low %v4392, %v4408
        %v4458 = vcombine.high %v4392, %v4408
        %v4460 = vunpack.c.l.s4 1934713408
        %v4461 = vunpack.c.0.s8 %v4460
        %v4462 = vlaneseq
        %v4463 = vshrl.u32 %v4462, 7
        %v4464 = vsub.s32 %v4461, %v4463
        %v4465 = vrot.slane %v4457, %v4464
        %v4467 = vunpack.c.l.s4 1934713408
        %v4468 = vunpack.c.0.s8 %v4467
        %v4469 = vlaneseq
        %v4470 = vshrl.u32 %v4469, 7
        %v4471 = vsub.s32 %v4468, %v4470
        %v4472 = vrot.slane %v4458, %v4471
        %v4473 = vcombine.low %v4417, %v4433
        %v4474 = vcombine.high %v4417, %v4433
        %v4476 = vunpack.c.l.s4 1934713408
        %v4477 = vunpack.c.0.s8 %v4476
        %v4478 = vlaneseq
        %v4479 = vshrl.u32 %v4478, 7
        %v4480 = vsub.s32 %v4477, %v4479
        %v4481 = vrot.slane %v4473, %v4480
        %v4483 = vunpack.c.l.s4 1934713408
        %v4484 = vunpack.c.0.s8 %v4483
        %v4485 = vlaneseq
        %v4486 = vshrl.u32 %v4485, 7
        %v4487 = vsub.s32 %v4484, %v4486
        %v4488 = vrot.slane %v4474, %v4487
        %v4489 = vcombine.low %v4424, %v4440
        %v4490 = vcombine.high %v4424, %v4440
        %v4492 = vunpack.c.l.s4 1934713408
        %v4493 = vunpack.c.0.s8 %v4492
        %v4494 = vlaneseq
        %v4495 = vshrl.u32 %v4494, 7
        %v4496 = vsub.s32 %v4493, %v4495
        %v4497 = vrot.slane %v4489, %v4496
        %v4499 = vunpack.c.l.s4 1934713408
        %v4500 = vunpack.c.0.s8 %v4499
        %v4501 = vlaneseq
        %v4502 = vshrl.u32 %v4501, 7
        %v4503 = vsub.s32 %v4500, %v4502
        %v4504 = vrot.slane %v4490, %v4503
        %v4505 = vcombine.low %v4449, %v4481
        %v4506 = vcombine.high %v4449, %v4481
        %v4507 = vcombine.low %v4456, %v4488
        %v4508 = vcombine.high %v4456, %v4488
        %v4509 = vcombine.low %v4465, %v4497
        %v4510 = vcombine.high %v4465, %v4497
        %v4511 = vcombine.low %v4472, %v4504
        %v4512 = vcombine.high %v4472, %v4504
        %v4513 = vcombine.low %v4325, %v4335
        %v4514 = vcombine.high %v4325, %v4335
        %v4516 = vunpack.c.l.s4 1983009808
        %v4517 = vunpack.c.0.s8 %v4516
        %v4518 = vlaneseq
        %v4519 = vshrl.u32 %v4518, 7
        %v4520 = vsub.s32 %v4517, %v4519
        %v4521 = vrot.slane %v4513, %v4520
        %v4523 = vunpack.c.l.s4 1983009808
        %v4524 = vunpack.c.0.s8 %v4523
        %v4525 = vlaneseq
        %v4526 = vshrl.u32 %v4525, 7
        %v4527 = vsub.s32 %v4524, %v4526
        %v4528 = vrot.slane %v4514, %v4527
        %v4529 = vcombine.low %v4330, %v4340
        %v4530 = vcombine.high %v4330, %v4340
        %v4532 = vunpack.c.l.s4 1983009808
        %v4533 = vunpack.c.0.s8 %v4532
        %v4534 = vlaneseq
        %v4535 = vshrl.u32 %v4534, 7
        %v4536 = vsub.s32 %v4533, %v4535
        %v4537 = vrot.slane %v4529, %v4536
        %v4539 = vunpack.c.l.s4 1983009808
        %v4540 = vunpack.c.0.s8 %v4539
        %v4541 = vlaneseq
        %v4542 = vshrl.u32 %v4541, 7
        %v4543 = vsub.s32 %v4540, %v4542
        %v4544 = vrot.slane %v4530, %v4543
        %v4545 = vcombine.low %v4345, %v4355
        %v4546 = vcombine.high %v4345, %v4355
        %v4548 = vunpack.c.l.s4 1983009808
        %v4549 = vunpack.c.0.s8 %v4548
        %v4550 = vlaneseq
        %v4551 = vshrl.u32 %v4550, 7
        %v4552 = vsub.s32 %v4549, %v4551
        %v4553 = vrot.slane %v4545, %v4552
        %v4555 = vunpack.c.l.s4 1983009808
        %v4556 = vunpack.c.0.s8 %v4555
        %v4557 = vlaneseq
        %v4558 = vshrl.u32 %v4557, 7
        %v4559 = vsub.s32 %v4556, %v4558
        %v4560 = vrot.slane %v4546, %v4559
        %v4561 = vcombine.low %v4350, %v4360
        %v4562 = vcombine.high %v4350, %v4360
        %v4564 = vunpack.c.l.s4 1983009808
        %v4565 = vunpack.c.0.s8 %v4564
        %v4566 = vlaneseq
        %v4567 = vshrl.u32 %v4566, 7
        %v4568 = vsub.s32 %v4565, %v4567
        %v4569 = vrot.slane %v4561, %v4568
        %v4571 = vunpack.c.l.s4 1983009808
        %v4572 = vunpack.c.0.s8 %v4571
        %v4573 = vlaneseq
        %v4574 = vshrl.u32 %v4573, 7
        %v4575 = vsub.s32 %v4572, %v4574
        %v4576 = vrot.slane %v4562, %v4575
        %v4577 = vcombine.low %v4521, %v4537
        %v4578 = vcombine.high %v4521, %v4537
        %v4580 = vunpack.c.l.s4 1934713408
        %v4581 = vunpack.c.0.s8 %v4580
        %v4582 = vlaneseq
        %v4583 = vshrl.u32 %v4582, 7
        %v4584 = vsub.s32 %v4581, %v4583
        %v4585 = vrot.slane %v4577, %v4584
        %v4587 = vunpack.c.l.s4 1934713408
        %v4588 = vunpack.c.0.s8 %v4587
        %v4589 = vlaneseq
        %v4590 = vshrl.u32 %v4589, 7
        %v4591 = vsub.s32 %v4588, %v4590
        %v4592 = vrot.slane %v4578, %v4591
        %v4593 = vcombine.low %v4528, %v4544
        %v4594 = vcombine.high %v4528, %v4544
        %v4596 = vunpack.c.l.s4 1934713408
        %v4597 = vunpack.c.0.s8 %v4596
        %v4598 = vlaneseq
        %v4599 = vshrl.u32 %v4598, 7
        %v4600 = vsub.s32 %v4597, %v4599
        %v4601 = vrot.slane %v4593, %v4600
        %v4603 = vunpack.c.l.s4 1934713408
        %v4604 = vunpack.c.0.s8 %v4603
        %v4605 = vlaneseq
        %v4606 = vshrl.u32 %v4605, 7
        %v4607 = vsub.s32 %v4604, %v4606
        %v4608 = vrot.slane %v4594, %v4607
        %v4609 = vcombine.low %v4553, %v4569
        %v4610 = vcombine.high %v4553, %v4569
        %v4612 = vunpack.c.l.s4 1934713408
        %v4613 = vunpack.c.0.s8 %v4612
        %v4614 = vlaneseq
        %v4615 = vshrl.u32 %v4614, 7
        %v4616 = vsub.s32 %v4613, %v4615
        %v4617 = vrot.slane %v4609, %v4616
        %v4619 = vunpack.c.l.s4 1934713408
        %v4620 = vunpack.c.0.s8 %v4619
        %v4621 = vlaneseq
        %v4622 = vshrl.u32 %v4621, 7
        %v4623 = vsub.s32 %v4620, %v4622
        %v4624 = vrot.slane %v4610, %v4623
        %v4625 = vcombine.low %v4560, %v4576
        %v4626 = vcombine.high %v4560, %v4576
        %v4628 = vunpack.c.l.s4 1934713408
        %v4629 = vunpack.c.0.s8 %v4628
        %v4630 = vlaneseq
        %v4631 = vshrl.u32 %v4630, 7
        %v4632 = vsub.s32 %v4629, %v4631
        %v4633 = vrot.slane %v4625, %v4632
        %v4635 = vunpack.c.l.s4 1934713408
        %v4636 = vunpack.c.0.s8 %v4635
        %v4637 = vlaneseq
        %v4638 = vshrl.u32 %v4637, 7
        %v4639 = vsub.s32 %v4636, %v4638
        %v4640 = vrot.slane %v4626, %v4639
        %v4641 = vcombine.low %v4585, %v4617
        %v4642 = vcombine.high %v4585, %v4617
        %v4643 = vcombine.low %v4592, %v4624
        %v4644 = vcombine.high %v4592, %v4624
        %v4645 = vcombine.low %v4601, %v4633
        %v4646 = vcombine.high %v4601, %v4633
        %v4647 = vcombine.low %v4608, %v4640
        %v4648 = vcombine.high %v4608, %v4640
        %4650 = vrot.lane.b32.xlu0 %v4506, 16
        %v4651 = vpop.permute.xlu0 %4650
        %4654 = vrot.lane.b32.xlu0 %v4507, 32
        %v4655 = vpop.permute.xlu0 %4654
        %4658 = vrot.lane.b32.xlu0 %v4508, 48
        %v4659 = vpop.permute.xlu0 %4658
        %4662 = vrot.lane.b32.xlu0 %v4509, 64
        %v4663 = vpop.permute.xlu0 %4662
        %4666 = vrot.lane.b32.xlu0 %v4510, 80
        %v4667 = vpop.permute.xlu0 %4666
        %4670 = vrot.lane.b32.xlu0 %v4511, 96
        %v4671 = vpop.permute.xlu0 %4670
        %4674 = vrot.lane.b32.xlu0 %v4512, 112
        %v4675 = vpop.permute.xlu0 %4674
        %4678 = vrot.lane.b32.xlu0 %v4642, 16
        %v4679 = vpop.permute.xlu0 %4678
        %4682 = vrot.lane.b32.xlu0 %v4643, 32
        %v4683 = vpop.permute.xlu0 %4682
        %4686 = vrot.lane.b32.xlu0 %v4644, 48
        %v4687 = vpop.permute.xlu0 %4686
        %4690 = vrot.lane.b32.xlu0 %v4645, 64
        %v4691 = vpop.permute.xlu0 %4690
        %4694 = vrot.lane.b32.xlu0 %v4646, 80
        %v4695 = vpop.permute.xlu0 %4694
        %4698 = vrot.lane.b32.xlu0 %v4647, 96
        %v4699 = vpop.permute.xlu0 %4698
        %4702 = vrot.lane.b32.xlu0 %v4648, 112
        %v4703 = vpop.permute.xlu0 %4702
        %v4705 = vsel %vm723, %v4505, %v4651
        %v4706 = vsel %vm725, %v4705, %v4655
        %v4707 = vsel %vm727, %v4706, %v4659
        %v4708 = vsel %vm729, %v4707, %v4663
        %v4709 = vsel %vm731, %v4708, %v4667
        %v4710 = vsel %vm733, %v4709, %v4671
        %v4711 = vsel %vm735, %v4710, %v4675
        %v4712 = vsel %vm723, %v4641, %v4679
        %v4713 = vsel %vm725, %v4712, %v4683
        %v4714 = vsel %vm727, %v4713, %v4687
        %v4715 = vsel %vm729, %v4714, %v4691
        %v4716 = vsel %vm731, %v4715, %v4695
        %v4717 = vsel %vm733, %v4716, %v4699
        %v4718 = vsel %vm735, %v4717, %v4703
        %4719 = vst [vmem:[#allocation5 + $0x30] sm:$0xff] %v4711
        %4720 = vst [vmem:[#allocation5 + $0x38] sm:$0xff] %v4718
        %4721 = vrot.lane.b32.xlu0 %v4323, 127
        %v4722 = vpop.permute.xlu0 %4721
        %4723 = vrot.lane.b32.xlu0 %v4325, 127
        %v4724 = vpop.permute.xlu0 %4723
        %4725 = vrot.lane.b32.xlu0 %v4328, 127
        %v4726 = vpop.permute.xlu0 %4725
        %4727 = vrot.lane.b32.xlu0 %v4330, 127
        %v4728 = vpop.permute.xlu0 %4727
        %4729 = vrot.lane.b32.xlu0 %v4333, 127
        %v4730 = vpop.permute.xlu0 %4729
        %4731 = vrot.lane.b32.xlu0 %v4335, 127
        %v4732 = vpop.permute.xlu0 %4731
        %4733 = vrot.lane.b32.xlu0 %v4338, 127
        %v4734 = vpop.permute.xlu0 %4733
        %4735 = vrot.lane.b32.xlu0 %v4340, 127
        %v4736 = vpop.permute.xlu0 %4735
        %4737 = vrot.lane.b32.xlu0 %v4343, 127
        %v4738 = vpop.permute.xlu0 %4737
        %4739 = vrot.lane.b32.xlu0 %v4345, 127
        %v4740 = vpop.permute.xlu0 %4739
        %4741 = vrot.lane.b32.xlu0 %v4348, 127
        %v4742 = vpop.permute.xlu0 %4741
        %4743 = vrot.lane.b32.xlu0 %v4350, 127
        %v4744 = vpop.permute.xlu0 %4743
        %4745 = vrot.lane.b32.xlu0 %v4353, 127
        %v4746 = vpop.permute.xlu0 %4745
        %4747 = vrot.lane.b32.xlu0 %v4355, 127
        %v4748 = vpop.permute.xlu0 %4747
        %4749 = vrot.lane.b32.xlu0 %v4358, 127
        %v4750 = vpop.permute.xlu0 %4749
        %4751 = vrot.lane.b32.xlu0 %v4360, 127
        %v4752 = vpop.permute.xlu0 %4751
        %v4769 = vcombine.low %v4722, %v4730
        %v4770 = vcombine.high %v4722, %v4730
        %v4772 = vunpack.c.l.s4 1983009808
        %v4773 = vunpack.c.0.s8 %v4772
        %v4774 = vlaneseq
        %v4775 = vshrl.u32 %v4774, 7
        %v4776 = vsub.s32 %v4773, %v4775
        %v4777 = vrot.slane %v4769, %v4776
        %v4779 = vunpack.c.l.s4 1983009808
        %v4780 = vunpack.c.0.s8 %v4779
        %v4781 = vlaneseq
        %v4782 = vshrl.u32 %v4781, 7
        %v4783 = vsub.s32 %v4780, %v4782
        %v4784 = vrot.slane %v4770, %v4783
        %v4785 = vcombine.low %v4726, %v4734
        %v4786 = vcombine.high %v4726, %v4734
        %v4788 = vunpack.c.l.s4 1983009808
        %v4789 = vunpack.c.0.s8 %v4788
        %v4790 = vlaneseq
        %v4791 = vshrl.u32 %v4790, 7
        %v4792 = vsub.s32 %v4789, %v4791
        %v4793 = vrot.slane %v4785, %v4792
        %v4795 = vunpack.c.l.s4 1983009808
        %v4796 = vunpack.c.0.s8 %v4795
        %v4797 = vlaneseq
        %v4798 = vshrl.u32 %v4797, 7
        %v4799 = vsub.s32 %v4796, %v4798
        %v4800 = vrot.slane %v4786, %v4799
        %v4801 = vcombine.low %v4738, %v4746
        %v4802 = vcombine.high %v4738, %v4746
        %v4804 = vunpack.c.l.s4 1983009808
        %v4805 = vunpack.c.0.s8 %v4804
        %v4806 = vlaneseq
        %v4807 = vshrl.u32 %v4806, 7
        %v4808 = vsub.s32 %v4805, %v4807
        %v4809 = vrot.slane %v4801, %v4808
        %v4811 = vunpack.c.l.s4 1983009808
        %v4812 = vunpack.c.0.s8 %v4811
        %v4813 = vlaneseq
        %v4814 = vshrl.u32 %v4813, 7
        %v4815 = vsub.s32 %v4812, %v4814
        %v4816 = vrot.slane %v4802, %v4815
        %v4817 = vcombine.low %v4742, %v4750
        %v4818 = vcombine.high %v4742, %v4750
        %v4820 = vunpack.c.l.s4 1983009808
        %v4821 = vunpack.c.0.s8 %v4820
        %v4822 = vlaneseq
        %v4823 = vshrl.u32 %v4822, 7
        %v4824 = vsub.s32 %v4821, %v4823
        %v4825 = vrot.slane %v4817, %v4824
        %v4827 = vunpack.c.l.s4 1983009808
        %v4828 = vunpack.c.0.s8 %v4827
        %v4829 = vlaneseq
        %v4830 = vshrl.u32 %v4829, 7
        %v4831 = vsub.s32 %v4828, %v4830
        %v4832 = vrot.slane %v4818, %v4831
        %v4833 = vcombine.low %v4777, %v4793
        %v4834 = vcombine.high %v4777, %v4793
        %v4836 = vunpack.c.l.s4 1934713408
        %v4837 = vunpack.c.0.s8 %v4836
        %v4838 = vlaneseq
        %v4839 = vshrl.u32 %v4838, 7
        %v4840 = vsub.s32 %v4837, %v4839
        %v4841 = vrot.slane %v4833, %v4840
        %v4843 = vunpack.c.l.s4 1934713408
        %v4844 = vunpack.c.0.s8 %v4843
        %v4845 = vlaneseq
        %v4846 = vshrl.u32 %v4845, 7
        %v4847 = vsub.s32 %v4844, %v4846
        %v4848 = vrot.slane %v4834, %v4847
        %v4849 = vcombine.low %v4784, %v4800
        %v4850 = vcombine.high %v4784, %v4800
        %v4852 = vunpack.c.l.s4 1934713408
        %v4853 = vunpack.c.0.s8 %v4852
        %v4854 = vlaneseq
        %v4855 = vshrl.u32 %v4854, 7
        %v4856 = vsub.s32 %v4853, %v4855
        %v4857 = vrot.slane %v4849, %v4856
        %v4859 = vunpack.c.l.s4 1934713408
        %v4860 = vunpack.c.0.s8 %v4859
        %v4861 = vlaneseq
        %v4862 = vshrl.u32 %v4861, 7
        %v4863 = vsub.s32 %v4860, %v4862
        %v4864 = vrot.slane %v4850, %v4863
        %v4865 = vcombine.low %v4809, %v4825
        %v4866 = vcombine.high %v4809, %v4825
        %v4868 = vunpack.c.l.s4 1934713408
        %v4869 = vunpack.c.0.s8 %v4868
        %v4870 = vlaneseq
        %v4871 = vshrl.u32 %v4870, 7
        %v4872 = vsub.s32 %v4869, %v4871
        %v4873 = vrot.slane %v4865, %v4872
        %v4875 = vunpack.c.l.s4 1934713408
        %v4876 = vunpack.c.0.s8 %v4875
        %v4877 = vlaneseq
        %v4878 = vshrl.u32 %v4877, 7
        %v4879 = vsub.s32 %v4876, %v4878
        %v4880 = vrot.slane %v4866, %v4879
        %v4881 = vcombine.low %v4816, %v4832
        %v4882 = vcombine.high %v4816, %v4832
        %v4884 = vunpack.c.l.s4 1934713408
        %v4885 = vunpack.c.0.s8 %v4884
        %v4886 = vlaneseq
        %v4887 = vshrl.u32 %v4886, 7
        %v4888 = vsub.s32 %v4885, %v4887
        %v4889 = vrot.slane %v4881, %v4888
        %v4891 = vunpack.c.l.s4 1934713408
        %v4892 = vunpack.c.0.s8 %v4891
        %v4893 = vlaneseq
        %v4894 = vshrl.u32 %v4893, 7
        %v4895 = vsub.s32 %v4892, %v4894
        %v4896 = vrot.slane %v4882, %v4895
        %v4897 = vcombine.low %v4841, %v4873
        %v4898 = vcombine.high %v4841, %v4873
        %v4899 = vcombine.low %v4848, %v4880
        %v4900 = vcombine.high %v4848, %v4880
        %v4901 = vcombine.low %v4857, %v4889
        %v4902 = vcombine.high %v4857, %v4889
        %v4903 = vcombine.low %v4864, %v4896
        %v4904 = vcombine.high %v4864, %v4896
        %v4905 = vcombine.low %v4724, %v4732
        %v4906 = vcombine.high %v4724, %v4732
        %v4908 = vunpack.c.l.s4 1983009808
        %v4909 = vunpack.c.0.s8 %v4908
        %v4910 = vlaneseq
        %v4911 = vshrl.u32 %v4910, 7
        %v4912 = vsub.s32 %v4909, %v4911
        %v4913 = vrot.slane %v4905, %v4912
        %v4915 = vunpack.c.l.s4 1983009808
        %v4916 = vunpack.c.0.s8 %v4915
        %v4917 = vlaneseq
        %v4918 = vshrl.u32 %v4917, 7
        %v4919 = vsub.s32 %v4916, %v4918
        %v4920 = vrot.slane %v4906, %v4919
        %v4921 = vcombine.low %v4728, %v4736
        %v4922 = vcombine.high %v4728, %v4736
        %v4924 = vunpack.c.l.s4 1983009808
        %v4925 = vunpack.c.0.s8 %v4924
        %v4926 = vlaneseq
        %v4927 = vshrl.u32 %v4926, 7
        %v4928 = vsub.s32 %v4925, %v4927
        %v4929 = vrot.slane %v4921, %v4928
        %v4931 = vunpack.c.l.s4 1983009808
        %v4932 = vunpack.c.0.s8 %v4931
        %v4933 = vlaneseq
        %v4934 = vshrl.u32 %v4933, 7
        %v4935 = vsub.s32 %v4932, %v4934
        %v4936 = vrot.slane %v4922, %v4935
        %v4937 = vcombine.low %v4740, %v4748
        %v4938 = vcombine.high %v4740, %v4748
        %v4940 = vunpack.c.l.s4 1983009808
        %v4941 = vunpack.c.0.s8 %v4940
        %v4942 = vlaneseq
        %v4943 = vshrl.u32 %v4942, 7
        %v4944 = vsub.s32 %v4941, %v4943
        %v4945 = vrot.slane %v4937, %v4944
        %v4947 = vunpack.c.l.s4 1983009808
        %v4948 = vunpack.c.0.s8 %v4947
        %v4949 = vlaneseq
        %v4950 = vshrl.u32 %v4949, 7
        %v4951 = vsub.s32 %v4948, %v4950
        %v4952 = vrot.slane %v4938, %v4951
        %v4953 = vcombine.low %v4744, %v4752
        %v4954 = vcombine.high %v4744, %v4752
        %v4956 = vunpack.c.l.s4 1983009808
        %v4957 = vunpack.c.0.s8 %v4956
        %v4958 = vlaneseq
        %v4959 = vshrl.u32 %v4958, 7
        %v4960 = vsub.s32 %v4957, %v4959
        %v4961 = vrot.slane %v4953, %v4960
        %v4963 = vunpack.c.l.s4 1983009808
        %v4964 = vunpack.c.0.s8 %v4963
        %v4965 = vlaneseq
        %v4966 = vshrl.u32 %v4965, 7
        %v4967 = vsub.s32 %v4964, %v4966
        %v4968 = vrot.slane %v4954, %v4967
        %v4969 = vcombine.low %v4913, %v4929
        %v4970 = vcombine.high %v4913, %v4929
        %v4972 = vunpack.c.l.s4 1934713408
        %v4973 = vunpack.c.0.s8 %v4972
        %v4974 = vlaneseq
        %v4975 = vshrl.u32 %v4974, 7
        %v4976 = vsub.s32 %v4973, %v4975
        %v4977 = vrot.slane %v4969, %v4976
        %v4979 = vunpack.c.l.s4 1934713408
        %v4980 = vunpack.c.0.s8 %v4979
        %v4981 = vlaneseq
        %v4982 = vshrl.u32 %v4981, 7
        %v4983 = vsub.s32 %v4980, %v4982
        %v4984 = vrot.slane %v4970, %v4983
        %v4985 = vcombine.low %v4920, %v4936
        %v4986 = vcombine.high %v4920, %v4936
        %v4988 = vunpack.c.l.s4 1934713408
        %v4989 = vunpack.c.0.s8 %v4988
        %v4990 = vlaneseq
        %v4991 = vshrl.u32 %v4990, 7
        %v4992 = vsub.s32 %v4989, %v4991
        %v4993 = vrot.slane %v4985, %v4992
        %v4995 = vunpack.c.l.s4 1934713408
        %v4996 = vunpack.c.0.s8 %v4995
        %v4997 = vlaneseq
        %v4998 = vshrl.u32 %v4997, 7
        %v4999 = vsub.s32 %v4996, %v4998
        %v5000 = vrot.slane %v4986, %v4999
        %v5001 = vcombine.low %v4945, %v4961
        %v5002 = vcombine.high %v4945, %v4961
        %v5004 = vunpack.c.l.s4 1934713408
        %v5005 = vunpack.c.0.s8 %v5004
        %v5006 = vlaneseq
        %v5007 = vshrl.u32 %v5006, 7
        %v5008 = vsub.s32 %v5005, %v5007
        %v5009 = vrot.slane %v5001, %v5008
        %v5011 = vunpack.c.l.s4 1934713408
        %v5012 = vunpack.c.0.s8 %v5011
        %v5013 = vlaneseq
        %v5014 = vshrl.u32 %v5013, 7
        %v5015 = vsub.s32 %v5012, %v5014
        %v5016 = vrot.slane %v5002, %v5015
        %v5017 = vcombine.low %v4952, %v4968
        %v5018 = vcombine.high %v4952, %v4968
        %v5020 = vunpack.c.l.s4 1934713408
        %v5021 = vunpack.c.0.s8 %v5020
        %v5022 = vlaneseq
        %v5023 = vshrl.u32 %v5022, 7
        %v5024 = vsub.s32 %v5021, %v5023
        %v5025 = vrot.slane %v5017, %v5024
        %v5027 = vunpack.c.l.s4 1934713408
        %v5028 = vunpack.c.0.s8 %v5027
        %v5029 = vlaneseq
        %v5030 = vshrl.u32 %v5029, 7
        %v5031 = vsub.s32 %v5028, %v5030
        %v5032 = vrot.slane %v5018, %v5031
        %v5033 = vcombine.low %v4977, %v5009
        %v5034 = vcombine.high %v4977, %v5009
        %v5035 = vcombine.low %v4984, %v5016
        %v5036 = vcombine.high %v4984, %v5016
        %v5037 = vcombine.low %v4993, %v5025
        %v5038 = vcombine.high %v4993, %v5025
        %v5039 = vcombine.low %v5000, %v5032
        %v5040 = vcombine.high %v5000, %v5032
        %5042 = vrot.lane.b32.xlu0 %v4898, 16
        %v5043 = vpop.permute.xlu0 %5042
        %5046 = vrot.lane.b32.xlu0 %v4899, 32
        %v5047 = vpop.permute.xlu0 %5046
        %5050 = vrot.lane.b32.xlu0 %v4900, 48
        %v5051 = vpop.permute.xlu0 %5050
        %5054 = vrot.lane.b32.xlu0 %v4901, 64
        %v5055 = vpop.permute.xlu0 %5054
        %5058 = vrot.lane.b32.xlu0 %v4902, 80
        %v5059 = vpop.permute.xlu0 %5058
        %5062 = vrot.lane.b32.xlu0 %v4903, 96
        %v5063 = vpop.permute.xlu0 %5062
        %5066 = vrot.lane.b32.xlu0 %v4904, 112
        %v5067 = vpop.permute.xlu0 %5066
        %5070 = vrot.lane.b32.xlu0 %v5034, 16
        %v5071 = vpop.permute.xlu0 %5070
        %5074 = vrot.lane.b32.xlu0 %v5035, 32
        %v5075 = vpop.permute.xlu0 %5074
        %5078 = vrot.lane.b32.xlu0 %v5036, 48
        %v5079 = vpop.permute.xlu0 %5078
        %5082 = vrot.lane.b32.xlu0 %v5037, 64
        %v5083 = vpop.permute.xlu0 %5082
        %5086 = vrot.lane.b32.xlu0 %v5038, 80
        %v5087 = vpop.permute.xlu0 %5086
        %5090 = vrot.lane.b32.xlu0 %v5039, 96
        %v5091 = vpop.permute.xlu0 %5090
        %5094 = vrot.lane.b32.xlu0 %v5040, 112
        %v5095 = vpop.permute.xlu0 %5094
        %v5097 = vsel %vm723, %v4897, %v5043
        %v5098 = vsel %vm725, %v5097, %v5047
        %v5099 = vsel %vm727, %v5098, %v5051
        %v5100 = vsel %vm729, %v5099, %v5055
        %v5101 = vsel %vm731, %v5100, %v5059
        %v5102 = vsel %vm733, %v5101, %v5063
        %v5103 = vsel %vm735, %v5102, %v5067
        %v5104 = vsel %vm723, %v5033, %v5071
        %v5105 = vsel %vm725, %v5104, %v5075
        %v5106 = vsel %vm727, %v5105, %v5079
        %v5107 = vsel %vm729, %v5106, %v5083
        %v5108 = vsel %vm731, %v5107, %v5087
        %v5109 = vsel %vm733, %v5108, %v5091
        %v5110 = vsel %vm735, %v5109, %v5095
        %5111 = vst [vmem:[#allocation5 + $0x40] sm:$0xff] %v5103
        %5112 = vst [vmem:[#allocation5 + $0x48] sm:$0xff] %v5110
        %5113 = vrot.lane.b32.xlu0 %v4323, 126
        %v5114 = vpop.permute.xlu0 %5113
        %5115 = vrot.lane.b32.xlu0 %v4325, 126
        %v5116 = vpop.permute.xlu0 %5115
        %5117 = vrot.lane.b32.xlu0 %v4328, 126
        %v5118 = vpop.permute.xlu0 %5117
        %5119 = vrot.lane.b32.xlu0 %v4330, 126
        %v5120 = vpop.permute.xlu0 %5119
        %5121 = vrot.lane.b32.xlu0 %v4333, 126
        %v5122 = vpop.permute.xlu0 %5121
        %5123 = vrot.lane.b32.xlu0 %v4335, 126
        %v5124 = vpop.permute.xlu0 %5123
        %5125 = vrot.lane.b32.xlu0 %v4338, 126
        %v5126 = vpop.permute.xlu0 %5125
        %5127 = vrot.lane.b32.xlu0 %v4340, 126
        %v5128 = vpop.permute.xlu0 %5127
        %5129 = vrot.lane.b32.xlu0 %v4343, 126
        %v5130 = vpop.permute.xlu0 %5129
        %5131 = vrot.lane.b32.xlu0 %v4345, 126
        %v5132 = vpop.permute.xlu0 %5131
        %5133 = vrot.lane.b32.xlu0 %v4348, 126
        %v5134 = vpop.permute.xlu0 %5133
        %5135 = vrot.lane.b32.xlu0 %v4350, 126
        %v5136 = vpop.permute.xlu0 %5135
        %5137 = vrot.lane.b32.xlu0 %v4353, 126
        %v5138 = vpop.permute.xlu0 %5137
        %5139 = vrot.lane.b32.xlu0 %v4355, 126
        %v5140 = vpop.permute.xlu0 %5139
        %5141 = vrot.lane.b32.xlu0 %v4358, 126
        %v5142 = vpop.permute.xlu0 %5141
        %5143 = vrot.lane.b32.xlu0 %v4360, 126
        %v5144 = vpop.permute.xlu0 %5143
        %v5161 = vcombine.low %v5114, %v5122
        %v5162 = vcombine.high %v5114, %v5122
        %v5164 = vunpack.c.l.s4 1983009808
        %v5165 = vunpack.c.0.s8 %v5164
        %v5166 = vlaneseq
        %v5167 = vshrl.u32 %v5166, 7
        %v5168 = vsub.s32 %v5165, %v5167
        %v5169 = vrot.slane %v5161, %v5168
        %v5171 = vunpack.c.l.s4 1983009808
        %v5172 = vunpack.c.0.s8 %v5171
        %v5173 = vlaneseq
        %v5174 = vshrl.u32 %v5173, 7
        %v5175 = vsub.s32 %v5172, %v5174
        %v5176 = vrot.slane %v5162, %v5175
        %v5177 = vcombine.low %v5118, %v5126
        %v5178 = vcombine.high %v5118, %v5126
        %v5180 = vunpack.c.l.s4 1983009808
        %v5181 = vunpack.c.0.s8 %v5180
        %v5182 = vlaneseq
        %v5183 = vshrl.u32 %v5182, 7
        %v5184 = vsub.s32 %v5181, %v5183
        %v5185 = vrot.slane %v5177, %v5184
        %v5187 = vunpack.c.l.s4 1983009808
        %v5188 = vunpack.c.0.s8 %v5187
        %v5189 = vlaneseq
        %v5190 = vshrl.u32 %v5189, 7
        %v5191 = vsub.s32 %v5188, %v5190
        %v5192 = vrot.slane %v5178, %v5191
        %v5193 = vcombine.low %v5130, %v5138
        %v5194 = vcombine.high %v5130, %v5138
        %v5196 = vunpack.c.l.s4 1983009808
        %v5197 = vunpack.c.0.s8 %v5196
        %v5198 = vlaneseq
        %v5199 = vshrl.u32 %v5198, 7
        %v5200 = vsub.s32 %v5197, %v5199
        %v5201 = vrot.slane %v5193, %v5200
        %v5203 = vunpack.c.l.s4 1983009808
        %v5204 = vunpack.c.0.s8 %v5203
        %v5205 = vlaneseq
        %v5206 = vshrl.u32 %v5205, 7
        %v5207 = vsub.s32 %v5204, %v5206
        %v5208 = vrot.slane %v5194, %v5207
        %v5209 = vcombine.low %v5134, %v5142
        %v5210 = vcombine.high %v5134, %v5142
        %v5212 = vunpack.c.l.s4 1983009808
        %v5213 = vunpack.c.0.s8 %v5212
        %v5214 = vlaneseq
        %v5215 = vshrl.u32 %v5214, 7
        %v5216 = vsub.s32 %v5213, %v5215
        %v5217 = vrot.slane %v5209, %v5216
        %v5219 = vunpack.c.l.s4 1983009808
        %v5220 = vunpack.c.0.s8 %v5219
        %v5221 = vlaneseq
        %v5222 = vshrl.u32 %v5221, 7
        %v5223 = vsub.s32 %v5220, %v5222
        %v5224 = vrot.slane %v5210, %v5223
        %v5225 = vcombine.low %v5169, %v5185
        %v5226 = vcombine.high %v5169, %v5185
        %v5228 = vunpack.c.l.s4 1934713408
        %v5229 = vunpack.c.0.s8 %v5228
        %v5230 = vlaneseq
        %v5231 = vshrl.u32 %v5230, 7
        %v5232 = vsub.s32 %v5229, %v5231
        %v5233 = vrot.slane %v5225, %v5232
        %v5235 = vunpack.c.l.s4 1934713408
        %v5236 = vunpack.c.0.s8 %v5235
        %v5237 = vlaneseq
        %v5238 = vshrl.u32 %v5237, 7
        %v5239 = vsub.s32 %v5236, %v5238
        %v5240 = vrot.slane %v5226, %v5239
        %v5241 = vcombine.low %v5176, %v5192
        %v5242 = vcombine.high %v5176, %v5192
        %v5244 = vunpack.c.l.s4 1934713408
        %v5245 = vunpack.c.0.s8 %v5244
        %v5246 = vlaneseq
        %v5247 = vshrl.u32 %v5246, 7
        %v5248 = vsub.s32 %v5245, %v5247
        %v5249 = vrot.slane %v5241, %v5248
        %v5251 = vunpack.c.l.s4 1934713408
        %v5252 = vunpack.c.0.s8 %v5251
        %v5253 = vlaneseq
        %v5254 = vshrl.u32 %v5253, 7
        %v5255 = vsub.s32 %v5252, %v5254
        %v5256 = vrot.slane %v5242, %v5255
        %v5257 = vcombine.low %v5201, %v5217
        %v5258 = vcombine.high %v5201, %v5217
        %v5260 = vunpack.c.l.s4 1934713408
        %v5261 = vunpack.c.0.s8 %v5260
        %v5262 = vlaneseq
        %v5263 = vshrl.u32 %v5262, 7
        %v5264 = vsub.s32 %v5261, %v5263
        %v5265 = vrot.slane %v5257, %v5264
        %v5267 = vunpack.c.l.s4 1934713408
        %v5268 = vunpack.c.0.s8 %v5267
        %v5269 = vlaneseq
        %v5270 = vshrl.u32 %v5269, 7
        %v5271 = vsub.s32 %v5268, %v5270
        %v5272 = vrot.slane %v5258, %v5271
        %v5273 = vcombine.low %v5208, %v5224
        %v5274 = vcombine.high %v5208, %v5224
        %v5276 = vunpack.c.l.s4 1934713408
        %v5277 = vunpack.c.0.s8 %v5276
        %v5278 = vlaneseq
        %v5279 = vshrl.u32 %v5278, 7
        %v5280 = vsub.s32 %v5277, %v5279
        %v5281 = vrot.slane %v5273, %v5280
        %v5283 = vunpack.c.l.s4 1934713408
        %v5284 = vunpack.c.0.s8 %v5283
        %v5285 = vlaneseq
        %v5286 = vshrl.u32 %v5285, 7
        %v5287 = vsub.s32 %v5284, %v5286
        %v5288 = vrot.slane %v5274, %v5287
        %v5289 = vcombine.low %v5233, %v5265
        %v5290 = vcombine.high %v5233, %v5265
        %v5291 = vcombine.low %v5240, %v5272
        %v5292 = vcombine.high %v5240, %v5272
        %v5293 = vcombine.low %v5249, %v5281
        %v5294 = vcombine.high %v5249, %v5281
        %v5295 = vcombine.low %v5256, %v5288
        %v5296 = vcombine.high %v5256, %v5288
        %v5297 = vcombine.low %v5116, %v5124
        %v5298 = vcombine.high %v5116, %v5124
        %v5300 = vunpack.c.l.s4 1983009808
        %v5301 = vunpack.c.0.s8 %v5300
        %v5302 = vlaneseq
        %v5303 = vshrl.u32 %v5302, 7
        %v5304 = vsub.s32 %v5301, %v5303
        %v5305 = vrot.slane %v5297, %v5304
        %v5307 = vunpack.c.l.s4 1983009808
        %v5308 = vunpack.c.0.s8 %v5307
        %v5309 = vlaneseq
        %v5310 = vshrl.u32 %v5309, 7
        %v5311 = vsub.s32 %v5308, %v5310
        %v5312 = vrot.slane %v5298, %v5311
        %v5313 = vcombine.low %v5120, %v5128
        %v5314 = vcombine.high %v5120, %v5128
        %v5316 = vunpack.c.l.s4 1983009808
        %v5317 = vunpack.c.0.s8 %v5316
        %v5318 = vlaneseq
        %v5319 = vshrl.u32 %v5318, 7
        %v5320 = vsub.s32 %v5317, %v5319
        %v5321 = vrot.slane %v5313, %v5320
        %v5323 = vunpack.c.l.s4 1983009808
        %v5324 = vunpack.c.0.s8 %v5323
        %v5325 = vlaneseq
        %v5326 = vshrl.u32 %v5325, 7
        %v5327 = vsub.s32 %v5324, %v5326
        %v5328 = vrot.slane %v5314, %v5327
        %v5329 = vcombine.low %v5132, %v5140
        %v5330 = vcombine.high %v5132, %v5140
        %v5332 = vunpack.c.l.s4 1983009808
        %v5333 = vunpack.c.0.s8 %v5332
        %v5334 = vlaneseq
        %v5335 = vshrl.u32 %v5334, 7
        %v5336 = vsub.s32 %v5333, %v5335
        %v5337 = vrot.slane %v5329, %v5336
        %v5339 = vunpack.c.l.s4 1983009808
        %v5340 = vunpack.c.0.s8 %v5339
        %v5341 = vlaneseq
        %v5342 = vshrl.u32 %v5341, 7
        %v5343 = vsub.s32 %v5340, %v5342
        %v5344 = vrot.slane %v5330, %v5343
        %v5345 = vcombine.low %v5136, %v5144
        %v5346 = vcombine.high %v5136, %v5144
        %v5348 = vunpack.c.l.s4 1983009808
        %v5349 = vunpack.c.0.s8 %v5348
        %v5350 = vlaneseq
        %v5351 = vshrl.u32 %v5350, 7
        %v5352 = vsub.s32 %v5349, %v5351
        %v5353 = vrot.slane %v5345, %v5352
        %v5355 = vunpack.c.l.s4 1983009808
        %v5356 = vunpack.c.0.s8 %v5355
        %v5357 = vlaneseq
        %v5358 = vshrl.u32 %v5357, 7
        %v5359 = vsub.s32 %v5356, %v5358
        %v5360 = vrot.slane %v5346, %v5359
        %v5361 = vcombine.low %v5305, %v5321
        %v5362 = vcombine.high %v5305, %v5321
        %v5364 = vunpack.c.l.s4 1934713408
        %v5365 = vunpack.c.0.s8 %v5364
        %v5366 = vlaneseq
        %v5367 = vshrl.u32 %v5366, 7
        %v5368 = vsub.s32 %v5365, %v5367
        %v5369 = vrot.slane %v5361, %v5368
        %v5371 = vunpack.c.l.s4 1934713408
        %v5372 = vunpack.c.0.s8 %v5371
        %v5373 = vlaneseq
        %v5374 = vshrl.u32 %v5373, 7
        %v5375 = vsub.s32 %v5372, %v5374
        %v5376 = vrot.slane %v5362, %v5375
        %v5377 = vcombine.low %v5312, %v5328
        %v5378 = vcombine.high %v5312, %v5328
        %v5380 = vunpack.c.l.s4 1934713408
        %v5381 = vunpack.c.0.s8 %v5380
        %v5382 = vlaneseq
        %v5383 = vshrl.u32 %v5382, 7
        %v5384 = vsub.s32 %v5381, %v5383
        %v5385 = vrot.slane %v5377, %v5384
        %v5387 = vunpack.c.l.s4 1934713408
        %v5388 = vunpack.c.0.s8 %v5387
        %v5389 = vlaneseq
        %v5390 = vshrl.u32 %v5389, 7
        %v5391 = vsub.s32 %v5388, %v5390
        %v5392 = vrot.slane %v5378, %v5391
        %v5393 = vcombine.low %v5337, %v5353
        %v5394 = vcombine.high %v5337, %v5353
        %v5396 = vunpack.c.l.s4 1934713408
        %v5397 = vunpack.c.0.s8 %v5396
        %v5398 = vlaneseq
        %v5399 = vshrl.u32 %v5398, 7
        %v5400 = vsub.s32 %v5397, %v5399
        %v5401 = vrot.slane %v5393, %v5400
        %v5403 = vunpack.c.l.s4 1934713408
        %v5404 = vunpack.c.0.s8 %v5403
        %v5405 = vlaneseq
        %v5406 = vshrl.u32 %v5405, 7
        %v5407 = vsub.s32 %v5404, %v5406
        %v5408 = vrot.slane %v5394, %v5407
        %v5409 = vcombine.low %v5344, %v5360
        %v5410 = vcombine.high %v5344, %v5360
        %v5412 = vunpack.c.l.s4 1934713408
        %v5413 = vunpack.c.0.s8 %v5412
        %v5414 = vlaneseq
        %v5415 = vshrl.u32 %v5414, 7
        %v5416 = vsub.s32 %v5413, %v5415
        %v5417 = vrot.slane %v5409, %v5416
        %v5419 = vunpack.c.l.s4 1934713408
        %v5420 = vunpack.c.0.s8 %v5419
        %v5421 = vlaneseq
        %v5422 = vshrl.u32 %v5421, 7
        %v5423 = vsub.s32 %v5420, %v5422
        %v5424 = vrot.slane %v5410, %v5423
        %v5425 = vcombine.low %v5369, %v5401
        %v5426 = vcombine.high %v5369, %v5401
        %v5427 = vcombine.low %v5376, %v5408
        %v5428 = vcombine.high %v5376, %v5408
        %v5429 = vcombine.low %v5385, %v5417
        %v5430 = vcombine.high %v5385, %v5417
        %v5431 = vcombine.low %v5392, %v5424
        %v5432 = vcombine.high %v5392, %v5424
        %5434 = vrot.lane.b32.xlu0 %v5290, 16
        %v5435 = vpop.permute.xlu0 %5434
        %5438 = vrot.lane.b32.xlu0 %v5291, 32
        %v5439 = vpop.permute.xlu0 %5438
        %5442 = vrot.lane.b32.xlu0 %v5292, 48
        %v5443 = vpop.permute.xlu0 %5442
        %5446 = vrot.lane.b32.xlu0 %v5293, 64
        %v5447 = vpop.permute.xlu0 %5446
        %5450 = vrot.lane.b32.xlu0 %v5294, 80
        %v5451 = vpop.permute.xlu0 %5450
        %5454 = vrot.lane.b32.xlu0 %v5295, 96
        %v5455 = vpop.permute.xlu0 %5454
        %5458 = vrot.lane.b32.xlu0 %v5296, 112
        %v5459 = vpop.permute.xlu0 %5458
        %5462 = vrot.lane.b32.xlu0 %v5426, 16
        %v5463 = vpop.permute.xlu0 %5462
        %5466 = vrot.lane.b32.xlu0 %v5427, 32
        %v5467 = vpop.permute.xlu0 %5466
        %5470 = vrot.lane.b32.xlu0 %v5428, 48
        %v5471 = vpop.permute.xlu0 %5470
        %5474 = vrot.lane.b32.xlu0 %v5429, 64
        %v5475 = vpop.permute.xlu0 %5474
        %5478 = vrot.lane.b32.xlu0 %v5430, 80
        %v5479 = vpop.permute.xlu0 %5478
        %5482 = vrot.lane.b32.xlu0 %v5431, 96
        %v5483 = vpop.permute.xlu0 %5482
        %5486 = vrot.lane.b32.xlu0 %v5432, 112
        %v5487 = vpop.permute.xlu0 %5486
        %v5489 = vsel %vm723, %v5289, %v5435
        %v5490 = vsel %vm725, %v5489, %v5439
        %v5491 = vsel %vm727, %v5490, %v5443
        %v5492 = vsel %vm729, %v5491, %v5447
        %v5493 = vsel %vm731, %v5492, %v5451
        %v5494 = vsel %vm733, %v5493, %v5455
        %v5495 = vsel %vm735, %v5494, %v5459
        %v5496 = vsel %vm723, %v5425, %v5463
        %v5497 = vsel %vm725, %v5496, %v5467
        %v5498 = vsel %vm727, %v5497, %v5471
        %v5499 = vsel %vm729, %v5498, %v5475
        %v5500 = vsel %vm731, %v5499, %v5479
        %v5501 = vsel %vm733, %v5500, %v5483
        %v5502 = vsel %vm735, %v5501, %v5487
        %5503 = vst [vmem:[#allocation5 + $0x50] sm:$0xff] %v5495
        %5504 = vst [vmem:[#allocation5 + $0x58] sm:$0xff] %v5502
        %v5505 = vrot.slane %v3145, 2
        %v5506 = vrot.slane %v3146, 2
        %v5507 = vsel %vm1941, %v5505, %v5506
        %v5508 = vrot.slane %v3147, 2
        %v5509 = vsel %vm1941, %v5506, %v5508
        %v5510 = vrot.slane %v3148, 2
        %v5511 = vrot.slane %v3149, 2
        %v5512 = vsel %vm1941, %v5510, %v5511
        %v5513 = vrot.slane %v3150, 2
        %v5514 = vsel %vm1941, %v5511, %v5513
        %v5515 = vrot.slane %v3151, 2
        %v5516 = vrot.slane %v3152, 2
        %v5517 = vsel %vm1941, %v5515, %v5516
        %v5518 = vrot.slane %v3153, 2
        %v5519 = vsel %vm1941, %v5516, %v5518
        %v5520 = vrot.slane %v3154, 2
        %v5521 = vrot.slane %v3155, 2
        %v5522 = vsel %vm1941, %v5520, %v5521
        %v5523 = vrot.slane %v3156, 2
        %v5524 = vsel %vm1941, %v5521, %v5523
        %v5525 = vrot.slane %v3157, 2
        %v5526 = vrot.slane %v3158, 2
        %v5527 = vsel %vm1941, %v5525, %v5526
        %v5528 = vrot.slane %v3159, 2
        %v5529 = vsel %vm1941, %v5526, %v5528
        %v5530 = vrot.slane %v3160, 2
        %v5531 = vrot.slane %v3161, 2
        %v5532 = vsel %vm1941, %v5530, %v5531
        %v5533 = vrot.slane %v3162, 2
        %v5534 = vsel %vm1941, %v5531, %v5533
        %v5535 = vrot.slane %v3163, 2
        %v5536 = vrot.slane %v3164, 2
        %v5537 = vsel %vm1941, %v5535, %v5536
        %v5538 = vrot.slane %v3165, 2
        %v5539 = vsel %vm1941, %v5536, %v5538
        %v5540 = vrot.slane %v3166, 2
        %v5541 = vrot.slane %v3167, 2
        %v5542 = vsel %vm1941, %v5540, %v5541
        %v5543 = vrot.slane %v3168, 2
        %v5544 = vsel %vm1941, %v5541, %v5543
        %v5561 = vcombine.low %v5507, %v5517
        %v5562 = vcombine.high %v5507, %v5517
        %v5564 = vunpack.c.l.s4 1983009808
        %v5565 = vunpack.c.0.s8 %v5564
        %v5566 = vlaneseq
        %v5567 = vshrl.u32 %v5566, 7
        %v5568 = vsub.s32 %v5565, %v5567
        %v5569 = vrot.slane %v5561, %v5568
        %v5571 = vunpack.c.l.s4 1983009808
        %v5572 = vunpack.c.0.s8 %v5571
        %v5573 = vlaneseq
        %v5574 = vshrl.u32 %v5573, 7
        %v5575 = vsub.s32 %v5572, %v5574
        %v5576 = vrot.slane %v5562, %v5575
        %v5577 = vcombine.low %v5512, %v5522
        %v5578 = vcombine.high %v5512, %v5522
        %v5580 = vunpack.c.l.s4 1983009808
        %v5581 = vunpack.c.0.s8 %v5580
        %v5582 = vlaneseq
        %v5583 = vshrl.u32 %v5582, 7
        %v5584 = vsub.s32 %v5581, %v5583
        %v5585 = vrot.slane %v5577, %v5584
        %v5587 = vunpack.c.l.s4 1983009808
        %v5588 = vunpack.c.0.s8 %v5587
        %v5589 = vlaneseq
        %v5590 = vshrl.u32 %v5589, 7
        %v5591 = vsub.s32 %v5588, %v5590
        %v5592 = vrot.slane %v5578, %v5591
        %v5593 = vcombine.low %v5527, %v5537
        %v5594 = vcombine.high %v5527, %v5537
        %v5596 = vunpack.c.l.s4 1983009808
        %v5597 = vunpack.c.0.s8 %v5596
        %v5598 = vlaneseq
        %v5599 = vshrl.u32 %v5598, 7
        %v5600 = vsub.s32 %v5597, %v5599
        %v5601 = vrot.slane %v5593, %v5600
        %v5603 = vunpack.c.l.s4 1983009808
        %v5604 = vunpack.c.0.s8 %v5603
        %v5605 = vlaneseq
        %v5606 = vshrl.u32 %v5605, 7
        %v5607 = vsub.s32 %v5604, %v5606
        %v5608 = vrot.slane %v5594, %v5607
        %v5609 = vcombine.low %v5532, %v5542
        %v5610 = vcombine.high %v5532, %v5542
        %v5612 = vunpack.c.l.s4 1983009808
        %v5613 = vunpack.c.0.s8 %v5612
        %v5614 = vlaneseq
        %v5615 = vshrl.u32 %v5614, 7
        %v5616 = vsub.s32 %v5613, %v5615
        %v5617 = vrot.slane %v5609, %v5616
        %v5619 = vunpack.c.l.s4 1983009808
        %v5620 = vunpack.c.0.s8 %v5619
        %v5621 = vlaneseq
        %v5622 = vshrl.u32 %v5621, 7
        %v5623 = vsub.s32 %v5620, %v5622
        %v5624 = vrot.slane %v5610, %v5623
        %v5625 = vcombine.low %v5569, %v5585
        %v5626 = vcombine.high %v5569, %v5585
        %v5628 = vunpack.c.l.s4 1934713408
        %v5629 = vunpack.c.0.s8 %v5628
        %v5630 = vlaneseq
        %v5631 = vshrl.u32 %v5630, 7
        %v5632 = vsub.s32 %v5629, %v5631
        %v5633 = vrot.slane %v5625, %v5632
        %v5635 = vunpack.c.l.s4 1934713408
        %v5636 = vunpack.c.0.s8 %v5635
        %v5637 = vlaneseq
        %v5638 = vshrl.u32 %v5637, 7
        %v5639 = vsub.s32 %v5636, %v5638
        %v5640 = vrot.slane %v5626, %v5639
        %v5641 = vcombine.low %v5576, %v5592
        %v5642 = vcombine.high %v5576, %v5592
        %v5644 = vunpack.c.l.s4 1934713408
        %v5645 = vunpack.c.0.s8 %v5644
        %v5646 = vlaneseq
        %v5647 = vshrl.u32 %v5646, 7
        %v5648 = vsub.s32 %v5645, %v5647
        %v5649 = vrot.slane %v5641, %v5648
        %v5651 = vunpack.c.l.s4 1934713408
        %v5652 = vunpack.c.0.s8 %v5651
        %v5653 = vlaneseq
        %v5654 = vshrl.u32 %v5653, 7
        %v5655 = vsub.s32 %v5652, %v5654
        %v5656 = vrot.slane %v5642, %v5655
        %v5657 = vcombine.low %v5601, %v5617
        %v5658 = vcombine.high %v5601, %v5617
        %v5660 = vunpack.c.l.s4 1934713408
        %v5661 = vunpack.c.0.s8 %v5660
        %v5662 = vlaneseq
        %v5663 = vshrl.u32 %v5662, 7
        %v5664 = vsub.s32 %v5661, %v5663
        %v5665 = vrot.slane %v5657, %v5664
        %v5667 = vunpack.c.l.s4 1934713408
        %v5668 = vunpack.c.0.s8 %v5667
        %v5669 = vlaneseq
        %v5670 = vshrl.u32 %v5669, 7
        %v5671 = vsub.s32 %v5668, %v5670
        %v5672 = vrot.slane %v5658, %v5671
        %v5673 = vcombine.low %v5608, %v5624
        %v5674 = vcombine.high %v5608, %v5624
        %v5676 = vunpack.c.l.s4 1934713408
        %v5677 = vunpack.c.0.s8 %v5676
        %v5678 = vlaneseq
        %v5679 = vshrl.u32 %v5678, 7
        %v5680 = vsub.s32 %v5677, %v5679
        %v5681 = vrot.slane %v5673, %v5680
        %v5683 = vunpack.c.l.s4 1934713408
        %v5684 = vunpack.c.0.s8 %v5683
        %v5685 = vlaneseq
        %v5686 = vshrl.u32 %v5685, 7
        %v5687 = vsub.s32 %v5684, %v5686
        %v5688 = vrot.slane %v5674, %v5687
        %v5689 = vcombine.low %v5633, %v5665
        %v5690 = vcombine.high %v5633, %v5665
        %v5691 = vcombine.low %v5640, %v5672
        %v5692 = vcombine.high %v5640, %v5672
        %v5693 = vcombine.low %v5649, %v5681
        %v5694 = vcombine.high %v5649, %v5681
        %v5695 = vcombine.low %v5656, %v5688
        %v5696 = vcombine.high %v5656, %v5688
        %v5697 = vcombine.low %v5509, %v5519
        %v5698 = vcombine.high %v5509, %v5519
        %v5700 = vunpack.c.l.s4 1983009808
        %v5701 = vunpack.c.0.s8 %v5700
        %v5702 = vlaneseq
        %v5703 = vshrl.u32 %v5702, 7
        %v5704 = vsub.s32 %v5701, %v5703
        %v5705 = vrot.slane %v5697, %v5704
        %v5707 = vunpack.c.l.s4 1983009808
        %v5708 = vunpack.c.0.s8 %v5707
        %v5709 = vlaneseq
        %v5710 = vshrl.u32 %v5709, 7
        %v5711 = vsub.s32 %v5708, %v5710
        %v5712 = vrot.slane %v5698, %v5711
        %v5713 = vcombine.low %v5514, %v5524
        %v5714 = vcombine.high %v5514, %v5524
        %v5716 = vunpack.c.l.s4 1983009808
        %v5717 = vunpack.c.0.s8 %v5716
        %v5718 = vlaneseq
        %v5719 = vshrl.u32 %v5718, 7
        %v5720 = vsub.s32 %v5717, %v5719
        %v5721 = vrot.slane %v5713, %v5720
        %v5723 = vunpack.c.l.s4 1983009808
        %v5724 = vunpack.c.0.s8 %v5723
        %v5725 = vlaneseq
        %v5726 = vshrl.u32 %v5725, 7
        %v5727 = vsub.s32 %v5724, %v5726
        %v5728 = vrot.slane %v5714, %v5727
        %v5729 = vcombine.low %v5529, %v5539
        %v5730 = vcombine.high %v5529, %v5539
        %v5732 = vunpack.c.l.s4 1983009808
        %v5733 = vunpack.c.0.s8 %v5732
        %v5734 = vlaneseq
        %v5735 = vshrl.u32 %v5734, 7
        %v5736 = vsub.s32 %v5733, %v5735
        %v5737 = vrot.slane %v5729, %v5736
        %v5739 = vunpack.c.l.s4 1983009808
        %v5740 = vunpack.c.0.s8 %v5739
        %v5741 = vlaneseq
        %v5742 = vshrl.u32 %v5741, 7
        %v5743 = vsub.s32 %v5740, %v5742
        %v5744 = vrot.slane %v5730, %v5743
        %v5745 = vcombine.low %v5534, %v5544
        %v5746 = vcombine.high %v5534, %v5544
        %v5748 = vunpack.c.l.s4 1983009808
        %v5749 = vunpack.c.0.s8 %v5748
        %v5750 = vlaneseq
        %v5751 = vshrl.u32 %v5750, 7
        %v5752 = vsub.s32 %v5749, %v5751
        %v5753 = vrot.slane %v5745, %v5752
        %v5755 = vunpack.c.l.s4 1983009808
        %v5756 = vunpack.c.0.s8 %v5755
        %v5757 = vlaneseq
        %v5758 = vshrl.u32 %v5757, 7
        %v5759 = vsub.s32 %v5756, %v5758
        %v5760 = vrot.slane %v5746, %v5759
        %v5761 = vcombine.low %v5705, %v5721
        %v5762 = vcombine.high %v5705, %v5721
        %v5764 = vunpack.c.l.s4 1934713408
        %v5765 = vunpack.c.0.s8 %v5764
        %v5766 = vlaneseq
        %v5767 = vshrl.u32 %v5766, 7
        %v5768 = vsub.s32 %v5765, %v5767
        %v5769 = vrot.slane %v5761, %v5768
        %v5771 = vunpack.c.l.s4 1934713408
        %v5772 = vunpack.c.0.s8 %v5771
        %v5773 = vlaneseq
        %v5774 = vshrl.u32 %v5773, 7
        %v5775 = vsub.s32 %v5772, %v5774
        %v5776 = vrot.slane %v5762, %v5775
        %v5777 = vcombine.low %v5712, %v5728
        %v5778 = vcombine.high %v5712, %v5728
        %v5780 = vunpack.c.l.s4 1934713408
        %v5781 = vunpack.c.0.s8 %v5780
        %v5782 = vlaneseq
        %v5783 = vshrl.u32 %v5782, 7
        %v5784 = vsub.s32 %v5781, %v5783
        %v5785 = vrot.slane %v5777, %v5784
        %v5787 = vunpack.c.l.s4 1934713408
        %v5788 = vunpack.c.0.s8 %v5787
        %v5789 = vlaneseq
        %v5790 = vshrl.u32 %v5789, 7
        %v5791 = vsub.s32 %v5788, %v5790
        %v5792 = vrot.slane %v5778, %v5791
        %v5793 = vcombine.low %v5737, %v5753
        %v5794 = vcombine.high %v5737, %v5753
        %v5796 = vunpack.c.l.s4 1934713408
        %v5797 = vunpack.c.0.s8 %v5796
        %v5798 = vlaneseq
        %v5799 = vshrl.u32 %v5798, 7
        %v5800 = vsub.s32 %v5797, %v5799
        %v5801 = vrot.slane %v5793, %v5800
        %v5803 = vunpack.c.l.s4 1934713408
        %v5804 = vunpack.c.0.s8 %v5803
        %v5805 = vlaneseq
        %v5806 = vshrl.u32 %v5805, 7
        %v5807 = vsub.s32 %v5804, %v5806
        %v5808 = vrot.slane %v5794, %v5807
        %v5809 = vcombine.low %v5744, %v5760
        %v5810 = vcombine.high %v5744, %v5760
        %v5812 = vunpack.c.l.s4 1934713408
        %v5813 = vunpack.c.0.s8 %v5812
        %v5814 = vlaneseq
        %v5815 = vshrl.u32 %v5814, 7
        %v5816 = vsub.s32 %v5813, %v5815
        %v5817 = vrot.slane %v5809, %v5816
        %v5819 = vunpack.c.l.s4 1934713408
        %v5820 = vunpack.c.0.s8 %v5819
        %v5821 = vlaneseq
        %v5822 = vshrl.u32 %v5821, 7
        %v5823 = vsub.s32 %v5820, %v5822
        %v5824 = vrot.slane %v5810, %v5823
        %v5825 = vcombine.low %v5769, %v5801
        %v5826 = vcombine.high %v5769, %v5801
        %v5827 = vcombine.low %v5776, %v5808
        %v5828 = vcombine.high %v5776, %v5808
        %v5829 = vcombine.low %v5785, %v5817
        %v5830 = vcombine.high %v5785, %v5817
        %v5831 = vcombine.low %v5792, %v5824
        %v5832 = vcombine.high %v5792, %v5824
        %5834 = vrot.lane.b32.xlu0 %v5690, 16
        %v5835 = vpop.permute.xlu0 %5834
        %5838 = vrot.lane.b32.xlu0 %v5691, 32
        %v5839 = vpop.permute.xlu0 %5838
        %5842 = vrot.lane.b32.xlu0 %v5692, 48
        %v5843 = vpop.permute.xlu0 %5842
        %5846 = vrot.lane.b32.xlu0 %v5693, 64
        %v5847 = vpop.permute.xlu0 %5846
        %5850 = vrot.lane.b32.xlu0 %v5694, 80
        %v5851 = vpop.permute.xlu0 %5850
        %5854 = vrot.lane.b32.xlu0 %v5695, 96
        %v5855 = vpop.permute.xlu0 %5854
        %5858 = vrot.lane.b32.xlu0 %v5696, 112
        %v5859 = vpop.permute.xlu0 %5858
        %5862 = vrot.lane.b32.xlu0 %v5826, 16
        %v5863 = vpop.permute.xlu0 %5862
        %5866 = vrot.lane.b32.xlu0 %v5827, 32
        %v5867 = vpop.permute.xlu0 %5866
        %5870 = vrot.lane.b32.xlu0 %v5828, 48
        %v5871 = vpop.permute.xlu0 %5870
        %5874 = vrot.lane.b32.xlu0 %v5829, 64
        %v5875 = vpop.permute.xlu0 %5874
        %5878 = vrot.lane.b32.xlu0 %v5830, 80
        %v5879 = vpop.permute.xlu0 %5878
        %5882 = vrot.lane.b32.xlu0 %v5831, 96
        %v5883 = vpop.permute.xlu0 %5882
        %5886 = vrot.lane.b32.xlu0 %v5832, 112
        %v5887 = vpop.permute.xlu0 %5886
        %v5889 = vsel %vm723, %v5689, %v5835
        %v5890 = vsel %vm725, %v5889, %v5839
        %v5891 = vsel %vm727, %v5890, %v5843
        %v5892 = vsel %vm729, %v5891, %v5847
        %v5893 = vsel %vm731, %v5892, %v5851
        %v5894 = vsel %vm733, %v5893, %v5855
        %v5895 = vsel %vm735, %v5894, %v5859
        %v5896 = vsel %vm723, %v5825, %v5863
        %v5897 = vsel %vm725, %v5896, %v5867
        %v5898 = vsel %vm727, %v5897, %v5871
        %v5899 = vsel %vm729, %v5898, %v5875
        %v5900 = vsel %vm731, %v5899, %v5879
        %v5901 = vsel %vm733, %v5900, %v5883
        %v5902 = vsel %vm735, %v5901, %v5887
        %5903 = vst [vmem:[#allocation5 + $0x60] sm:$0xff] %v5895
        %5904 = vst [vmem:[#allocation5 + $0x68] sm:$0xff] %v5902
        %5905 = vrot.lane.b32.xlu0 %v5507, 127
        %v5906 = vpop.permute.xlu0 %5905
        %5907 = vrot.lane.b32.xlu0 %v5509, 127
        %v5908 = vpop.permute.xlu0 %5907
        %5909 = vrot.lane.b32.xlu0 %v5512, 127
        %v5910 = vpop.permute.xlu0 %5909
        %5911 = vrot.lane.b32.xlu0 %v5514, 127
        %v5912 = vpop.permute.xlu0 %5911
        %5913 = vrot.lane.b32.xlu0 %v5517, 127
        %v5914 = vpop.permute.xlu0 %5913
        %5915 = vrot.lane.b32.xlu0 %v5519, 127
        %v5916 = vpop.permute.xlu0 %5915
        %5917 = vrot.lane.b32.xlu0 %v5522, 127
        %v5918 = vpop.permute.xlu0 %5917
        %5919 = vrot.lane.b32.xlu0 %v5524, 127
        %v5920 = vpop.permute.xlu0 %5919
        %5921 = vrot.lane.b32.xlu0 %v5527, 127
        %v5922 = vpop.permute.xlu0 %5921
        %5923 = vrot.lane.b32.xlu0 %v5529, 127
        %v5924 = vpop.permute.xlu0 %5923
        %5925 = vrot.lane.b32.xlu0 %v5532, 127
        %v5926 = vpop.permute.xlu0 %5925
        %5927 = vrot.lane.b32.xlu0 %v5534, 127
        %v5928 = vpop.permute.xlu0 %5927
        %5929 = vrot.lane.b32.xlu0 %v5537, 127
        %v5930 = vpop.permute.xlu0 %5929
        %5931 = vrot.lane.b32.xlu0 %v5539, 127
        %v5932 = vpop.permute.xlu0 %5931
        %5933 = vrot.lane.b32.xlu0 %v5542, 127
        %v5934 = vpop.permute.xlu0 %5933
        %5935 = vrot.lane.b32.xlu0 %v5544, 127
        %v5936 = vpop.permute.xlu0 %5935
        %v5953 = vcombine.low %v5906, %v5914
        %v5954 = vcombine.high %v5906, %v5914
        %v5956 = vunpack.c.l.s4 1983009808
        %v5957 = vunpack.c.0.s8 %v5956
        %v5958 = vlaneseq
        %v5959 = vshrl.u32 %v5958, 7
        %v5960 = vsub.s32 %v5957, %v5959
        %v5961 = vrot.slane %v5953, %v5960
        %v5963 = vunpack.c.l.s4 1983009808
        %v5964 = vunpack.c.0.s8 %v5963
        %v5965 = vlaneseq
        %v5966 = vshrl.u32 %v5965, 7
        %v5967 = vsub.s32 %v5964, %v5966
        %v5968 = vrot.slane %v5954, %v5967
        %v5969 = vcombine.low %v5910, %v5918
        %v5970 = vcombine.high %v5910, %v5918
        %v5972 = vunpack.c.l.s4 1983009808
        %v5973 = vunpack.c.0.s8 %v5972
        %v5974 = vlaneseq
        %v5975 = vshrl.u32 %v5974, 7
        %v5976 = vsub.s32 %v5973, %v5975
        %v5977 = vrot.slane %v5969, %v5976
        %v5979 = vunpack.c.l.s4 1983009808
        %v5980 = vunpack.c.0.s8 %v5979
        %v5981 = vlaneseq
        %v5982 = vshrl.u32 %v5981, 7
        %v5983 = vsub.s32 %v5980, %v5982
        %v5984 = vrot.slane %v5970, %v5983
        %v5985 = vcombine.low %v5922, %v5930
        %v5986 = vcombine.high %v5922, %v5930
        %v5988 = vunpack.c.l.s4 1983009808
        %v5989 = vunpack.c.0.s8 %v5988
        %v5990 = vlaneseq
        %v5991 = vshrl.u32 %v5990, 7
        %v5992 = vsub.s32 %v5989, %v5991
        %v5993 = vrot.slane %v5985, %v5992
        %v5995 = vunpack.c.l.s4 1983009808
        %v5996 = vunpack.c.0.s8 %v5995
        %v5997 = vlaneseq
        %v5998 = vshrl.u32 %v5997, 7
        %v5999 = vsub.s32 %v5996, %v5998
        %v6000 = vrot.slane %v5986, %v5999
        %v6001 = vcombine.low %v5926, %v5934
        %v6002 = vcombine.high %v5926, %v5934
        %v6004 = vunpack.c.l.s4 1983009808
        %v6005 = vunpack.c.0.s8 %v6004
        %v6006 = vlaneseq
        %v6007 = vshrl.u32 %v6006, 7
        %v6008 = vsub.s32 %v6005, %v6007
        %v6009 = vrot.slane %v6001, %v6008
        %v6011 = vunpack.c.l.s4 1983009808
        %v6012 = vunpack.c.0.s8 %v6011
        %v6013 = vlaneseq
        %v6014 = vshrl.u32 %v6013, 7
        %v6015 = vsub.s32 %v6012, %v6014
        %v6016 = vrot.slane %v6002, %v6015
        %v6017 = vcombine.low %v5961, %v5977
        %v6018 = vcombine.high %v5961, %v5977
        %v6020 = vunpack.c.l.s4 1934713408
        %v6021 = vunpack.c.0.s8 %v6020
        %v6022 = vlaneseq
        %v6023 = vshrl.u32 %v6022, 7
        %v6024 = vsub.s32 %v6021, %v6023
        %v6025 = vrot.slane %v6017, %v6024
        %v6027 = vunpack.c.l.s4 1934713408
        %v6028 = vunpack.c.0.s8 %v6027
        %v6029 = vlaneseq
        %v6030 = vshrl.u32 %v6029, 7
        %v6031 = vsub.s32 %v6028, %v6030
        %v6032 = vrot.slane %v6018, %v6031
        %v6033 = vcombine.low %v5968, %v5984
        %v6034 = vcombine.high %v5968, %v5984
        %v6036 = vunpack.c.l.s4 1934713408
        %v6037 = vunpack.c.0.s8 %v6036
        %v6038 = vlaneseq
        %v6039 = vshrl.u32 %v6038, 7
        %v6040 = vsub.s32 %v6037, %v6039
        %v6041 = vrot.slane %v6033, %v6040
        %v6043 = vunpack.c.l.s4 1934713408
        %v6044 = vunpack.c.0.s8 %v6043
        %v6045 = vlaneseq
        %v6046 = vshrl.u32 %v6045, 7
        %v6047 = vsub.s32 %v6044, %v6046
        %v6048 = vrot.slane %v6034, %v6047
        %v6049 = vcombine.low %v5993, %v6009
        %v6050 = vcombine.high %v5993, %v6009
        %v6052 = vunpack.c.l.s4 1934713408
        %v6053 = vunpack.c.0.s8 %v6052
        %v6054 = vlaneseq
        %v6055 = vshrl.u32 %v6054, 7
        %v6056 = vsub.s32 %v6053, %v6055
        %v6057 = vrot.slane %v6049, %v6056
        %v6059 = vunpack.c.l.s4 1934713408
        %v6060 = vunpack.c.0.s8 %v6059
        %v6061 = vlaneseq
        %v6062 = vshrl.u32 %v6061, 7
        %v6063 = vsub.s32 %v6060, %v6062
        %v6064 = vrot.slane %v6050, %v6063
        %v6065 = vcombine.low %v6000, %v6016
        %v6066 = vcombine.high %v6000, %v6016
        %v6068 = vunpack.c.l.s4 1934713408
        %v6069 = vunpack.c.0.s8 %v6068
        %v6070 = vlaneseq
        %v6071 = vshrl.u32 %v6070, 7
        %v6072 = vsub.s32 %v6069, %v6071
        %v6073 = vrot.slane %v6065, %v6072
        %v6075 = vunpack.c.l.s4 1934713408
        %v6076 = vunpack.c.0.s8 %v6075
        %v6077 = vlaneseq
        %v6078 = vshrl.u32 %v6077, 7
        %v6079 = vsub.s32 %v6076, %v6078
        %v6080 = vrot.slane %v6066, %v6079
        %v6081 = vcombine.low %v6025, %v6057
        %v6082 = vcombine.high %v6025, %v6057
        %v6083 = vcombine.low %v6032, %v6064
        %v6084 = vcombine.high %v6032, %v6064
        %v6085 = vcombine.low %v6041, %v6073
        %v6086 = vcombine.high %v6041, %v6073
        %v6087 = vcombine.low %v6048, %v6080
        %v6088 = vcombine.high %v6048, %v6080
        %v6089 = vcombine.low %v5908, %v5916
        %v6090 = vcombine.high %v5908, %v5916
        %v6092 = vunpack.c.l.s4 1983009808
        %v6093 = vunpack.c.0.s8 %v6092
        %v6094 = vlaneseq
        %v6095 = vshrl.u32 %v6094, 7
        %v6096 = vsub.s32 %v6093, %v6095
        %v6097 = vrot.slane %v6089, %v6096
        %v6099 = vunpack.c.l.s4 1983009808
        %v6100 = vunpack.c.0.s8 %v6099
        %v6101 = vlaneseq
        %v6102 = vshrl.u32 %v6101, 7
        %v6103 = vsub.s32 %v6100, %v6102
        %v6104 = vrot.slane %v6090, %v6103
        %v6105 = vcombine.low %v5912, %v5920
        %v6106 = vcombine.high %v5912, %v5920
        %v6108 = vunpack.c.l.s4 1983009808
        %v6109 = vunpack.c.0.s8 %v6108
        %v6110 = vlaneseq
        %v6111 = vshrl.u32 %v6110, 7
        %v6112 = vsub.s32 %v6109, %v6111
        %v6113 = vrot.slane %v6105, %v6112
        %v6115 = vunpack.c.l.s4 1983009808
        %v6116 = vunpack.c.0.s8 %v6115
        %v6117 = vlaneseq
        %v6118 = vshrl.u32 %v6117, 7
        %v6119 = vsub.s32 %v6116, %v6118
        %v6120 = vrot.slane %v6106, %v6119
        %v6121 = vcombine.low %v5924, %v5932
        %v6122 = vcombine.high %v5924, %v5932
        %v6124 = vunpack.c.l.s4 1983009808
        %v6125 = vunpack.c.0.s8 %v6124
        %v6126 = vlaneseq
        %v6127 = vshrl.u32 %v6126, 7
        %v6128 = vsub.s32 %v6125, %v6127
        %v6129 = vrot.slane %v6121, %v6128
        %v6131 = vunpack.c.l.s4 1983009808
        %v6132 = vunpack.c.0.s8 %v6131
        %v6133 = vlaneseq
        %v6134 = vshrl.u32 %v6133, 7
        %v6135 = vsub.s32 %v6132, %v6134
        %v6136 = vrot.slane %v6122, %v6135
        %v6137 = vcombine.low %v5928, %v5936
        %v6138 = vcombine.high %v5928, %v5936
        %v6140 = vunpack.c.l.s4 1983009808
        %v6141 = vunpack.c.0.s8 %v6140
        %v6142 = vlaneseq
        %v6143 = vshrl.u32 %v6142, 7
        %v6144 = vsub.s32 %v6141, %v6143
        %v6145 = vrot.slane %v6137, %v6144
        %v6147 = vunpack.c.l.s4 1983009808
        %v6148 = vunpack.c.0.s8 %v6147
        %v6149 = vlaneseq
        %v6150 = vshrl.u32 %v6149, 7
        %v6151 = vsub.s32 %v6148, %v6150
        %v6152 = vrot.slane %v6138, %v6151
        %v6153 = vcombine.low %v6097, %v6113
        %v6154 = vcombine.high %v6097, %v6113
        %v6156 = vunpack.c.l.s4 1934713408
        %v6157 = vunpack.c.0.s8 %v6156
        %v6158 = vlaneseq
        %v6159 = vshrl.u32 %v6158, 7
        %v6160 = vsub.s32 %v6157, %v6159
        %v6161 = vrot.slane %v6153, %v6160
        %v6163 = vunpack.c.l.s4 1934713408
        %v6164 = vunpack.c.0.s8 %v6163
        %v6165 = vlaneseq
        %v6166 = vshrl.u32 %v6165, 7
        %v6167 = vsub.s32 %v6164, %v6166
        %v6168 = vrot.slane %v6154, %v6167
        %v6169 = vcombine.low %v6104, %v6120
        %v6170 = vcombine.high %v6104, %v6120
        %v6172 = vunpack.c.l.s4 1934713408
        %v6173 = vunpack.c.0.s8 %v6172
        %v6174 = vlaneseq
        %v6175 = vshrl.u32 %v6174, 7
        %v6176 = vsub.s32 %v6173, %v6175
        %v6177 = vrot.slane %v6169, %v6176
        %v6179 = vunpack.c.l.s4 1934713408
        %v6180 = vunpack.c.0.s8 %v6179
        %v6181 = vlaneseq
        %v6182 = vshrl.u32 %v6181, 7
        %v6183 = vsub.s32 %v6180, %v6182
        %v6184 = vrot.slane %v6170, %v6183
        %v6185 = vcombine.low %v6129, %v6145
        %v6186 = vcombine.high %v6129, %v6145
        %v6188 = vunpack.c.l.s4 1934713408
        %v6189 = vunpack.c.0.s8 %v6188
        %v6190 = vlaneseq
        %v6191 = vshrl.u32 %v6190, 7
        %v6192 = vsub.s32 %v6189, %v6191
        %v6193 = vrot.slane %v6185, %v6192
        %v6195 = vunpack.c.l.s4 1934713408
        %v6196 = vunpack.c.0.s8 %v6195
        %v6197 = vlaneseq
        %v6198 = vshrl.u32 %v6197, 7
        %v6199 = vsub.s32 %v6196, %v6198
        %v6200 = vrot.slane %v6186, %v6199
        %v6201 = vcombine.low %v6136, %v6152
        %v6202 = vcombine.high %v6136, %v6152
        %v6204 = vunpack.c.l.s4 1934713408
        %v6205 = vunpack.c.0.s8 %v6204
        %v6206 = vlaneseq
        %v6207 = vshrl.u32 %v6206, 7
        %v6208 = vsub.s32 %v6205, %v6207
        %v6209 = vrot.slane %v6201, %v6208
        %v6211 = vunpack.c.l.s4 1934713408
        %v6212 = vunpack.c.0.s8 %v6211
        %v6213 = vlaneseq
        %v6214 = vshrl.u32 %v6213, 7
        %v6215 = vsub.s32 %v6212, %v6214
        %v6216 = vrot.slane %v6202, %v6215
        %v6217 = vcombine.low %v6161, %v6193
        %v6218 = vcombine.high %v6161, %v6193
        %v6219 = vcombine.low %v6168, %v6200
        %v6220 = vcombine.high %v6168, %v6200
        %v6221 = vcombine.low %v6177, %v6209
        %v6222 = vcombine.high %v6177, %v6209
        %v6223 = vcombine.low %v6184, %v6216
        %v6224 = vcombine.high %v6184, %v6216
        %6226 = vrot.lane.b32.xlu0 %v6082, 16
        %v6227 = vpop.permute.xlu0 %6226
        %6230 = vrot.lane.b32.xlu0 %v6083, 32
        %v6231 = vpop.permute.xlu0 %6230
        %6234 = vrot.lane.b32.xlu0 %v6084, 48
        %v6235 = vpop.permute.xlu0 %6234
        %6238 = vrot.lane.b32.xlu0 %v6085, 64
        %v6239 = vpop.permute.xlu0 %6238
        %6242 = vrot.lane.b32.xlu0 %v6086, 80
        %v6243 = vpop.permute.xlu0 %6242
        %6246 = vrot.lane.b32.xlu0 %v6087, 96
        %v6247 = vpop.permute.xlu0 %6246
        %6250 = vrot.lane.b32.xlu0 %v6088, 112
        %v6251 = vpop.permute.xlu0 %6250
        %6254 = vrot.lane.b32.xlu0 %v6218, 16
        %v6255 = vpop.permute.xlu0 %6254
        %6258 = vrot.lane.b32.xlu0 %v6219, 32
        %v6259 = vpop.permute.xlu0 %6258
        %6262 = vrot.lane.b32.xlu0 %v6220, 48
        %v6263 = vpop.permute.xlu0 %6262
        %6266 = vrot.lane.b32.xlu0 %v6221, 64
        %v6267 = vpop.permute.xlu0 %6266
        %6270 = vrot.lane.b32.xlu0 %v6222, 80
        %v6271 = vpop.permute.xlu0 %6270
        %6274 = vrot.lane.b32.xlu0 %v6223, 96
        %v6275 = vpop.permute.xlu0 %6274
        %6278 = vrot.lane.b32.xlu0 %v6224, 112
        %v6279 = vpop.permute.xlu0 %6278
        %v6281 = vsel %vm723, %v6081, %v6227
        %v6282 = vsel %vm725, %v6281, %v6231
        %v6283 = vsel %vm727, %v6282, %v6235
        %v6284 = vsel %vm729, %v6283, %v6239
        %v6285 = vsel %vm731, %v6284, %v6243
        %v6286 = vsel %vm733, %v6285, %v6247
        %v6287 = vsel %vm735, %v6286, %v6251
        %v6288 = vsel %vm723, %v6217, %v6255
        %v6289 = vsel %vm725, %v6288, %v6259
        %v6290 = vsel %vm727, %v6289, %v6263
        %v6291 = vsel %vm729, %v6290, %v6267
        %v6292 = vsel %vm731, %v6291, %v6271
        %v6293 = vsel %vm733, %v6292, %v6275
        %v6294 = vsel %vm735, %v6293, %v6279
        %6295 = vst [vmem:[#allocation5 + $0x70] sm:$0xff] %v6287
        %6296 = vst [vmem:[#allocation5 + $0x78] sm:$0xff] %v6294
        %6297 = vrot.lane.b32.xlu0 %v5507, 126
        %v6298 = vpop.permute.xlu0 %6297
        %6299 = vrot.lane.b32.xlu0 %v5509, 126
        %v6300 = vpop.permute.xlu0 %6299
        %6301 = vrot.lane.b32.xlu0 %v5512, 126
        %v6302 = vpop.permute.xlu0 %6301
        %6303 = vrot.lane.b32.xlu0 %v5514, 126
        %v6304 = vpop.permute.xlu0 %6303
        %6305 = vrot.lane.b32.xlu0 %v5517, 126
        %v6306 = vpop.permute.xlu0 %6305
        %6307 = vrot.lane.b32.xlu0 %v5519, 126
        %v6308 = vpop.permute.xlu0 %6307
        %6309 = vrot.lane.b32.xlu0 %v5522, 126
        %v6310 = vpop.permute.xlu0 %6309
        %6311 = vrot.lane.b32.xlu0 %v5524, 126
        %v6312 = vpop.permute.xlu0 %6311
        %6313 = vrot.lane.b32.xlu0 %v5527, 126
        %v6314 = vpop.permute.xlu0 %6313
        %6315 = vrot.lane.b32.xlu0 %v5529, 126
        %v6316 = vpop.permute.xlu0 %6315
        %6317 = vrot.lane.b32.xlu0 %v5532, 126
        %v6318 = vpop.permute.xlu0 %6317
        %6319 = vrot.lane.b32.xlu0 %v5534, 126
        %v6320 = vpop.permute.xlu0 %6319
        %6321 = vrot.lane.b32.xlu0 %v5537, 126
        %v6322 = vpop.permute.xlu0 %6321
        %6323 = vrot.lane.b32.xlu0 %v5539, 126
        %v6324 = vpop.permute.xlu0 %6323
        %6325 = vrot.lane.b32.xlu0 %v5542, 126
        %v6326 = vpop.permute.xlu0 %6325
        %6327 = vrot.lane.b32.xlu0 %v5544, 126
        %v6328 = vpop.permute.xlu0 %6327
        %v6345 = vcombine.low %v6298, %v6306
        %v6346 = vcombine.high %v6298, %v6306
        %v6348 = vunpack.c.l.s4 1983009808
        %v6349 = vunpack.c.0.s8 %v6348
        %v6350 = vlaneseq
        %v6351 = vshrl.u32 %v6350, 7
        %v6352 = vsub.s32 %v6349, %v6351
        %v6353 = vrot.slane %v6345, %v6352
        %v6355 = vunpack.c.l.s4 1983009808
        %v6356 = vunpack.c.0.s8 %v6355
        %v6357 = vlaneseq
        %v6358 = vshrl.u32 %v6357, 7
        %v6359 = vsub.s32 %v6356, %v6358
        %v6360 = vrot.slane %v6346, %v6359
        %v6361 = vcombine.low %v6302, %v6310
        %v6362 = vcombine.high %v6302, %v6310
        %v6364 = vunpack.c.l.s4 1983009808
        %v6365 = vunpack.c.0.s8 %v6364
        %v6366 = vlaneseq
        %v6367 = vshrl.u32 %v6366, 7
        %v6368 = vsub.s32 %v6365, %v6367
        %v6369 = vrot.slane %v6361, %v6368
        %v6371 = vunpack.c.l.s4 1983009808
        %v6372 = vunpack.c.0.s8 %v6371
        %v6373 = vlaneseq
        %v6374 = vshrl.u32 %v6373, 7
        %v6375 = vsub.s32 %v6372, %v6374
        %v6376 = vrot.slane %v6362, %v6375
        %v6377 = vcombine.low %v6314, %v6322
        %v6378 = vcombine.high %v6314, %v6322
        %v6380 = vunpack.c.l.s4 1983009808
        %v6381 = vunpack.c.0.s8 %v6380
        %v6382 = vlaneseq
        %v6383 = vshrl.u32 %v6382, 7
        %v6384 = vsub.s32 %v6381, %v6383
        %v6385 = vrot.slane %v6377, %v6384
        %v6387 = vunpack.c.l.s4 1983009808
        %v6388 = vunpack.c.0.s8 %v6387
        %v6389 = vlaneseq
        %v6390 = vshrl.u32 %v6389, 7
        %v6391 = vsub.s32 %v6388, %v6390
        %v6392 = vrot.slane %v6378, %v6391
        %v6393 = vcombine.low %v6318, %v6326
        %v6394 = vcombine.high %v6318, %v6326
        %v6396 = vunpack.c.l.s4 1983009808
        %v6397 = vunpack.c.0.s8 %v6396
        %v6398 = vlaneseq
        %v6399 = vshrl.u32 %v6398, 7
        %v6400 = vsub.s32 %v6397, %v6399
        %v6401 = vrot.slane %v6393, %v6400
        %v6403 = vunpack.c.l.s4 1983009808
        %v6404 = vunpack.c.0.s8 %v6403
        %v6405 = vlaneseq
        %v6406 = vshrl.u32 %v6405, 7
        %v6407 = vsub.s32 %v6404, %v6406
        %v6408 = vrot.slane %v6394, %v6407
        %v6409 = vcombine.low %v6353, %v6369
        %v6410 = vcombine.high %v6353, %v6369
        %v6412 = vunpack.c.l.s4 1934713408
        %v6413 = vunpack.c.0.s8 %v6412
        %v6414 = vlaneseq
        %v6415 = vshrl.u32 %v6414, 7
        %v6416 = vsub.s32 %v6413, %v6415
        %v6417 = vrot.slane %v6409, %v6416
        %v6419 = vunpack.c.l.s4 1934713408
        %v6420 = vunpack.c.0.s8 %v6419
        %v6421 = vlaneseq
        %v6422 = vshrl.u32 %v6421, 7
        %v6423 = vsub.s32 %v6420, %v6422
        %v6424 = vrot.slane %v6410, %v6423
        %v6425 = vcombine.low %v6360, %v6376
        %v6426 = vcombine.high %v6360, %v6376
        %v6428 = vunpack.c.l.s4 1934713408
        %v6429 = vunpack.c.0.s8 %v6428
        %v6430 = vlaneseq
        %v6431 = vshrl.u32 %v6430, 7
        %v6432 = vsub.s32 %v6429, %v6431
        %v6433 = vrot.slane %v6425, %v6432
        %v6435 = vunpack.c.l.s4 1934713408
        %v6436 = vunpack.c.0.s8 %v6435
        %v6437 = vlaneseq
        %v6438 = vshrl.u32 %v6437, 7
        %v6439 = vsub.s32 %v6436, %v6438
        %v6440 = vrot.slane %v6426, %v6439
        %v6441 = vcombine.low %v6385, %v6401
        %v6442 = vcombine.high %v6385, %v6401
        %v6444 = vunpack.c.l.s4 1934713408
        %v6445 = vunpack.c.0.s8 %v6444
        %v6446 = vlaneseq
        %v6447 = vshrl.u32 %v6446, 7
        %v6448 = vsub.s32 %v6445, %v6447
        %v6449 = vrot.slane %v6441, %v6448
        %v6451 = vunpack.c.l.s4 1934713408
        %v6452 = vunpack.c.0.s8 %v6451
        %v6453 = vlaneseq
        %v6454 = vshrl.u32 %v6453, 7
        %v6455 = vsub.s32 %v6452, %v6454
        %v6456 = vrot.slane %v6442, %v6455
        %v6457 = vcombine.low %v6392, %v6408
        %v6458 = vcombine.high %v6392, %v6408
        %v6460 = vunpack.c.l.s4 1934713408
        %v6461 = vunpack.c.0.s8 %v6460
        %v6462 = vlaneseq
        %v6463 = vshrl.u32 %v6462, 7
        %v6464 = vsub.s32 %v6461, %v6463
        %v6465 = vrot.slane %v6457, %v6464
        %v6467 = vunpack.c.l.s4 1934713408
        %v6468 = vunpack.c.0.s8 %v6467
        %v6469 = vlaneseq
        %v6470 = vshrl.u32 %v6469, 7
        %v6471 = vsub.s32 %v6468, %v6470
        %v6472 = vrot.slane %v6458, %v6471
        %v6473 = vcombine.low %v6417, %v6449
        %v6474 = vcombine.high %v6417, %v6449
        %v6475 = vcombine.low %v6424, %v6456
        %v6476 = vcombine.high %v6424, %v6456
        %v6477 = vcombine.low %v6433, %v6465
        %v6478 = vcombine.high %v6433, %v6465
        %v6479 = vcombine.low %v6440, %v6472
        %v6480 = vcombine.high %v6440, %v6472
        %v6481 = vcombine.low %v6300, %v6308
        %v6482 = vcombine.high %v6300, %v6308
        %v6484 = vunpack.c.l.s4 1983009808
        %v6485 = vunpack.c.0.s8 %v6484
        %v6486 = vlaneseq
        %v6487 = vshrl.u32 %v6486, 7
        %v6488 = vsub.s32 %v6485, %v6487
        %v6489 = vrot.slane %v6481, %v6488
        %v6491 = vunpack.c.l.s4 1983009808
        %v6492 = vunpack.c.0.s8 %v6491
        %v6493 = vlaneseq
        %v6494 = vshrl.u32 %v6493, 7
        %v6495 = vsub.s32 %v6492, %v6494
        %v6496 = vrot.slane %v6482, %v6495
        %v6497 = vcombine.low %v6304, %v6312
        %v6498 = vcombine.high %v6304, %v6312
        %v6500 = vunpack.c.l.s4 1983009808
        %v6501 = vunpack.c.0.s8 %v6500
        %v6502 = vlaneseq
        %v6503 = vshrl.u32 %v6502, 7
        %v6504 = vsub.s32 %v6501, %v6503
        %v6505 = vrot.slane %v6497, %v6504
        %v6507 = vunpack.c.l.s4 1983009808
        %v6508 = vunpack.c.0.s8 %v6507
        %v6509 = vlaneseq
        %v6510 = vshrl.u32 %v6509, 7
        %v6511 = vsub.s32 %v6508, %v6510
        %v6512 = vrot.slane %v6498, %v6511
        %v6513 = vcombine.low %v6316, %v6324
        %v6514 = vcombine.high %v6316, %v6324
        %v6516 = vunpack.c.l.s4 1983009808
        %v6517 = vunpack.c.0.s8 %v6516
        %v6518 = vlaneseq
        %v6519 = vshrl.u32 %v6518, 7
        %v6520 = vsub.s32 %v6517, %v6519
        %v6521 = vrot.slane %v6513, %v6520
        %v6523 = vunpack.c.l.s4 1983009808
        %v6524 = vunpack.c.0.s8 %v6523
        %v6525 = vlaneseq
        %v6526 = vshrl.u32 %v6525, 7
        %v6527 = vsub.s32 %v6524, %v6526
        %v6528 = vrot.slane %v6514, %v6527
        %v6529 = vcombine.low %v6320, %v6328
        %v6530 = vcombine.high %v6320, %v6328
        %v6532 = vunpack.c.l.s4 1983009808
        %v6533 = vunpack.c.0.s8 %v6532
        %v6534 = vlaneseq
        %v6535 = vshrl.u32 %v6534, 7
        %v6536 = vsub.s32 %v6533, %v6535
        %v6537 = vrot.slane %v6529, %v6536
        %v6539 = vunpack.c.l.s4 1983009808
        %v6540 = vunpack.c.0.s8 %v6539
        %v6541 = vlaneseq
        %v6542 = vshrl.u32 %v6541, 7
        %v6543 = vsub.s32 %v6540, %v6542
        %v6544 = vrot.slane %v6530, %v6543
        %v6545 = vcombine.low %v6489, %v6505
        %v6546 = vcombine.high %v6489, %v6505
        %v6548 = vunpack.c.l.s4 1934713408
        %v6549 = vunpack.c.0.s8 %v6548
        %v6550 = vlaneseq
        %v6551 = vshrl.u32 %v6550, 7
        %v6552 = vsub.s32 %v6549, %v6551
        %v6553 = vrot.slane %v6545, %v6552
        %v6555 = vunpack.c.l.s4 1934713408
        %v6556 = vunpack.c.0.s8 %v6555
        %v6557 = vlaneseq
        %v6558 = vshrl.u32 %v6557, 7
        %v6559 = vsub.s32 %v6556, %v6558
        %v6560 = vrot.slane %v6546, %v6559
        %v6561 = vcombine.low %v6496, %v6512
        %v6562 = vcombine.high %v6496, %v6512
        %v6564 = vunpack.c.l.s4 1934713408
        %v6565 = vunpack.c.0.s8 %v6564
        %v6566 = vlaneseq
        %v6567 = vshrl.u32 %v6566, 7
        %v6568 = vsub.s32 %v6565, %v6567
        %v6569 = vrot.slane %v6561, %v6568
        %v6571 = vunpack.c.l.s4 1934713408
        %v6572 = vunpack.c.0.s8 %v6571
        %v6573 = vlaneseq
        %v6574 = vshrl.u32 %v6573, 7
        %v6575 = vsub.s32 %v6572, %v6574
        %v6576 = vrot.slane %v6562, %v6575
        %v6577 = vcombine.low %v6521, %v6537
        %v6578 = vcombine.high %v6521, %v6537
        %v6580 = vunpack.c.l.s4 1934713408
        %v6581 = vunpack.c.0.s8 %v6580
        %v6582 = vlaneseq
        %v6583 = vshrl.u32 %v6582, 7
        %v6584 = vsub.s32 %v6581, %v6583
        %v6585 = vrot.slane %v6577, %v6584
        %v6587 = vunpack.c.l.s4 1934713408
        %v6588 = vunpack.c.0.s8 %v6587
        %v6589 = vlaneseq
        %v6590 = vshrl.u32 %v6589, 7
        %v6591 = vsub.s32 %v6588, %v6590
        %v6592 = vrot.slane %v6578, %v6591
        %v6593 = vcombine.low %v6528, %v6544
        %v6594 = vcombine.high %v6528, %v6544
        %v6596 = vunpack.c.l.s4 1934713408
        %v6597 = vunpack.c.0.s8 %v6596
        %v6598 = vlaneseq
        %v6599 = vshrl.u32 %v6598, 7
        %v6600 = vsub.s32 %v6597, %v6599
        %v6601 = vrot.slane %v6593, %v6600
        %v6603 = vunpack.c.l.s4 1934713408
        %v6604 = vunpack.c.0.s8 %v6603
        %v6605 = vlaneseq
        %v6606 = vshrl.u32 %v6605, 7
        %v6607 = vsub.s32 %v6604, %v6606
        %v6608 = vrot.slane %v6594, %v6607
        %v6609 = vcombine.low %v6553, %v6585
        %v6610 = vcombine.high %v6553, %v6585
        %v6611 = vcombine.low %v6560, %v6592
        %v6612 = vcombine.high %v6560, %v6592
        %v6613 = vcombine.low %v6569, %v6601
        %v6614 = vcombine.high %v6569, %v6601
        %v6615 = vcombine.low %v6576, %v6608
        %v6616 = vcombine.high %v6576, %v6608
        %6618 = vrot.lane.b32.xlu0 %v6474, 16
        %v6619 = vpop.permute.xlu0 %6618
        %6622 = vrot.lane.b32.xlu0 %v6475, 32
        %v6623 = vpop.permute.xlu0 %6622
        %6626 = vrot.lane.b32.xlu0 %v6476, 48
        %v6627 = vpop.permute.xlu0 %6626
        %6630 = vrot.lane.b32.xlu0 %v6477, 64
        %v6631 = vpop.permute.xlu0 %6630
        %6634 = vrot.lane.b32.xlu0 %v6478, 80
        %v6635 = vpop.permute.xlu0 %6634
        %6638 = vrot.lane.b32.xlu0 %v6479, 96
        %v6639 = vpop.permute.xlu0 %6638
        %6642 = vrot.lane.b32.xlu0 %v6480, 112
        %v6643 = vpop.permute.xlu0 %6642
        %6646 = vrot.lane.b32.xlu0 %v6610, 16
        %v6647 = vpop.permute.xlu0 %6646
        %6650 = vrot.lane.b32.xlu0 %v6611, 32
        %v6651 = vpop.permute.xlu0 %6650
        %6654 = vrot.lane.b32.xlu0 %v6612, 48
        %v6655 = vpop.permute.xlu0 %6654
        %6658 = vrot.lane.b32.xlu0 %v6613, 64
        %v6659 = vpop.permute.xlu0 %6658
        %6662 = vrot.lane.b32.xlu0 %v6614, 80
        %v6663 = vpop.permute.xlu0 %6662
        %6666 = vrot.lane.b32.xlu0 %v6615, 96
        %v6667 = vpop.permute.xlu0 %6666
        %6670 = vrot.lane.b32.xlu0 %v6616, 112
        %v6671 = vpop.permute.xlu0 %6670
        %v6673 = vsel %vm723, %v6473, %v6619
        %v6674 = vsel %vm725, %v6673, %v6623
        %v6675 = vsel %vm727, %v6674, %v6627
        %v6676 = vsel %vm729, %v6675, %v6631
        %v6677 = vsel %vm731, %v6676, %v6635
        %v6678 = vsel %vm733, %v6677, %v6639
        %v6679 = vsel %vm735, %v6678, %v6643
        %v6680 = vsel %vm723, %v6609, %v6647
        %v6681 = vsel %vm725, %v6680, %v6651
        %v6682 = vsel %vm727, %v6681, %v6655
        %v6683 = vsel %vm729, %v6682, %v6659
        %v6684 = vsel %vm731, %v6683, %v6663
        %v6685 = vsel %vm733, %v6684, %v6667
        %v6686 = vsel %vm735, %v6685, %v6671
        %6687 = vst [vmem:[#allocation5 + $0x80] sm:$0xff] %v6679
        %6688 = vst [vmem:[#allocation5 + $0x88] sm:$0xff] %v6686
        %v6689 = vld [vmem:[#allocation9] sm:$0xff]
        %v6690 = vld [vmem:[#allocation5] sm:$0xff]
        %v6691 = vld [vmem:[#allocation5 + $0x8] sm:$0xff]
        %v6692 = vld [vmem:[#allocation5 + $0x10] sm:$0xff]
        %v6693 = vld [vmem:[#allocation5 + $0x18] sm:$0xff]
        %v6694 = vld [vmem:[#allocation5 + $0x20] sm:$0xff]
        %v6695 = vld [vmem:[#allocation5 + $0x28] sm:$0xff]
        %v6696 = vld [vmem:[#allocation5 + $0x30] sm:$0xff]
        %v6697 = vld [vmem:[#allocation5 + $0x38] sm:$0xff]
        %v6698 = vld [vmem:[#allocation5 + $0x40] sm:$0xff]
        %v6699 = vld [vmem:[#allocation5 + $0x48] sm:$0xff]
        %v6700 = vld [vmem:[#allocation5 + $0x50] sm:$0xff]
        %v6701 = vld [vmem:[#allocation5 + $0x58] sm:$0xff]
        %v6702 = vld [vmem:[#allocation5 + $0x60] sm:$0xff]
        %v6703 = vld [vmem:[#allocation5 + $0x68] sm:$0xff]
        %v6704 = vld [vmem:[#allocation5 + $0x70] sm:$0xff]
        %v6705 = vld [vmem:[#allocation5 + $0x78] sm:$0xff]
        %v6706 = vld [vmem:[#allocation5 + $0x80] sm:$0xff]
        %v6707 = vld [vmem:[#allocation5 + $0x88] sm:$0xff]
        %v6708 = vld [vmem:[%s4] sm:$0xff]
        %6710 = vset.pattern.permute.xlu0 0
        %6711 = vperm.xlu0 %6710, %v6708
        %v6712 = vpop.permute.xlu0 %6711
        %vm6714 = vcmask 588800
        %v6716 = vsel %vm6714, %v6689, 0
        %6718 = vmatprep.subr.mxu0 0.0
        %6719 = vmatpush1.msra.mxu0 0.0
        %6720 = vmatprep.subr.mxu0 0.0
        %6721 = vmatpush1.msra.mxu0 0.0
        %6722 = vmatprep.subr.mxu0 0.0
        %6723 = vmatpush1.msra.mxu0 0.0
        %6724 = vmatprep.subr.mxu0 0.0
        %6725 = vmatpush1.msra.mxu0 0.0
        %6726 = vmatprep.subr.mxu0 0.0
        %6727 = vmatpush1.msra.mxu0 0.0
        %6728 = vmatprep.subr.mxu0 0.0
        %6729 = vmatpush1.msra.mxu0 0.0
        %6730 = vmatprep.subr.mxu0 0.0
        %6731 = vmatpush1.msra.mxu0 0.0
        %6732 = vmatprep.subr.mxu0 %v6707
        %6733 = vmatpush1.msra.mxu0 %v6706
        %6734 = vmatprep.subr.mxu0 %v6705
        %6735 = vmatpush1.msra.mxu0 %v6704
        %6736 = vmatprep.subr.mxu0 %v6703
        %6737 = vmatpush1.msra.mxu0 %v6702
        %6738 = vmatprep.subr.mxu0 %v6701
        %6739 = vmatpush1.msra.mxu0 %v6700
        %6740 = vmatprep.subr.mxu0 %v6699
        %6741 = vmatpush1.msra.mxu0 %v6698
        %6742 = vmatprep.subr.mxu0 %v6697
        %6743 = vmatpush1.msra.mxu0 %v6696
        %6744 = vmatprep.subr.mxu0 %v6695
        %6745 = vmatpush1.msra.mxu0 %v6694
        %6746 = vmatprep.subr.mxu0 %v6693
        %6747 = vmatpush1.msra.mxu0 %v6692
        %6748 = vmatprep.subr.mxu0 %v6691
        %6749 = vmatpush1.msra.mxu0 %v6690
        %6750 = vmatprep.subr.mxu0 0.0
        %6751 = vmatpush2.msra.mxu0 0.0
        %6752 = vmatprep.subr.mxu0 0.0
        %6753 = vmatpush2.msra.mxu0 0.0
        %6754 = vmatprep.subr.mxu0 0.0
        %6755 = vmatpush2.msra.mxu0 0.0
        %6756 = vmatprep.subr.mxu0 0.0
        %6757 = vmatpush2.msra.mxu0 0.0
        %6758 = vmatprep.subr.mxu0 0.0
        %6759 = vmatpush2.msra.mxu0 0.0
        %6760 = vmatprep.subr.mxu0 0.0
        %6761 = vmatpush2.msra.mxu0 0.0
        %6762 = vmatprep.subr.mxu0 0.0
        %6763 = vmatpush2.msra.mxu0 0.0
        %6764 = vmatprep.subr.mxu0 0.0
        %6765 = vmatpush2.msra.mxu0 0.0
        %6766 = vmatprep.subr.mxu0 0.0
        %6767 = vmatpush2.msra.mxu0 0.0
        %6768 = vmatprep.subr.mxu0 0.0
        %6769 = vmatpush2.msra.mxu0 0.0
        %6770 = vmatprep.subr.mxu0 0.0
        %6771 = vmatpush2.msra.mxu0 0.0
        %6772 = vmatprep.subr.mxu0 0.0
        %6773 = vmatpush2.msra.mxu0 0.0
        %6774 = vmatprep.subr.mxu0 0.0
        %6775 = vmatpush2.msra.mxu0 0.0
        %6776 = vmatprep.subr.mxu0 0.0
        %6777 = vmatpush2.msra.mxu0 0.0
        %6778 = vmatprep.subr.mxu0 0.0
        %6779 = vmatpush2.msra.mxu0 0.0
        %6780 = vmatprep.subr.mxu0 0.0
        %6781 = vmatpush2.msra.mxu0 0.0
        %6782 = vmatprep.mubr.f32.mxu0 0.0
        %6783 = vmatmul.mubr.f32.gmra.mxu0 %v6716
        %v6784 = vpop.f32.mrf.mxu0
        %v6785 = vadd.f32 %v6712, %v6784
        %v6786 = vpop.f32.mrf.mxu0
        %v6787 = vadd.f32 %v6712, %v6786
        %6788 = vdwg.mxu0
        %v6789 = vmax.f32 %v6785, 0.0
        %v6790 = vmax.f32 %v6787, 0.0
        %6791 = vst [vmem:[%s243] sm:$0xff] %v6789
        %6792 = vst [vmem:[%s243 + $0x8] sm:$0xff] %v6790
        %s6793 = sand.u32 %s139, 1
        %s6794 = scalar_lea.sflag [#allocation8], %s6793
        %s6795 = sand.u32 %s139, 1
        %s6796 = smul.addr %s6795, 16
        %s6797 = scalar_lea.vmem [#allocation11], %s6796
        // Predicated region
        $region49: #{tpu_custom_call.1} parent=39 // pred_check
          %p6798 = pneg %p149
        $region50: #{tpu_custom_call.1} parent=39 // pred_check_branch
          %6800 = sbr.rel (%p6798) target = $region52
        $region51: #{tpu_custom_call.1} parent=39 // pred_region
          %s6802 = ssub.s32 256, 256
          %6803 = vsyncadd %s6794, %s6802
          %s6804 = smul.addr %s21, 2
          %s6805 = smul.addr %s6804, 128
          %s6806 = scalar_lea.hbm %s5, %s6805
          %s6808 = sshll.u32 %s6797, 4
          %s6809 = int_to_ptr.vmem [resolvable:$true] %s6808
          %6811 = dma.vmem_to_hbm [thread:$0]  %s6809, 256, %s6806, %s6794
        $region52: #{tpu_custom_call.1} parent=39 // pred_fallthru
          _
      $region40: #{tpu_custom_call.1} parent=5 // pred_fallthru
        _
      %p6812 = scmp.le.s32.totalorder 2, %s16
      // Predicated region
      $region53: #{tpu_custom_call.1} parent=5 // pred_check
        %p6813 = pneg %p6812
      $region54: #{tpu_custom_call.1} parent=5 // pred_check_branch
        %6815 = sbr.rel (%p6813) target = $region56
      $region55: #{tpu_custom_call.1} parent=5 // pred_region
        %s6816 = ssub.s32 %s16, 2
        // Predicated region
        $region57: #{tpu_custom_call.1} parent=55 // pred_check
          %p6817 = pneg %p155
        $region58: #{tpu_custom_call.1} parent=55 // pred_check_branch
          %6819 = sbr.rel (%p6817) target = $region60
        $region59: #{tpu_custom_call.1} parent=55 // pred_region
          %s6820 = sand.u32 %s140, 1
          %s6821 = scalar_lea.sflag [#allocation8], %s6820
          %s6822 = sand.u32 %s140, 1
          %s6823 = smul.addr %s6822, 16
          %s6824 = scalar_lea.vmem [#allocation11], %s6823
          %6825 = dma.done %s6821, 256
        $region60: #{tpu_custom_call.1} parent=55 // pred_fallthru
          _
      $region56: #{tpu_custom_call.1} parent=5 // pred_fallthru
        _
    $region6: #{tpu_custom_call.1} parent=1 // loop_footer
      %s20 = sadd.s32 1, %s16
    $region7: #{tpu_custom_call.1} parent=1 // loop_footer_branch
      %15 = sbr.rel target = $region3
    $region8: #{tpu_custom_call.1} parent=1 // loop_exit
      _
    %6826 = vsyncpa [#allocation7], 1
    %s6827 = scalar_lea.sflag [#allocation7], 1
    %6828 = vsyncpa %s6827, 1
    %6829 = vsyncpa [#allocation10], 1
    %6830 = vsyncpa [#allocation8], 1
    %s6831 = scalar_lea.sflag [#allocation8], 1
    %6832 = vsyncpa %s6831, 1

</llo_original>
